<compile_context>
chip_gen: v7x
topology: tpu7x:2x2x1
jax: 0.10.0
libtpu: 0.0.40
codegen_flags: <defaults>
</compile_context>

<pallas_src>
import jax
import jax.numpy as jnp
import numpy as np
from jax.experimental import pallas as pl
from jax.experimental.pallas import tpu as pltpu

OUT_LANES = 128  # lane-dense output slab width


# ------------------------------------------------------------------
# Fused kernel: (layer-1 LSTM + layer-2 LSTM interleaved) -> fc1 -> ReLU -> fc2.
# Gate order matches PyTorch nn.LSTM: [i, f, g, o], concatenated along lanes.
# ------------------------------------------------------------------
def _make_fused_kernel(T, BT, H1, H2, unroll):
    f32 = jnp.float32

    def cell(pre, H, c):
        # Full-width nonlinearities (one EUP pass each over the (BT, 4H) row),
        # then static lane slices per gate.
        s = jax.nn.sigmoid(pre)
        t = jnp.tanh(pre)
        i_g = s[:, 0 * H:1 * H]
        f_g = s[:, 1 * H:2 * H]
        g_g = t[:, 2 * H:3 * H]
        o_g = s[:, 3 * H:4 * H]
        c_new = f_g * c + i_g * g_g
        h_new = o_g * jnp.tanh(c_new)
        return h_new, c_new

    def kernel(x_ref, wih1_ref, whh1_ref, b1_ref,
               wih2_ref, whh2_ref, b2_ref,
               wfc1_ref, bfc1_ref, wfc2_ref, bfc2_ref,
               out_ref, gx1_scr):
        md = wih1_ref.dtype                       # MXU operand dtype (f32/bf16)
        x_all = x_ref[0]                          # (T*BT, I), f32

        # ---- Layer-1 input projection hoisted out of the recurrence:
        #      ONE gate-concatenated batched matmul, bias folded in.
        gx1_scr[...] = (jnp.dot(x_all.astype(md), wih1_ref[...],
                                preferred_element_type=f32) + b1_ref[...])

        # Small recurrent weights stay resident in vregs across the time loop.
        whh1 = whh1_ref[...]
        wih2 = wih2_ref[...]
        whh2 = whh2_ref[...]
        b2 = b2_ref[...]

        # TODO(synk): nn.Dropout(0.2) after each LSTM is identity in eval mode.

        def step(t, carry):
            h1, c1, h2, c2 = carry
            base = pl.multiple_of(t * BT, BT)     # sublane-aligned scratch slice
            # Layer-1 cell: hoisted gx + h1 @ W_hh1 (one N=4H1 matmul).
            pre1 = gx1_scr[pl.ds(base, BT), :] + jnp.dot(
                h1.astype(md), whh1, preferred_element_type=f32)
            h1, c1 = cell(pre1, H1, c1)
            # Layer-2 cell fused into the same loop (no gx2 / h1-seq scratch):
            # h1_t @ W_ih2 + h2_{t-1} @ W_hh2 (two N=4H2 matmuls).
            pre2 = (jnp.dot(h1.astype(md), wih2, preferred_element_type=f32)
                    + jnp.dot(h2.astype(md), whh2, preferred_element_type=f32)
                    + b2)
            h2, c2 = cell(pre2, H2, c2)
            return h1, c1, h2, c2

        init = (jnp.zeros((BT, H1), f32), jnp.zeros((BT, H1), f32),
                jnp.zeros((BT, H2), f32), jnp.zeros((BT, H2), f32))
        _, _, h2_last, _ = jax.lax.fori_loop(0, T, step, init, unroll=unroll)

        # ---- FC head: fc1 -> ReLU -> fc2 (fc2 as broadcast-mul + lane reduce;
        #      an N=1 matmul would under-fill the MXU).
        fc1 = jnp.maximum(
            jnp.dot(h2_last.astype(md), wfc1_ref[...],
                    preferred_element_type=f32) + bfc1_ref[...], 0.0)
        out_col = (jnp.sum(fc1 * wfc2_ref[...], axis=1, keepdims=True)
                   + bfc2_ref[0])                             # (BT, 1)
        # Lane-dense (unmasked) store into the 128-wide slab.
        out_ref[...] = jnp.broadcast_to(out_col, out_ref.shape).astype(out_ref.dtype)

    return kernel


# ------------------------------------------------------------------
# Weight preparation.
# ------------------------------------------------------------------
def _cat_gates(w):
    """PyTorch (4H, In) gate-stacked weight -> (In, 4H); [i,f,g,o] order kept."""
    return jnp.asarray(w, jnp.float32).T


# ------------------------------------------------------------------
# Full model forward (batch_first, eval mode, like the PyTorch module).
# ------------------------------------------------------------------
def lstm_model_forward(x, params, *, batch_tile=None,
                       matmul_dtype=jnp.float32, unroll=True):
    """x: (B, T, input_size) -> (B, 1)."""
    B, T, I = x.shape
    H1 = params["w_hh1"].shape[1]
    H2 = params["w_hh2"].shape[1]
    F = params["w_fc1"].shape[0]

    # ---- Batch tiling: primary tuning knob. Prefer >=2 grid tiles (so v7x can
    #      shard the "parallel" axis over its 2 TCs), cap tile at 128 rows so
    #      the unrolled time loop doesn't blow vreg pressure.
    if batch_tile is None:
        Bp8 = -(-B // 8) * 8
        batch_tile = 8 if Bp8 <= 8 else min(128, -(-(Bp8 // 2) // 8) * 8)
    BT = batch_tile
    Bp = -(-B // BT) * BT
    NB = Bp // BT

    x_p = jnp.pad(x.astype(jnp.float32), ((0, Bp - B), (0, 0), (0, 0)))
    # (Bp, T, I) -> (NB, T*BT, I): inside each batch tile, timestep t occupies
    # the sublane-aligned row block [t*BT, (t+1)*BT).
    x_arr = (x_p.reshape(NB, BT, T, I)
             .transpose(0, 2, 1, 3)
             .reshape(NB, T * BT, I))

    md = matmul_dtype
    wih1 = _cat_gates(params["w_ih1"]).astype(md)                 # (I,  4H1)
    whh1 = _cat_gates(params["w_hh1"]).astype(md)                 # (H1, 4H1)
    b1 = (params["b_ih1"] + params["b_hh1"]).reshape(1, 4 * H1).astype(jnp.float32)
    wih2 = _cat_gates(params["w_ih2"]).astype(md)                 # (H1, 4H2)
    whh2 = _cat_gates(params["w_hh2"]).astype(md)                 # (H2, 4H2)
    b2 = (params["b_ih2"] + params["b_hh2"]).reshape(1, 4 * H2).astype(jnp.float32)
    wfc1 = params["w_fc1"].T.astype(md)                           # (H2, F)
    bfc1 = params["b_fc1"].reshape(1, F).astype(jnp.float32)
    wfc2 = params["w_fc2"].reshape(1, F).astype(jnp.float32)
    bfc2 = params["b_fc2"].reshape(1).astype(jnp.float32)         # scalar -> SMEM

    # ---- VMEM budget: scratch + double-buffered blocks + headroom, capped at
    #      v7x's 64 MiB physical VMEM so one tiling choice fits every gen.
    mdb = jnp.dtype(md).itemsize
    scratch_b = T * BT * 4 * H1 * 4
    in_b = (T * BT * I * 4
            + (I + H1) * 4 * H1 * mdb + (H1 + H2) * 4 * H2 * mdb
            + H2 * F * mdb + (4 * H1 + 4 * H2 + 2 * F) * 4)
    out_b = BT * OUT_LANES * 4
    vmem_limit = int(min(64 << 20,
                         max(scratch_b + 2 * (in_b + out_b) + (2 << 20), 8 << 20)))

    kernel = _make_fused_kernel(T, BT, H1, H2, unroll)
    full2d = lambda b: (0, 0)
    out = pl.pallas_call(
        kernel,
        out_shape=jax.ShapeDtypeStruct((Bp, OUT_LANES), jnp.float32),
        grid=(NB,),
        in_specs=[
            pl.BlockSpec((1, T * BT, I), lambda b: (b, 0, 0)),   # x (per batch tile)
            pl.BlockSpec((I, 4 * H1), full2d),
            pl.BlockSpec((H1, 4 * H1), full2d),
            pl.BlockSpec((1, 4 * H1), full2d),
            pl.BlockSpec((H1, 4 * H2), full2d),
            pl.BlockSpec((H2, 4 * H2), full2d),
            pl.BlockSpec((1, 4 * H2), full2d),
            pl.BlockSpec((H2, F), full2d),
            pl.BlockSpec((1, F), full2d),
            pl.BlockSpec((1, F), full2d),
            pl.BlockSpec(memory_space=pltpu.MemorySpace.SMEM),   # fc2 bias scalar
        ],
        out_specs=pl.BlockSpec((BT, OUT_LANES), lambda b: (b, 0)),
        scratch_shapes=[pltpu.VMEM((T * BT, 4 * H1), jnp.float32)],  # hoisted gx1
        compiler_params=pltpu.CompilerParams(
            dimension_semantics=("parallel",),        # batch tiles independent
            vmem_limit_bytes=vmem_limit),
    )(x_arr, wih1, whh1, b1, wih2, whh2, b2, wfc1, bfc1, wfc2, bfc2)
    return out[:B, :1]


# ------------------------------------------------------------------
# Pure-JAX reference (lax.scan LSTM) for correctness checking.
# ------------------------------------------------------------------
def lstm_ref(x_tm, w_ih, w_hh, b_ih, b_hh):
    H = w_hh.shape[1]
    B = x_tm.shape[1]

    def step(carry, x_t):
        h, c = carry
        g = x_t @ w_ih.T + h @ w_hh.T + b_ih + b_hh
        i = jax.nn.sigmoid(g[:, 0 * H:1 * H])
        f = jax.nn.sigmoid(g[:, 1 * H:2 * H])
        gg = jnp.tanh(g[:, 2 * H:3 * H])
        o = jax.nn.sigmoid(g[:, 3 * H:4 * H])
        c = f * c + i * gg
        h = o * jnp.tanh(c)
        return (h, c), h

    init = (jnp.zeros((B, H), jnp.float32), jnp.zeros((B, H), jnp.float32))
    _, hs = jax.lax.scan(step, init, x_tm)
    return hs


def model_ref(x, p):
    x_tm = jnp.transpose(x, (1, 0, 2))
    h1 = lstm_ref(x_tm, p["w_ih1"], p["w_hh1"], p["b_ih1"], p["b_hh1"])
    h2 = lstm_ref(h1, p["w_ih2"], p["w_hh2"], p["b_ih2"], p["b_hh2"])
    last = h2[-1]
    out = jnp.maximum(last @ p["w_fc1"].T + p["b_fc1"], 0.0)
    return out @ p["w_fc2"].T + p["b_fc2"]


# ------------------------------------------------------------------
def init_params(key, input_size, h1, h2, fc_size):
    """Deterministic init mimicking PyTorch's U(-1/sqrt(H), 1/sqrt(H))."""
    ks = jax.random.split(key, 14)

    def u(k, shape, bound):
        return jax.random.uniform(k, shape, jnp.float32, -bound, bound)

    b1v = 1.0 / np.sqrt(h1)
    b2v = 1.0 / np.sqrt(h2)
    bfc = 1.0 / np.sqrt(fc_size)
    return {
        "w_ih1": u(ks[0], (4 * h1, input_size), b1v),
        "w_hh1": u(ks[1], (4 * h1, h1), b1v),
        "b_ih1": u(ks[2], (4 * h1,), b1v),
        "b_hh1": u(ks[3], (4 * h1,), b1v),
        "w_ih2": u(ks[4], (4 * h2, h1), b2v),
        "w_hh2": u(ks[5], (4 * h2, h2), b2v),
        "b_ih2": u(ks[6], (4 * h2,), b2v),
        "b_hh2": u(ks[7], (4 * h2,), b2v),
        "w_fc1": u(ks[8], (fc_size, h2), b2v),
        "b_fc1": u(ks[9], (fc_size,), b2v),
        "w_fc2": u(ks[10], (1, fc_size), bfc),
        "b_fc2": u(ks[11], (1,), bfc),
    }


if __name__ == "__main__":
    B, T = 4, 8
    input_size, hidden1, hidden2, fc_size = 8, 32, 32, 16

    key = jax.random.PRNGKey(0)
    kx, kp = jax.random.split(key)
    x = jax.random.normal(kx, (B, T, input_size), jnp.float32)
    params = init_params(kp, input_size, hidden1, hidden2, fc_size)

    ref = jax.block_until_ready(model_ref(x, params))

    # f32 MXU operands: tight check against the f32 reference.
    out_f32 = jax.block_until_ready(jax.jit(lstm_model_forward)(x, params))
    assert out_f32.shape == (B, 1), out_f32.shape
    np.testing.assert_allclose(np.asarray(out_f32), np.asarray(ref),
                               atol=1e-4, rtol=1e-4)

    # bf16 MXU operands (recommended on v6e/v7x): state/accumulation stay f32,
    # so only a loose tolerance against the f32 reference is expected.
    fwd_bf16 = jax.jit(lambda a, p: lstm_model_forward(
        a, p, matmul_dtype=jnp.bfloat16))
    out_bf16 = jax.block_until_ready(fwd_bf16(x, params))
    np.testing.assert_allclose(np.asarray(out_bf16), np.asarray(ref),
                               atol=5e-2, rtol=5e-2)

    print("KERNEL_OK")
</pallas_src>

<mosaic_0001>
module attributes {stable_mosaic.version = 11 : i64} {
  func.func @kernel(%arg0: i32, %arg1: memref<1x64x8xf32, #tpu.memory_space<vmem>>, %arg2: memref<8x128xf32, #tpu.memory_space<vmem>>, %arg3: memref<32x128xf32, #tpu.memory_space<vmem>>, %arg4: memref<1x128xf32, #tpu.memory_space<vmem>>, %arg5: memref<32x128xf32, #tpu.memory_space<vmem>>, %arg6: memref<32x128xf32, #tpu.memory_space<vmem>>, %arg7: memref<1x128xf32, #tpu.memory_space<vmem>>, %arg8: memref<32x16xf32, #tpu.memory_space<vmem>>, %arg9: memref<1x16xf32, #tpu.memory_space<vmem>>, %arg10: memref<1x16xf32, #tpu.memory_space<vmem>>, %arg11: memref<1xf32, #tpu.memory_space<smem>>, %arg12: memref<8x128xf32, #tpu.memory_space<vmem>>, %arg13: memref<64x128xf32, #tpu.memory_space<vmem>>) attributes {dimension_semantics = [#tpu.dimension_semantics<parallel>], iteration_bounds = array<i64: 1>, scalar_prefetch = 0 : i64, scratch_operands = 1 : i64, tpu.core_type = #tpu.core_type<tc>, window_params = [{transform_indices = @transform_0, window_bounds = array<i64: 1, 64, 8>}, {pipeline_mode = #tpu.pipeline_mode<synchronous>, transform_indices = @transform_1, window_bounds = array<i64: 8, 128>}, {pipeline_mode = #tpu.pipeline_mode<synchronous>, transform_indices = @transform_2, window_bounds = array<i64: 32, 128>}, {pipeline_mode = #tpu.pipeline_mode<synchronous>, transform_indices = @transform_3, window_bounds = array<i64: 1, 128>}, {pipeline_mode = #tpu.pipeline_mode<synchronous>, transform_indices = @transform_4, window_bounds = array<i64: 32, 128>}, {pipeline_mode = #tpu.pipeline_mode<synchronous>, transform_indices = @transform_5, window_bounds = array<i64: 32, 128>}, {pipeline_mode = #tpu.pipeline_mode<synchronous>, transform_indices = @transform_6, window_bounds = array<i64: 1, 128>}, {pipeline_mode = #tpu.pipeline_mode<synchronous>, transform_indices = @transform_7, window_bounds = array<i64: 32, 16>}, {pipeline_mode = #tpu.pipeline_mode<synchronous>, transform_indices = @transform_8, window_bounds = array<i64: 1, 16>}, {pipeline_mode = #tpu.pipeline_mode<synchronous>, transform_indices = @transform_9, window_bounds = array<i64: 1, 16>}, {transform_indices = @transform_10, window_bounds = array<i64: 1>}, {transform_indices = @transform_11, window_bounds = array<i64: 8, 128>}]} {
    %c0 = arith.constant 0 : index
    %c0_0 = arith.constant 0 : index
    %c0_1 = arith.constant 0 : index
    %0 = vector.load %arg1[%c0, %c0_0, %c0_1] : memref<1x64x8xf32, #tpu.memory_space<vmem>>, vector<1x64x8xf32>
    %1 = vector.shape_cast %0 : vector<1x64x8xf32> to vector<64x8xf32>
    %c0_2 = arith.constant 0 : index
    %c0_3 = arith.constant 0 : index
    %2 = vector.load %arg2[%c0_2, %c0_3] : memref<8x128xf32, #tpu.memory_space<vmem>>, vector<8x128xf32>
    %cst = arith.constant dense<0.000000e+00> : vector<64x128xf32>
    %3 = tpu.matmul %1, %2, %cst {dimension_numbers = #tpu.dot_dimension_numbers<[1], [0], [0], [1], [0, 0, 1, 1], [], []>} : vector<64x8xf32>, vector<8x128xf32>, vector<64x128xf32> -> vector<64x128xf32>
    %c0_4 = arith.constant 0 : index
    %c0_5 = arith.constant 0 : index
    %4 = vector.load %arg4[%c0_4, %c0_5] : memref<1x128xf32, #tpu.memory_space<vmem>>, vector<1x128xf32>
    %5 = vector.broadcast %4 : vector<1x128xf32> to vector<64x128xf32>
    %6 = arith.addf %3, %5 : vector<64x128xf32>
    %c0_6 = arith.constant 0 : index
    %c0_7 = arith.constant 0 : index
    %7 = vector.load %arg13[%c0_6, %c0_7] : memref<64x128xf32, #tpu.memory_space<vmem>>, vector<64x128xf32>
    tpu.vector_store %arg13[%c0_6, %c0_7], %6 {strides = array<i32>} : memref<64x128xf32, #tpu.memory_space<vmem>>, vector<64x128xf32>,
    %c0_8 = arith.constant 0 : index
    %c0_9 = arith.constant 0 : index
    %8 = vector.load %arg3[%c0_8, %c0_9] : memref<32x128xf32, #tpu.memory_space<vmem>>, vector<32x128xf32>
    %c0_10 = arith.constant 0 : index
    %c0_11 = arith.constant 0 : index
    %9 = vector.load %arg5[%c0_10, %c0_11] : memref<32x128xf32, #tpu.memory_space<vmem>>, vector<32x128xf32>
    %c0_12 = arith.constant 0 : index
    %c0_13 = arith.constant 0 : index
    %10 = vector.load %arg6[%c0_12, %c0_13] : memref<32x128xf32, #tpu.memory_space<vmem>>, vector<32x128xf32>
    %c0_14 = arith.constant 0 : index
    %c0_15 = arith.constant 0 : index
    %11 = vector.load %arg7[%c0_14, %c0_15] : memref<1x128xf32, #tpu.memory_space<vmem>>, vector<1x128xf32>
    %cst_16 = arith.constant 0.000000e+00 : f32
    %12 = vector.broadcast %cst_16 : f32 to vector<8x32xf32>
    %cst_17 = arith.constant 0.000000e+00 : f32
    %13 = vector.broadcast %cst_17 : f32 to vector<8x32xf32>
    %cst_18 = arith.constant 0.000000e+00 : f32
    %14 = vector.broadcast %cst_18 : f32 to vector<8x32xf32>
    %cst_19 = arith.constant 0.000000e+00 : f32
    %15 = vector.broadcast %cst_19 : f32 to vector<8x32xf32>
    %c0_i32 = arith.constant 0 : i32
    %c8_i32 = arith.constant 8 : i32
    %16 = arith.muli %c0_i32, %c8_i32 : i32
    %17 = tpu.assume_multiple %16, 8 : i32
    %18 = arith.index_cast %17 : i32 to index
    %c0_20 = arith.constant 0 : index
    %19 = vector.load %arg13[%18, %c0_20] : memref<64x128xf32, #tpu.memory_space<vmem>>, vector<8x128xf32>
    %cst_21 = arith.constant dense<0.000000e+00> : vector<8x128xf32>
    %20 = tpu.matmul %12, %8, %cst_21 {dimension_numbers = #tpu.dot_dimension_numbers<[1], [0], [0], [1], [0, 0, 1, 1], [], []>} : vector<8x32xf32>, vector<32x128xf32>, vector<8x128xf32> -> vector<8x128xf32>
    %21 = arith.addf %19, %20 : vector<8x128xf32>
    %22 = arith.negf %21 : vector<8x128xf32>
    %23 = math.exp %22 : vector<8x128xf32>
    %cst_22 = arith.constant 1.000000e+00 : f32
    %24 = vector.broadcast %cst_22 : f32 to vector<8x128xf32>
    %25 = arith.addf %24, %23 : vector<8x128xf32>
    %26 = arith.divf %24, %25 : vector<8x128xf32>
    %27 = math.tanh %21 : vector<8x128xf32>
    %28 = vector.extract_strided_slice %26 {offsets = [0, 0], sizes = [8, 32], strides = [1, 1]} : vector<8x128xf32> to vector<8x32xf32>
    %29 = vector.extract_strided_slice %26 {offsets = [0, 32], sizes = [8, 32], strides = [1, 1]} : vector<8x128xf32> to vector<8x32xf32>
    %30 = vector.extract_strided_slice %27 {offsets = [0, 64], sizes = [8, 32], strides = [1, 1]} : vector<8x128xf32> to vector<8x32xf32>
    %31 = vector.extract_strided_slice %26 {offsets = [0, 96], sizes = [8, 32], strides = [1, 1]} : vector<8x128xf32> to vector<8x32xf32>
    %32 = arith.mulf %29, %13 : vector<8x32xf32>
    %33 = arith.mulf %28, %30 : vector<8x32xf32>
    %34 = arith.addf %32, %33 : vector<8x32xf32>
    %35 = math.tanh %34 : vector<8x32xf32>
    %36 = arith.mulf %31, %35 : vector<8x32xf32>
    %cst_23 = arith.constant dense<0.000000e+00> : vector<8x128xf32>
    %37 = tpu.matmul %36, %9, %cst_23 {dimension_numbers = #tpu.dot_dimension_numbers<[1], [0], [0], [1], [0, 0, 1, 1], [], []>} : vector<8x32xf32>, vector<32x128xf32>, vector<8x128xf32> -> vector<8x128xf32>
    %cst_24 = arith.constant dense<0.000000e+00> : vector<8x128xf32>
    %38 = tpu.matmul %14, %10, %cst_24 {dimension_numbers = #tpu.dot_dimension_numbers<[1], [0], [0], [1], [0, 0, 1, 1], [], []>} : vector<8x32xf32>, vector<32x128xf32>, vector<8x128xf32> -> vector<8x128xf32>
    %39 = arith.addf %37, %38 : vector<8x128xf32>
    %40 = vector.broadcast %11 : vector<1x128xf32> to vector<8x128xf32>
    %41 = arith.addf %39, %40 : vector<8x128xf32>
    %42 = arith.negf %41 : vector<8x128xf32>
    %43 = math.exp %42 : vector<8x128xf32>
    %cst_25 = arith.constant 1.000000e+00 : f32
    %44 = vector.broadcast %cst_25 : f32 to vector<8x128xf32>
    %45 = arith.addf %44, %43 : vector<8x128xf32>
    %46 = arith.divf %44, %45 : vector<8x128xf32>
    %47 = math.tanh %41 : vector<8x128xf32>
    %48 = vector.extract_strided_slice %46 {offsets = [0, 0], sizes = [8, 32], strides = [1, 1]} : vector<8x128xf32> to vector<8x32xf32>
    %49 = vector.extract_strided_slice %46 {offsets = [0, 32], sizes = [8, 32], strides = [1, 1]} : vector<8x128xf32> to vector<8x32xf32>
    %50 = vector.extract_strided_slice %47 {offsets = [0, 64], sizes = [8, 32], strides = [1, 1]} : vector<8x128xf32> to vector<8x32xf32>
    %51 = vector.extract_strided_slice %46 {offsets = [0, 96], sizes = [8, 32], strides = [1, 1]} : vector<8x128xf32> to vector<8x32xf32>
    %52 = arith.mulf %49, %15 : vector<8x32xf32>
    %53 = arith.mulf %48, %50 : vector<8x32xf32>
    %54 = arith.addf %52, %53 : vector<8x32xf32>
    %55 = math.tanh %54 : vector<8x32xf32>
    %56 = arith.mulf %51, %55 : vector<8x32xf32>
    %c1_i32 = arith.constant 1 : i32
    %c8_i32_26 = arith.constant 8 : i32
    %57 = arith.muli %c1_i32, %c8_i32_26 : i32
    %58 = tpu.assume_multiple %57, 8 : i32
    %59 = arith.index_cast %58 : i32 to index
    %c0_27 = arith.constant 0 : index
    %60 = vector.load %arg13[%59, %c0_27] : memref<64x128xf32, #tpu.memory_space<vmem>>, vector<8x128xf32>
    %cst_28 = arith.constant dense<0.000000e+00> : vector<8x128xf32>
    %61 = tpu.matmul %36, %8, %cst_28 {dimension_numbers = #tpu.dot_dimension_numbers<[1], [0], [0], [1], [0, 0, 1, 1], [], []>} : vector<8x32xf32>, vector<32x128xf32>, vector<8x128xf32> -> vector<8x128xf32>
    %62 = arith.addf %60, %61 : vector<8x128xf32>
    %63 = arith.negf %62 : vector<8x128xf32>
    %64 = math.exp %63 : vector<8x128xf32>
    %cst_29 = arith.constant 1.000000e+00 : f32
    %65 = vector.broadcast %cst_29 : f32 to vector<8x128xf32>
    %66 = arith.addf %65, %64 : vector<8x128xf32>
    %67 = arith.divf %65, %66 : vector<8x128xf32>
    %68 = math.tanh %62 : vector<8x128xf32>
    %69 = vector.extract_strided_slice %67 {offsets = [0, 0], sizes = [8, 32], strides = [1, 1]} : vector<8x128xf32> to vector<8x32xf32>
    %70 = vector.extract_strided_slice %67 {offsets = [0, 32], sizes = [8, 32], strides = [1, 1]} : vector<8x128xf32> to vector<8x32xf32>
    %71 = vector.extract_strided_slice %68 {offsets = [0, 64], sizes = [8, 32], strides = [1, 1]} : vector<8x128xf32> to vector<8x32xf32>
    %72 = vector.extract_strided_slice %67 {offsets = [0, 96], sizes = [8, 32], strides = [1, 1]} : vector<8x128xf32> to vector<8x32xf32>
    %73 = arith.mulf %70, %34 : vector<8x32xf32>
    %74 = arith.mulf %69, %71 : vector<8x32xf32>
    %75 = arith.addf %73, %74 : vector<8x32xf32>
    %76 = math.tanh %75 : vector<8x32xf32>
    %77 = arith.mulf %72, %76 : vector<8x32xf32>
    %cst_30 = arith.constant dense<0.000000e+00> : vector<8x128xf32>
    %78 = tpu.matmul %77, %9, %cst_30 {dimension_numbers = #tpu.dot_dimension_numbers<[1], [0], [0], [1], [0, 0, 1, 1], [], []>} : vector<8x32xf32>, vector<32x128xf32>, vector<8x128xf32> -> vector<8x128xf32>
    %cst_31 = arith.constant dense<0.000000e+00> : vector<8x128xf32>
    %79 = tpu.matmul %56, %10, %cst_31 {dimension_numbers = #tpu.dot_dimension_numbers<[1], [0], [0], [1], [0, 0, 1, 1], [], []>} : vector<8x32xf32>, vector<32x128xf32>, vector<8x128xf32> -> vector<8x128xf32>
    %80 = arith.addf %78, %79 : vector<8x128xf32>
    %81 = vector.broadcast %11 : vector<1x128xf32> to vector<8x128xf32>
    %82 = arith.addf %80, %81 : vector<8x128xf32>
    %83 = arith.negf %82 : vector<8x128xf32>
    %84 = math.exp %83 : vector<8x128xf32>
    %cst_32 = arith.constant 1.000000e+00 : f32
    %85 = vector.broadcast %cst_32 : f32 to vector<8x128xf32>
    %86 = arith.addf %85, %84 : vector<8x128xf32>
    %87 = arith.divf %85, %86 : vector<8x128xf32>
    %88 = math.tanh %82 : vector<8x128xf32>
    %89 = vector.extract_strided_slice %87 {offsets = [0, 0], sizes = [8, 32], strides = [1, 1]} : vector<8x128xf32> to vector<8x32xf32>
    %90 = vector.extract_strided_slice %87 {offsets = [0, 32], sizes = [8, 32], strides = [1, 1]} : vector<8x128xf32> to vector<8x32xf32>
    %91 = vector.extract_strided_slice %88 {offsets = [0, 64], sizes = [8, 32], strides = [1, 1]} : vector<8x128xf32> to vector<8x32xf32>
    %92 = vector.extract_strided_slice %87 {offsets = [0, 96], sizes = [8, 32], strides = [1, 1]} : vector<8x128xf32> to vector<8x32xf32>
    %93 = arith.mulf %90, %54 : vector<8x32xf32>
    %94 = arith.mulf %89, %91 : vector<8x32xf32>
    %95 = arith.addf %93, %94 : vector<8x32xf32>
    %96 = math.tanh %95 : vector<8x32xf32>
    %97 = arith.mulf %92, %96 : vector<8x32xf32>
    %c2_i32 = arith.constant 2 : i32
    %c8_i32_33 = arith.constant 8 : i32
    %98 = arith.muli %c2_i32, %c8_i32_33 : i32
    %99 = tpu.assume_multiple %98, 8 : i32
    %100 = arith.index_cast %99 : i32 to index
    %c0_34 = arith.constant 0 : index
    %101 = vector.load %arg13[%100, %c0_34] : memref<64x128xf32, #tpu.memory_space<vmem>>, vector<8x128xf32>
    %cst_35 = arith.constant dense<0.000000e+00> : vector<8x128xf32>
    %102 = tpu.matmul %77, %8, %cst_35 {dimension_numbers = #tpu.dot_dimension_numbers<[1], [0], [0], [1], [0, 0, 1, 1], [], []>} : vector<8x32xf32>, vector<32x128xf32>, vector<8x128xf32> -> vector<8x128xf32>
    %103 = arith.addf %101, %102 : vector<8x128xf32>
    %104 = arith.negf %103 : vector<8x128xf32>
    %105 = math.exp %104 : vector<8x128xf32>
    %cst_36 = arith.constant 1.000000e+00 : f32
    %106 = vector.broadcast %cst_36 : f32 to vector<8x128xf32>
    %107 = arith.addf %106, %105 : vector<8x128xf32>
    %108 = arith.divf %106, %107 : vector<8x128xf32>
    %109 = math.tanh %103 : vector<8x128xf32>
    %110 = vector.extract_strided_slice %108 {offsets = [0, 0], sizes = [8, 32], strides = [1, 1]} : vector<8x128xf32> to vector<8x32xf32>
    %111 = vector.extract_strided_slice %108 {offsets = [0, 32], sizes = [8, 32], strides = [1, 1]} : vector<8x128xf32> to vector<8x32xf32>
    %112 = vector.extract_strided_slice %109 {offsets = [0, 64], sizes = [8, 32], strides = [1, 1]} : vector<8x128xf32> to vector<8x32xf32>
    %113 = vector.extract_strided_slice %108 {offsets = [0, 96], sizes = [8, 32], strides = [1, 1]} : vector<8x128xf32> to vector<8x32xf32>
    %114 = arith.mulf %111, %75 : vector<8x32xf32>
    %115 = arith.mulf %110, %112 : vector<8x32xf32>
    %116 = arith.addf %114, %115 : vector<8x32xf32>
    %117 = math.tanh %116 : vector<8x32xf32>
    %118 = arith.mulf %113, %117 : vector<8x32xf32>
    %cst_37 = arith.constant dense<0.000000e+00> : vector<8x128xf32>
    %119 = tpu.matmul %118, %9, %cst_37 {dimension_numbers = #tpu.dot_dimension_numbers<[1], [0], [0], [1], [0, 0, 1, 1], [], []>} : vector<8x32xf32>, vector<32x128xf32>, vector<8x128xf32> -> vector<8x128xf32>
    %cst_38 = arith.constant dense<0.000000e+00> : vector<8x128xf32>
    %120 = tpu.matmul %97, %10, %cst_38 {dimension_numbers = #tpu.dot_dimension_numbers<[1], [0], [0], [1], [0, 0, 1, 1], [], []>} : vector<8x32xf32>, vector<32x128xf32>, vector<8x128xf32> -> vector<8x128xf32>
    %121 = arith.addf %119, %120 : vector<8x128xf32>
    %122 = vector.broadcast %11 : vector<1x128xf32> to vector<8x128xf32>
    %123 = arith.addf %121, %122 : vector<8x128xf32>
    %124 = arith.negf %123 : vector<8x128xf32>
    %125 = math.exp %124 : vector<8x128xf32>
    %cst_39 = arith.constant 1.000000e+00 : f32
    %126 = vector.broadcast %cst_39 : f32 to vector<8x128xf32>
    %127 = arith.addf %126, %125 : vector<8x128xf32>
    %128 = arith.divf %126, %127 : vector<8x128xf32>
    %129 = math.tanh %123 : vector<8x128xf32>
    %130 = vector.extract_strided_slice %128 {offsets = [0, 0], sizes = [8, 32], strides = [1, 1]} : vector<8x128xf32> to vector<8x32xf32>
    %131 = vector.extract_strided_slice %128 {offsets = [0, 32], sizes = [8, 32], strides = [1, 1]} : vector<8x128xf32> to vector<8x32xf32>
    %132 = vector.extract_strided_slice %129 {offsets = [0, 64], sizes = [8, 32], strides = [1, 1]} : vector<8x128xf32> to vector<8x32xf32>
    %133 = vector.extract_strided_slice %128 {offsets = [0, 96], sizes = [8, 32], strides = [1, 1]} : vector<8x128xf32> to vector<8x32xf32>
    %134 = arith.mulf %131, %95 : vector<8x32xf32>
    %135 = arith.mulf %130, %132 : vector<8x32xf32>
    %136 = arith.addf %134, %135 : vector<8x32xf32>
    %137 = math.tanh %136 : vector<8x32xf32>
    %138 = arith.mulf %133, %137 : vector<8x32xf32>
    %c3_i32 = arith.constant 3 : i32
    %c8_i32_40 = arith.constant 8 : i32
    %139 = arith.muli %c3_i32, %c8_i32_40 : i32
    %140 = tpu.assume_multiple %139, 8 : i32
    %141 = arith.index_cast %140 : i32 to index
    %c0_41 = arith.constant 0 : index
    %142 = vector.load %arg13[%141, %c0_41] : memref<64x128xf32, #tpu.memory_space<vmem>>, vector<8x128xf32>
    %cst_42 = arith.constant dense<0.000000e+00> : vector<8x128xf32>
    %143 = tpu.matmul %118, %8, %cst_42 {dimension_numbers = #tpu.dot_dimension_numbers<[1], [0], [0], [1], [0, 0, 1, 1], [], []>} : vector<8x32xf32>, vector<32x128xf32>, vector<8x128xf32> -> vector<8x128xf32>
    %144 = arith.addf %142, %143 : vector<8x128xf32>
    %145 = arith.negf %144 : vector<8x128xf32>
    %146 = math.exp %145 : vector<8x128xf32>
    %cst_43 = arith.constant 1.000000e+00 : f32
    %147 = vector.broadcast %cst_43 : f32 to vector<8x128xf32>
    %148 = arith.addf %147, %146 : vector<8x128xf32>
    %149 = arith.divf %147, %148 : vector<8x128xf32>
    %150 = math.tanh %144 : vector<8x128xf32>
    %151 = vector.extract_strided_slice %149 {offsets = [0, 0], sizes = [8, 32], strides = [1, 1]} : vector<8x128xf32> to vector<8x32xf32>
    %152 = vector.extract_strided_slice %149 {offsets = [0, 32], sizes = [8, 32], strides = [1, 1]} : vector<8x128xf32> to vector<8x32xf32>
    %153 = vector.extract_strided_slice %150 {offsets = [0, 64], sizes = [8, 32], strides = [1, 1]} : vector<8x128xf32> to vector<8x32xf32>
    %154 = vector.extract_strided_slice %149 {offsets = [0, 96], sizes = [8, 32], strides = [1, 1]} : vector<8x128xf32> to vector<8x32xf32>
    %155 = arith.mulf %152, %116 : vector<8x32xf32>
    %156 = arith.mulf %151, %153 : vector<8x32xf32>
    %157 = arith.addf %155, %156 : vector<8x32xf32>
    %158 = math.tanh %157 : vector<8x32xf32>
    %159 = arith.mulf %154, %158 : vector<8x32xf32>
    %cst_44 = arith.constant dense<0.000000e+00> : vector<8x128xf32>
    %160 = tpu.matmul %159, %9, %cst_44 {dimension_numbers = #tpu.dot_dimension_numbers<[1], [0], [0], [1], [0, 0, 1, 1], [], []>} : vector<8x32xf32>, vector<32x128xf32>, vector<8x128xf32> -> vector<8x128xf32>
    %cst_45 = arith.constant dense<0.000000e+00> : vector<8x128xf32>
    %161 = tpu.matmul %138, %10, %cst_45 {dimension_numbers = #tpu.dot_dimension_numbers<[1], [0], [0], [1], [0, 0, 1, 1], [], []>} : vector<8x32xf32>, vector<32x128xf32>, vector<8x128xf32> -> vector<8x128xf32>
    %162 = arith.addf %160, %161 : vector<8x128xf32>
    %163 = vector.broadcast %11 : vector<1x128xf32> to vector<8x128xf32>
    %164 = arith.addf %162, %163 : vector<8x128xf32>
    %165 = arith.negf %164 : vector<8x128xf32>
    %166 = math.exp %165 : vector<8x128xf32>
    %cst_46 = arith.constant 1.000000e+00 : f32
    %167 = vector.broadcast %cst_46 : f32 to vector<8x128xf32>
    %168 = arith.addf %167, %166 : vector<8x128xf32>
    %169 = arith.divf %167, %168 : vector<8x128xf32>
    %170 = math.tanh %164 : vector<8x128xf32>
    %171 = vector.extract_strided_slice %169 {offsets = [0, 0], sizes = [8, 32], strides = [1, 1]} : vector<8x128xf32> to vector<8x32xf32>
    %172 = vector.extract_strided_slice %169 {offsets = [0, 32], sizes = [8, 32], strides = [1, 1]} : vector<8x128xf32> to vector<8x32xf32>
    %173 = vector.extract_strided_slice %170 {offsets = [0, 64], sizes = [8, 32], strides = [1, 1]} : vector<8x128xf32> to vector<8x32xf32>
    %174 = vector.extract_strided_slice %169 {offsets = [0, 96], sizes = [8, 32], strides = [1, 1]} : vector<8x128xf32> to vector<8x32xf32>
    %175 = arith.mulf %172, %136 : vector<8x32xf32>
    %176 = arith.mulf %171, %173 : vector<8x32xf32>
    %177 = arith.addf %175, %176 : vector<8x32xf32>
    %178 = math.tanh %177 : vector<8x32xf32>
    %179 = arith.mulf %174, %178 : vector<8x32xf32>
    %c4_i32 = arith.constant 4 : i32
    %c8_i32_47 = arith.constant 8 : i32
    %180 = arith.muli %c4_i32, %c8_i32_47 : i32
    %181 = tpu.assume_multiple %180, 8 : i32
    %182 = arith.index_cast %181 : i32 to index
    %c0_48 = arith.constant 0 : index
    %183 = vector.load %arg13[%182, %c0_48] : memref<64x128xf32, #tpu.memory_space<vmem>>, vector<8x128xf32>
    %cst_49 = arith.constant dense<0.000000e+00> : vector<8x128xf32>
    %184 = tpu.matmul %159, %8, %cst_49 {dimension_numbers = #tpu.dot_dimension_numbers<[1], [0], [0], [1], [0, 0, 1, 1], [], []>} : vector<8x32xf32>, vector<32x128xf32>, vector<8x128xf32> -> vector<8x128xf32>
    %185 = arith.addf %183, %184 : vector<8x128xf32>
    %186 = arith.negf %185 : vector<8x128xf32>
    %187 = math.exp %186 : vector<8x128xf32>
    %cst_50 = arith.constant 1.000000e+00 : f32
    %188 = vector.broadcast %cst_50 : f32 to vector<8x128xf32>
    %189 = arith.addf %188, %187 : vector<8x128xf32>
    %190 = arith.divf %188, %189 : vector<8x128xf32>
    %191 = math.tanh %185 : vector<8x128xf32>
    %192 = vector.extract_strided_slice %190 {offsets = [0, 0], sizes = [8, 32], strides = [1, 1]} : vector<8x128xf32> to vector<8x32xf32>
    %193 = vector.extract_strided_slice %190 {offsets = [0, 32], sizes = [8, 32], strides = [1, 1]} : vector<8x128xf32> to vector<8x32xf32>
    %194 = vector.extract_strided_slice %191 {offsets = [0, 64], sizes = [8, 32], strides = [1, 1]} : vector<8x128xf32> to vector<8x32xf32>
    %195 = vector.extract_strided_slice %190 {offsets = [0, 96], sizes = [8, 32], strides = [1, 1]} : vector<8x128xf32> to vector<8x32xf32>
    %196 = arith.mulf %193, %157 : vector<8x32xf32>
    %197 = arith.mulf %192, %194 : vector<8x32xf32>
    %198 = arith.addf %196, %197 : vector<8x32xf32>
    %199 = math.tanh %198 : vector<8x32xf32>
    %200 = arith.mulf %195, %199 : vector<8x32xf32>
    %cst_51 = arith.constant dense<0.000000e+00> : vector<8x128xf32>
    %201 = tpu.matmul %200, %9, %cst_51 {dimension_numbers = #tpu.dot_dimension_numbers<[1], [0], [0], [1], [0, 0, 1, 1], [], []>} : vector<8x32xf32>, vector<32x128xf32>, vector<8x128xf32> -> vector<8x128xf32>
    %cst_52 = arith.constant dense<0.000000e+00> : vector<8x128xf32>
    %202 = tpu.matmul %179, %10, %cst_52 {dimension_numbers = #tpu.dot_dimension_numbers<[1], [0], [0], [1], [0, 0, 1, 1], [], []>} : vector<8x32xf32>, vector<32x128xf32>, vector<8x128xf32> -> vector<8x128xf32>
    %203 = arith.addf %201, %202 : vector<8x128xf32>
    %204 = vector.broadcast %11 : vector<1x128xf32> to vector<8x128xf32>
    %205 = arith.addf %203, %204 : vector<8x128xf32>
    %206 = arith.negf %205 : vector<8x128xf32>
    %207 = math.exp %206 : vector<8x128xf32>
    %cst_53 = arith.constant 1.000000e+00 : f32
    %208 = vector.broadcast %cst_53 : f32 to vector<8x128xf32>
    %209 = arith.addf %208, %207 : vector<8x128xf32>
    %210 = arith.divf %208, %209 : vector<8x128xf32>
    %211 = math.tanh %205 : vector<8x128xf32>
    %212 = vector.extract_strided_slice %210 {offsets = [0, 0], sizes = [8, 32], strides = [1, 1]} : vector<8x128xf32> to vector<8x32xf32>
    %213 = vector.extract_strided_slice %210 {offsets = [0, 32], sizes = [8, 32], strides = [1, 1]} : vector<8x128xf32> to vector<8x32xf32>
    %214 = vector.extract_strided_slice %211 {offsets = [0, 64], sizes = [8, 32], strides = [1, 1]} : vector<8x128xf32> to vector<8x32xf32>
    %215 = vector.extract_strided_slice %210 {offsets = [0, 96], sizes = [8, 32], strides = [1, 1]} : vector<8x128xf32> to vector<8x32xf32>
    %216 = arith.mulf %213, %177 : vector<8x32xf32>
    %217 = arith.mulf %212, %214 : vector<8x32xf32>
    %218 = arith.addf %216, %217 : vector<8x32xf32>
    %219 = math.tanh %218 : vector<8x32xf32>
    %220 = arith.mulf %215, %219 : vector<8x32xf32>
    %c5_i32 = arith.constant 5 : i32
    %c8_i32_54 = arith.constant 8 : i32
    %221 = arith.muli %c5_i32, %c8_i32_54 : i32
    %222 = tpu.assume_multiple %221, 8 : i32
    %223 = arith.index_cast %222 : i32 to index
    %c0_55 = arith.constant 0 : index
    %224 = vector.load %arg13[%223, %c0_55] : memref<64x128xf32, #tpu.memory_space<vmem>>, vector<8x128xf32>
    %cst_56 = arith.constant dense<0.000000e+00> : vector<8x128xf32>
    %225 = tpu.matmul %200, %8, %cst_56 {dimension_numbers = #tpu.dot_dimension_numbers<[1], [0], [0], [1], [0, 0, 1, 1], [], []>} : vector<8x32xf32>, vector<32x128xf32>, vector<8x128xf32> -> vector<8x128xf32>
    %226 = arith.addf %224, %225 : vector<8x128xf32>
    %227 = arith.negf %226 : vector<8x128xf32>
    %228 = math.exp %227 : vector<8x128xf32>
    %cst_57 = arith.constant 1.000000e+00 : f32
    %229 = vector.broadcast %cst_57 : f32 to vector<8x128xf32>
    %230 = arith.addf %229, %228 : vector<8x128xf32>
    %231 = arith.divf %229, %230 : vector<8x128xf32>
    %232 = math.tanh %226 : vector<8x128xf32>
    %233 = vector.extract_strided_slice %231 {offsets = [0, 0], sizes = [8, 32], strides = [1, 1]} : vector<8x128xf32> to vector<8x32xf32>
    %234 = vector.extract_strided_slice %231 {offsets = [0, 32], sizes = [8, 32], strides = [1, 1]} : vector<8x128xf32> to vector<8x32xf32>
    %235 = vector.extract_strided_slice %232 {offsets = [0, 64], sizes = [8, 32], strides = [1, 1]} : vector<8x128xf32> to vector<8x32xf32>
    %236 = vector.extract_strided_slice %231 {offsets = [0, 96], sizes = [8, 32], strides = [1, 1]} : vector<8x128xf32> to vector<8x32xf32>
    %237 = arith.mulf %234, %198 : vector<8x32xf32>
    %238 = arith.mulf %233, %235 : vector<8x32xf32>
    %239 = arith.addf %237, %238 : vector<8x32xf32>
    %240 = math.tanh %239 : vector<8x32xf32>
    %241 = arith.mulf %236, %240 : vector<8x32xf32>
    %cst_58 = arith.constant dense<0.000000e+00> : vector<8x128xf32>
    %242 = tpu.matmul %241, %9, %cst_58 {dimension_numbers = #tpu.dot_dimension_numbers<[1], [0], [0], [1], [0, 0, 1, 1], [], []>} : vector<8x32xf32>, vector<32x128xf32>, vector<8x128xf32> -> vector<8x128xf32>
    %cst_59 = arith.constant dense<0.000000e+00> : vector<8x128xf32>
    %243 = tpu.matmul %220, %10, %cst_59 {dimension_numbers = #tpu.dot_dimension_numbers<[1], [0], [0], [1], [0, 0, 1, 1], [], []>} : vector<8x32xf32>, vector<32x128xf32>, vector<8x128xf32> -> vector<8x128xf32>
    %244 = arith.addf %242, %243 : vector<8x128xf32>
    %245 = vector.broadcast %11 : vector<1x128xf32> to vector<8x128xf32>
    %246 = arith.addf %244, %245 : vector<8x128xf32>
    %247 = arith.negf %246 : vector<8x128xf32>
    %248 = math.exp %247 : vector<8x128xf32>
    %cst_60 = arith.constant 1.000000e+00 : f32
    %249 = vector.broadcast %cst_60 : f32 to vector<8x128xf32>
    %250 = arith.addf %249, %248 : vector<8x128xf32>
    %251 = arith.divf %249, %250 : vector<8x128xf32>
    %252 = math.tanh %246 : vector<8x128xf32>
    %253 = vector.extract_strided_slice %251 {offsets = [0, 0], sizes = [8, 32], strides = [1, 1]} : vector<8x128xf32> to vector<8x32xf32>
    %254 = vector.extract_strided_slice %251 {offsets = [0, 32], sizes = [8, 32], strides = [1, 1]} : vector<8x128xf32> to vector<8x32xf32>
    %255 = vector.extract_strided_slice %252 {offsets = [0, 64], sizes = [8, 32], strides = [1, 1]} : vector<8x128xf32> to vector<8x32xf32>
    %256 = vector.extract_strided_slice %251 {offsets = [0, 96], sizes = [8, 32], strides = [1, 1]} : vector<8x128xf32> to vector<8x32xf32>
    %257 = arith.mulf %254, %218 : vector<8x32xf32>
    %258 = arith.mulf %253, %255 : vector<8x32xf32>
    %259 = arith.addf %257, %258 : vector<8x32xf32>
    %260 = math.tanh %259 : vector<8x32xf32>
    %261 = arith.mulf %256, %260 : vector<8x32xf32>
    %c6_i32 = arith.constant 6 : i32
    %c8_i32_61 = arith.constant 8 : i32
    %262 = arith.muli %c6_i32, %c8_i32_61 : i32
    %263 = tpu.assume_multiple %262, 8 : i32
    %264 = arith.index_cast %263 : i32 to index
    %c0_62 = arith.constant 0 : index
    %265 = vector.load %arg13[%264, %c0_62] : memref<64x128xf32, #tpu.memory_space<vmem>>, vector<8x128xf32>
    %cst_63 = arith.constant dense<0.000000e+00> : vector<8x128xf32>
    %266 = tpu.matmul %241, %8, %cst_63 {dimension_numbers = #tpu.dot_dimension_numbers<[1], [0], [0], [1], [0, 0, 1, 1], [], []>} : vector<8x32xf32>, vector<32x128xf32>, vector<8x128xf32> -> vector<8x128xf32>
    %267 = arith.addf %265, %266 : vector<8x128xf32>
    %268 = arith.negf %267 : vector<8x128xf32>
    %269 = math.exp %268 : vector<8x128xf32>
    %cst_64 = arith.constant 1.000000e+00 : f32
    %270 = vector.broadcast %cst_64 : f32 to vector<8x128xf32>
    %271 = arith.addf %270, %269 : vector<8x128xf32>
    %272 = arith.divf %270, %271 : vector<8x128xf32>
    %273 = math.tanh %267 : vector<8x128xf32>
    %274 = vector.extract_strided_slice %272 {offsets = [0, 0], sizes = [8, 32], strides = [1, 1]} : vector<8x128xf32> to vector<8x32xf32>
    %275 = vector.extract_strided_slice %272 {offsets = [0, 32], sizes = [8, 32], strides = [1, 1]} : vector<8x128xf32> to vector<8x32xf32>
    %276 = vector.extract_strided_slice %273 {offsets = [0, 64], sizes = [8, 32], strides = [1, 1]} : vector<8x128xf32> to vector<8x32xf32>
    %277 = vector.extract_strided_slice %272 {offsets = [0, 96], sizes = [8, 32], strides = [1, 1]} : vector<8x128xf32> to vector<8x32xf32>
    %278 = arith.mulf %275, %239 : vector<8x32xf32>
    %279 = arith.mulf %274, %276 : vector<8x32xf32>
    %280 = arith.addf %278, %279 : vector<8x32xf32>
    %281 = math.tanh %280 : vector<8x32xf32>
    %282 = arith.mulf %277, %281 : vector<8x32xf32>
    %cst_65 = arith.constant dense<0.000000e+00> : vector<8x128xf32>
    %283 = tpu.matmul %282, %9, %cst_65 {dimension_numbers = #tpu.dot_dimension_numbers<[1], [0], [0], [1], [0, 0, 1, 1], [], []>} : vector<8x32xf32>, vector<32x128xf32>, vector<8x128xf32> -> vector<8x128xf32>
    %cst_66 = arith.constant dense<0.000000e+00> : vector<8x128xf32>
    %284 = tpu.matmul %261, %10, %cst_66 {dimension_numbers = #tpu.dot_dimension_numbers<[1], [0], [0], [1], [0, 0, 1, 1], [], []>} : vector<8x32xf32>, vector<32x128xf32>, vector<8x128xf32> -> vector<8x128xf32>
    %285 = arith.addf %283, %284 : vector<8x128xf32>
    %286 = vector.broadcast %11 : vector<1x128xf32> to vector<8x128xf32>
    %287 = arith.addf %285, %286 : vector<8x128xf32>
    %288 = arith.negf %287 : vector<8x128xf32>
    %289 = math.exp %288 : vector<8x128xf32>
    %cst_67 = arith.constant 1.000000e+00 : f32
    %290 = vector.broadcast %cst_67 : f32 to vector<8x128xf32>
    %291 = arith.addf %290, %289 : vector<8x128xf32>
    %292 = arith.divf %290, %291 : vector<8x128xf32>
    %293 = math.tanh %287 : vector<8x128xf32>
    %294 = vector.extract_strided_slice %292 {offsets = [0, 0], sizes = [8, 32], strides = [1, 1]} : vector<8x128xf32> to vector<8x32xf32>
    %295 = vector.extract_strided_slice %292 {offsets = [0, 32], sizes = [8, 32], strides = [1, 1]} : vector<8x128xf32> to vector<8x32xf32>
    %296 = vector.extract_strided_slice %293 {offsets = [0, 64], sizes = [8, 32], strides = [1, 1]} : vector<8x128xf32> to vector<8x32xf32>
    %297 = vector.extract_strided_slice %292 {offsets = [0, 96], sizes = [8, 32], strides = [1, 1]} : vector<8x128xf32> to vector<8x32xf32>
    %298 = arith.mulf %295, %259 : vector<8x32xf32>
    %299 = arith.mulf %294, %296 : vector<8x32xf32>
    %300 = arith.addf %298, %299 : vector<8x32xf32>
    %301 = math.tanh %300 : vector<8x32xf32>
    %302 = arith.mulf %297, %301 : vector<8x32xf32>
    %c7_i32 = arith.constant 7 : i32
    %c8_i32_68 = arith.constant 8 : i32
    %303 = arith.muli %c7_i32, %c8_i32_68 : i32
    %304 = tpu.assume_multiple %303, 8 : i32
    %305 = arith.index_cast %304 : i32 to index
    %c0_69 = arith.constant 0 : index
    %306 = vector.load %arg13[%305, %c0_69] : memref<64x128xf32, #tpu.memory_space<vmem>>, vector<8x128xf32>
    %cst_70 = arith.constant dense<0.000000e+00> : vector<8x128xf32>
    %307 = tpu.matmul %282, %8, %cst_70 {dimension_numbers = #tpu.dot_dimension_numbers<[1], [0], [0], [1], [0, 0, 1, 1], [], []>} : vector<8x32xf32>, vector<32x128xf32>, vector<8x128xf32> -> vector<8x128xf32>
    %308 = arith.addf %306, %307 : vector<8x128xf32>
    %309 = arith.negf %308 : vector<8x128xf32>
    %310 = math.exp %309 : vector<8x128xf32>
    %cst_71 = arith.constant 1.000000e+00 : f32
    %311 = vector.broadcast %cst_71 : f32 to vector<8x128xf32>
    %312 = arith.addf %311, %310 : vector<8x128xf32>
    %313 = arith.divf %311, %312 : vector<8x128xf32>
    %314 = math.tanh %308 : vector<8x128xf32>
    %315 = vector.extract_strided_slice %313 {offsets = [0, 0], sizes = [8, 32], strides = [1, 1]} : vector<8x128xf32> to vector<8x32xf32>
    %316 = vector.extract_strided_slice %313 {offsets = [0, 32], sizes = [8, 32], strides = [1, 1]} : vector<8x128xf32> to vector<8x32xf32>
    %317 = vector.extract_strided_slice %314 {offsets = [0, 64], sizes = [8, 32], strides = [1, 1]} : vector<8x128xf32> to vector<8x32xf32>
    %318 = vector.extract_strided_slice %313 {offsets = [0, 96], sizes = [8, 32], strides = [1, 1]} : vector<8x128xf32> to vector<8x32xf32>
    %319 = arith.mulf %316, %280 : vector<8x32xf32>
    %320 = arith.mulf %315, %317 : vector<8x32xf32>
    %321 = arith.addf %319, %320 : vector<8x32xf32>
    %322 = math.tanh %321 : vector<8x32xf32>
    %323 = arith.mulf %318, %322 : vector<8x32xf32>
    %cst_72 = arith.constant dense<0.000000e+00> : vector<8x128xf32>
    %324 = tpu.matmul %323, %9, %cst_72 {dimension_numbers = #tpu.dot_dimension_numbers<[1], [0], [0], [1], [0, 0, 1, 1], [], []>} : vector<8x32xf32>, vector<32x128xf32>, vector<8x128xf32> -> vector<8x128xf32>
    %cst_73 = arith.constant dense<0.000000e+00> : vector<8x128xf32>
    %325 = tpu.matmul %302, %10, %cst_73 {dimension_numbers = #tpu.dot_dimension_numbers<[1], [0], [0], [1], [0, 0, 1, 1], [], []>} : vector<8x32xf32>, vector<32x128xf32>, vector<8x128xf32> -> vector<8x128xf32>
    %326 = arith.addf %324, %325 : vector<8x128xf32>
    %327 = vector.broadcast %11 : vector<1x128xf32> to vector<8x128xf32>
    %328 = arith.addf %326, %327 : vector<8x128xf32>
    %329 = arith.negf %328 : vector<8x128xf32>
    %330 = math.exp %329 : vector<8x128xf32>
    %cst_74 = arith.constant 1.000000e+00 : f32
    %331 = vector.broadcast %cst_74 : f32 to vector<8x128xf32>
    %332 = arith.addf %331, %330 : vector<8x128xf32>
    %333 = arith.divf %331, %332 : vector<8x128xf32>
    %334 = math.tanh %328 : vector<8x128xf32>
    %335 = vector.extract_strided_slice %333 {offsets = [0, 0], sizes = [8, 32], strides = [1, 1]} : vector<8x128xf32> to vector<8x32xf32>
    %336 = vector.extract_strided_slice %333 {offsets = [0, 32], sizes = [8, 32], strides = [1, 1]} : vector<8x128xf32> to vector<8x32xf32>
    %337 = vector.extract_strided_slice %334 {offsets = [0, 64], sizes = [8, 32], strides = [1, 1]} : vector<8x128xf32> to vector<8x32xf32>
    %338 = vector.extract_strided_slice %333 {offsets = [0, 96], sizes = [8, 32], strides = [1, 1]} : vector<8x128xf32> to vector<8x32xf32>
    %339 = arith.mulf %336, %300 : vector<8x32xf32>
    %340 = arith.mulf %335, %337 : vector<8x32xf32>
    %341 = arith.addf %339, %340 : vector<8x32xf32>
    %342 = math.tanh %341 : vector<8x32xf32>
    %343 = arith.mulf %338, %342 : vector<8x32xf32>
    %c8_i32_75 = arith.constant 8 : i32
    %c0_76 = arith.constant 0 : index
    %c0_77 = arith.constant 0 : index
    %344 = vector.load %arg8[%c0_76, %c0_77] : memref<32x16xf32, #tpu.memory_space<vmem>>, vector<32x16xf32>
    %cst_78 = arith.constant dense<0.000000e+00> : vector<8x16xf32>
    %345 = tpu.matmul %343, %344, %cst_78 {dimension_numbers = #tpu.dot_dimension_numbers<[1], [0], [0], [1], [0, 0, 1, 1], [], []>} : vector<8x32xf32>, vector<32x16xf32>, vector<8x16xf32> -> vector<8x16xf32>
    %c0_79 = arith.constant 0 : index
    %c0_80 = arith.constant 0 : index
    %346 = vector.load %arg9[%c0_79, %c0_80] : memref<1x16xf32, #tpu.memory_space<vmem>>, vector<1x16xf32>
    %347 = vector.broadcast %346 : vector<1x16xf32> to vector<8x16xf32>
    %348 = arith.addf %345, %347 : vector<8x16xf32>
    %cst_81 = arith.constant 0.000000e+00 : f32
    %349 = vector.broadcast %cst_81 : f32 to vector<8x16xf32>
    %350 = arith.maximumf %348, %349 : vector<8x16xf32>
    %c0_82 = arith.constant 0 : index
    %c0_83 = arith.constant 0 : index
    %351 = vector.load %arg10[%c0_82, %c0_83] : memref<1x16xf32, #tpu.memory_space<vmem>>, vector<1x16xf32>
    %352 = vector.broadcast %351 : vector<1x16xf32> to vector<8x16xf32>
    %353 = arith.mulf %350, %352 : vector<8x16xf32>
    %cst_84 = arith.constant dense<0.000000e+00> : vector<8xf32>
    %354 = vector.multi_reduction <add>, %353, %cst_84 [1] : vector<8x16xf32> to vector<8xf32>
    %355 = vector.shape_cast %354 : vector<8xf32> to vector<8x1xf32>
    %c0_85 = arith.constant 0 : index
    %356 = memref.load %arg11[%c0_85] : memref<1xf32, #tpu.memory_space<smem>>
    %357 = vector.broadcast %356 : f32 to vector<8x1xf32>
    %358 = arith.addf %355, %357 : vector<8x1xf32>
    %359 = vector.shape_cast %358 : vector<8x1xf32> to vector<8x1xf32>
    %360 = vector.broadcast %359 : vector<8x1xf32> to vector<8x128xf32>
    %c0_86 = arith.constant 0 : index
    %c0_87 = arith.constant 0 : index
    %361 = vector.load %arg12[%c0_86, %c0_87] : memref<8x128xf32, #tpu.memory_space<vmem>>, vector<8x128xf32>
    tpu.vector_store %arg12[%c0_86, %c0_87], %360 {strides = array<i32>} : memref<8x128xf32, #tpu.memory_space<vmem>>, vector<8x128xf32>,
    return
  }
  func.func @transform_0(%arg0: i32) -> (i32, i32, i32) {
    %c0_i32 = arith.constant 0 : i32
    %c0_i32_0 = arith.constant 0 : i32
    %c0_i32_1 = arith.constant 0 : i32
    return %arg0, %c0_i32, %c0_i32_0 : i32, i32, i32
  }
  func.func @transform_1(%arg0: i32) -> (i32, i32) {
    %c0_i32 = arith.constant 0 : i32
    %c0_i32_0 = arith.constant 0 : i32
    %c0_i32_1 = arith.constant 0 : i32
    return %c0_i32, %c0_i32_0 : i32, i32
  }
  func.func @transform_2(%arg0: i32) -> (i32, i32) {
    %c0_i32 = arith.constant 0 : i32
    %c0_i32_0 = arith.constant 0 : i32
    %c0_i32_1 = arith.constant 0 : i32
    return %c0_i32, %c0_i32_0 : i32, i32
  }
  func.func @transform_3(%arg0: i32) -> (i32, i32) {
    %c0_i32 = arith.constant 0 : i32
    %c0_i32_0 = arith.constant 0 : i32
    %c0_i32_1 = arith.constant 0 : i32
    return %c0_i32, %c0_i32_0 : i32, i32
  }
  func.func @transform_4(%arg0: i32) -> (i32, i32) {
    %c0_i32 = arith.constant 0 : i32
    %c0_i32_0 = arith.constant 0 : i32
    %c0_i32_1 = arith.constant 0 : i32
    return %c0_i32, %c0_i32_0 : i32, i32
  }
  func.func @transform_5(%arg0: i32) -> (i32, i32) {
    %c0_i32 = arith.constant 0 : i32
    %c0_i32_0 = arith.constant 0 : i32
    %c0_i32_1 = arith.constant 0 : i32
    return %c0_i32, %c0_i32_0 : i32, i32
  }
  func.func @transform_6(%arg0: i32) -> (i32, i32) {
    %c0_i32 = arith.constant 0 : i32
    %c0_i32_0 = arith.constant 0 : i32
    %c0_i32_1 = arith.constant 0 : i32
    return %c0_i32, %c0_i32_0 : i32, i32
  }
  func.func @transform_7(%arg0: i32) -> (i32, i32) {
    %c0_i32 = arith.constant 0 : i32
    %c0_i32_0 = arith.constant 0 : i32
    %c0_i32_1 = arith.constant 0 : i32
    return %c0_i32, %c0_i32_0 : i32, i32
  }
  func.func @transform_8(%arg0: i32) -> (i32, i32) {
    %c0_i32 = arith.constant 0 : i32
    %c0_i32_0 = arith.constant 0 : i32
    %c0_i32_1 = arith.constant 0 : i32
    return %c0_i32, %c0_i32_0 : i32, i32
  }
  func.func @transform_9(%arg0: i32) -> (i32, i32) {
    %c0_i32 = arith.constant 0 : i32
    %c0_i32_0 = arith.constant 0 : i32
    %c0_i32_1 = arith.constant 0 : i32
    return %c0_i32, %c0_i32_0 : i32, i32
  }
  func.func @transform_10(%arg0: i32) -> i32 {
    %c0_i32 = arith.constant 0 : i32
    %c0_i32_0 = arith.constant 0 : i32
    return %c0_i32 : i32
  }
  func.func @transform_11(%arg0: i32) -> (i32, i32) {
    %c0_i32 = arith.constant 0 : i32
    %c0_i32_0 = arith.constant 0 : i32
    return %arg0, %c0_i32 : i32, i32
  }
}

</mosaic_0001>

<llo_original>
// kernel: lstm_model_forward.1
$region0: #{lstm_model_forward.1}
  #allocation0 [shape = 'u32[]', space=smem, size = 0x4, offset = 0x4, fixed_abs, tag = 'smem constant byte address 0x4 - core index']
  #allocation1 [shape = 'u32[144,128]{1,0:T(1,128)}', space=vmem, size = 0x12000, scoped, tag = 'internal scratch']
  #allocation2 [shape = 'f32[64,128]{1,0:T(8,128)}', space=vmem, size = 0x8000, scoped, tag = 'scratch operand']
  #allocation3 [shape = 'f32[1]{0:T(128)S(6)}', space=smem, size = 0x200, scoped, tag = 'scoped memory for lstm_model_forward.1']
  %s0 = inlined_call_operand.vmem [shape: f32[1,64,8], index: 0, kind: input, shape index: {}]
  %s1 = inlined_call_operand.vmem [shape: f32[8,128], index: 1, kind: input, shape index: {}]
  %s2 = inlined_call_operand.vmem [shape: f32[32,128], index: 2, kind: input, shape index: {}]
  %s3 = inlined_call_operand.vmem [shape: f32[1,128], index: 3, kind: input, shape index: {}]
  %s4 = inlined_call_operand.vmem [shape: f32[32,128], index: 4, kind: input, shape index: {}]
  %s5 = inlined_call_operand.vmem [shape: f32[32,128], index: 5, kind: input, shape index: {}]
  %s6 = inlined_call_operand.vmem [shape: f32[1,128], index: 6, kind: input, shape index: {}]
  %s7 = inlined_call_operand.vmem [shape: f32[32,16], index: 7, kind: input, shape index: {}]
  %s8 = inlined_call_operand.vmem [shape: f32[1,16], index: 8, kind: input, shape index: {}]
  %s9 = inlined_call_operand.vmem [shape: f32[1,16], index: 9, kind: input, shape index: {}]
  %s10 = inlined_call_operand.<no memory space> [shape: f32[1], index: 10, kind: input, shape index: {}]
  %s11 = inlined_call_operand.vmem [shape: f32[8,128], index: 11, kind: output, shape index: {}]
  %s12 = sld [smem:[#allocation0]]
  $region54: #{lstm_model_forward.1} parent=0
    _
  %s14 = ssub.s32 1, %s12
  %s15 = scalar_select 0, %s14, %s12
  %16 = sst [smem:[#allocation3]] %s10
  // Predicated region
  $region2: #{lstm_model_forward.1} parent=0 // pred_check
    _
  $region3: #{lstm_model_forward.1} parent=0 // pred_check_branch
    %18 = sbr.rel (0) target = $region5
  $region4: #{lstm_model_forward.1} parent=0 // pred_region
    _
  $region5: #{lstm_model_forward.1} parent=0 // pred_fallthru
    _
  // Predicated region
  $region6: #{lstm_model_forward.1} parent=0 // pred_check
    _
  $region7: #{lstm_model_forward.1} parent=0 // pred_check_branch
    %20 = sbr.rel (0) target = $region9
  $region8: #{lstm_model_forward.1} parent=0 // pred_region
    _
  $region9: #{lstm_model_forward.1} parent=0 // pred_fallthru
    _
  // Predicated region
  $region10: #{lstm_model_forward.1} parent=0 // pred_check
    _
  $region11: #{lstm_model_forward.1} parent=0 // pred_check_branch
    %22 = sbr.rel (0) target = $region13
  $region12: #{lstm_model_forward.1} parent=0 // pred_region
    _
  $region13: #{lstm_model_forward.1} parent=0 // pred_fallthru
    _
  // Predicated region
  $region14: #{lstm_model_forward.1} parent=0 // pred_check
    _
  $region15: #{lstm_model_forward.1} parent=0 // pred_check_branch
    %24 = sbr.rel (0) target = $region17
  $region16: #{lstm_model_forward.1} parent=0 // pred_region
    _
  $region17: #{lstm_model_forward.1} parent=0 // pred_fallthru
    _
  // Predicated region
  $region18: #{lstm_model_forward.1} parent=0 // pred_check
    _
  $region19: #{lstm_model_forward.1} parent=0 // pred_check_branch
    %26 = sbr.rel (0) target = $region21
  $region20: #{lstm_model_forward.1} parent=0 // pred_region
    _
  $region21: #{lstm_model_forward.1} parent=0 // pred_fallthru
    _
  // Predicated region
  $region22: #{lstm_model_forward.1} parent=0 // pred_check
    _
  $region23: #{lstm_model_forward.1} parent=0 // pred_check_branch
    %28 = sbr.rel (0) target = $region25
  $region24: #{lstm_model_forward.1} parent=0 // pred_region
    _
  $region25: #{lstm_model_forward.1} parent=0 // pred_fallthru
    _
  // Predicated region
  $region26: #{lstm_model_forward.1} parent=0 // pred_check
    _
  $region27: #{lstm_model_forward.1} parent=0 // pred_check_branch
    %30 = sbr.rel (0) target = $region29
  $region28: #{lstm_model_forward.1} parent=0 // pred_region
    _
  $region29: #{lstm_model_forward.1} parent=0 // pred_fallthru
    _
  // Predicated region
  $region30: #{lstm_model_forward.1} parent=0 // pred_check
    _
  $region31: #{lstm_model_forward.1} parent=0 // pred_check_branch
    %32 = sbr.rel (0) target = $region33
  $region32: #{lstm_model_forward.1} parent=0 // pred_region
    _
  $region33: #{lstm_model_forward.1} parent=0 // pred_fallthru
    _
  // Predicated region
  $region34: #{lstm_model_forward.1} parent=0 // pred_check
    _
  $region35: #{lstm_model_forward.1} parent=0 // pred_check_branch
    %34 = sbr.rel (0) target = $region37
  $region36: #{lstm_model_forward.1} parent=0 // pred_region
    _
  $region37: #{lstm_model_forward.1} parent=0 // pred_fallthru
    _
  // Predicated region
  $region38: #{lstm_model_forward.1} parent=0 // pred_check
    _
  $region39: #{lstm_model_forward.1} parent=0 // pred_check_branch
    %36 = sbr.rel (0) target = $region41
  $region40: #{lstm_model_forward.1} parent=0 // pred_region
    _
  $region41: #{lstm_model_forward.1} parent=0 // pred_fallthru
    _
  // Predicated region
  $region42: #{lstm_model_forward.1} parent=0 // pred_check
    _
  $region43: #{lstm_model_forward.1} parent=0 // pred_check_branch
    %38 = sbr.rel (0) target = $region45
  $region44: #{lstm_model_forward.1} parent=0 // pred_region
    _
  $region45: #{lstm_model_forward.1} parent=0 // pred_fallthru
    _
  %v39 = vld [vmem:[%s0] sm:$0xff]
  %v40 = vld [vmem:[%s0 + $0x8] sm:$0xff]
  %v41 = vld [vmem:[%s0 + $0x10] sm:$0xff]
  %v42 = vld [vmem:[%s0 + $0x18] sm:$0xff]
  %v43 = vld [vmem:[%s0 + $0x20] sm:$0xff]
  %v44 = vld [vmem:[%s0 + $0x28] sm:$0xff]
  %v45 = vld [vmem:[%s0 + $0x30] sm:$0xff]
  %v46 = vld [vmem:[%s0 + $0x38] sm:$0xff]
  %v47 = vld [vmem:[%s1] sm:$0xff]
  %v48 = vld [vmem:[%s3] sm:$0x1]
  %v50 = vlaneseq
  %v51 = vshrl.u32 %v50, 7
  %v52 = vsub.s32 0, %v51
  %v53 = vrot.slane %v48, %v52
  %vm55 = vcmask 64512
  %v57 = vsel %vm55, %v39, 0
  %v60 = vsel %vm55, %v40, 0
  %v63 = vsel %vm55, %v41, 0
  %v66 = vsel %vm55, %v42, 0
  %v69 = vsel %vm55, %v43, 0
  %v72 = vsel %vm55, %v44, 0
  %v75 = vsel %vm55, %v45, 0
  %v78 = vsel %vm55, %v46, 0
  %80 = vmatprep.subr.mxu0 0.0
  %81 = vmatpush1.msra.mxu0 %v47
  %82 = vmatprep.subr.mxu0 0.0
  %83 = vmatpush1.msra.mxu0 0.0
  %84 = vmatprep.subr.mxu0 0.0
  %85 = vmatpush1.msra.mxu0 0.0
  %86 = vmatprep.subr.mxu0 0.0
  %87 = vmatpush1.msra.mxu0 0.0
  %88 = vmatprep.subr.mxu0 0.0
  %89 = vmatpush1.msra.mxu0 0.0
  %90 = vmatprep.subr.mxu0 0.0
  %91 = vmatpush1.msra.mxu0 0.0
  %92 = vmatprep.subr.mxu0 0.0
  %93 = vmatpush1.msra.mxu0 0.0
  %94 = vmatprep.subr.mxu0 0.0
  %95 = vmatpush1.msra.mxu0 0.0
  %96 = vmatprep.subr.mxu0 0.0
  %97 = vmatpush1.msra.mxu0 0.0
  %98 = vmatprep.subr.mxu0 0.0
  %99 = vmatpush1.msra.mxu0 0.0
  %100 = vmatprep.subr.mxu0 0.0
  %101 = vmatpush1.msra.mxu0 0.0
  %102 = vmatprep.subr.mxu0 0.0
  %103 = vmatpush1.msra.mxu0 0.0
  %104 = vmatprep.subr.mxu0 0.0
  %105 = vmatpush1.msra.mxu0 0.0
  %106 = vmatprep.subr.mxu0 0.0
  %107 = vmatpush1.msra.mxu0 0.0
  %108 = vmatprep.subr.mxu0 0.0
  %109 = vmatpush1.msra.mxu0 0.0
  %110 = vmatprep.subr.mxu0 0.0
  %111 = vmatpush1.msra.mxu0 0.0
  %112 = vmatprep.subr.mxu0 0.0
  %113 = vmatpush1.msra.mxu0 0.0
  %114 = vmatprep.subr.mxu0 0.0
  %115 = vmatpush1.msra.mxu0 0.0
  %116 = vmatprep.subr.mxu0 0.0
  %117 = vmatpush1.msra.mxu0 0.0
  %118 = vmatprep.subr.mxu0 0.0
  %119 = vmatpush1.msra.mxu0 0.0
  %120 = vmatprep.subr.mxu0 0.0
  %121 = vmatpush1.msra.mxu0 0.0
  %122 = vmatprep.subr.mxu0 0.0
  %123 = vmatpush1.msra.mxu0 0.0
  %124 = vmatprep.subr.mxu0 0.0
  %125 = vmatpush1.msra.mxu0 0.0
  %126 = vmatprep.subr.mxu0 0.0
  %127 = vmatpush1.msra.mxu0 0.0
  %128 = vmatprep.subr.mxu0 0.0
  %129 = vmatpush1.msra.mxu0 0.0
  %130 = vmatprep.subr.mxu0 0.0
  %131 = vmatpush1.msra.mxu0 0.0
  %132 = vmatprep.subr.mxu0 0.0
  %133 = vmatpush1.msra.mxu0 0.0
  %134 = vmatprep.subr.mxu0 0.0
  %135 = vmatpush1.msra.mxu0 0.0
  %136 = vmatprep.subr.mxu0 0.0
  %137 = vmatpush1.msra.mxu0 0.0
  %138 = vmatprep.subr.mxu0 0.0
  %139 = vmatpush1.msra.mxu0 0.0
  %140 = vmatprep.subr.mxu0 0.0
  %141 = vmatpush1.msra.mxu0 0.0
  %142 = vmatprep.subr.mxu0 0.0
  %143 = vmatpush1.msra.mxu0 0.0
  %144 = vmatprep.mubr.f32.mxu0 0.0
  %145 = vmatmul.mubr.f32.gmra.mrb[0].mxu0 %v57
  %v146 = vpop.f32.mrb[0].mxu0
  %v147 = vadd.f32 %v53, %v146
  %v148 = vpop.f32.mrb[0].mxu0
  %149 = vmatprep.mubr.f32.mxu0 0.0
  %150 = vmatmul.mubr.f32.gmra.mrb[0].mxu0 %v60
  %v151 = vpop.f32.mrb[0].mxu0
  %v152 = vadd.f32 %v53, %v151
  %v153 = vpop.f32.mrb[0].mxu0
  %154 = vmatprep.mubr.f32.mxu0 0.0
  %155 = vmatmul.mubr.f32.gmra.mrb[0].mxu0 %v63
  %v156 = vpop.f32.mrb[0].mxu0
  %v157 = vadd.f32 %v53, %v156
  %v158 = vpop.f32.mrb[0].mxu0
  %159 = vmatprep.mubr.f32.mxu0 0.0
  %160 = vmatmul.mubr.f32.gmra.mrb[0].mxu0 %v66
  %v161 = vpop.f32.mrb[0].mxu0
  %v162 = vadd.f32 %v53, %v161
  %v163 = vpop.f32.mrb[0].mxu0
  %164 = vmatprep.mubr.f32.mxu0 0.0
  %165 = vmatmul.mubr.f32.gmra.mrb[0].mxu0 %v69
  %v166 = vpop.f32.mrb[0].mxu0
  %v167 = vadd.f32 %v53, %v166
  %v168 = vpop.f32.mrb[0].mxu0
  %169 = vmatprep.mubr.f32.mxu0 0.0
  %170 = vmatmul.mubr.f32.gmra.mrb[0].mxu0 %v72
  %v171 = vpop.f32.mrb[0].mxu0
  %v172 = vadd.f32 %v53, %v171
  %v173 = vpop.f32.mrb[0].mxu0
  %174 = vmatprep.mubr.f32.mxu0 0.0
  %175 = vmatmul.mubr.f32.gmra.mrb[0].mxu0 %v75
  %v176 = vpop.f32.mrb[0].mxu0
  %v177 = vadd.f32 %v53, %v176
  %v178 = vpop.f32.mrb[0].mxu0
  %179 = vmatprep.mubr.f32.mxu0 0.0
  %180 = vmatmul.mubr.f32.gmra.mrb[0].mxu0 %v78
  %v181 = vpop.f32.mrb[0].mxu0
  %v182 = vadd.f32 %v53, %v181
  %v183 = vpop.f32.mrb[0].mxu0
  %184 = vdwg.mxu0
  %185 = vst [vmem:[#allocation2] sm:$0xff] %v147
  %186 = vst [vmem:[#allocation2 + $0x8] sm:$0xff] %v152
  %187 = vst [vmem:[#allocation2 + $0x10] sm:$0xff] %v157
  %188 = vst [vmem:[#allocation2 + $0x18] sm:$0xff] %v162
  %189 = vst [vmem:[#allocation2 + $0x20] sm:$0xff] %v167
  %190 = vst [vmem:[#allocation2 + $0x28] sm:$0xff] %v172
  %191 = vst [vmem:[#allocation2 + $0x30] sm:$0xff] %v177
  %192 = vst [vmem:[#allocation2 + $0x38] sm:$0xff] %v182
  %v193 = vld [vmem:[%s2] sm:$0xff]
  %v194 = vld [vmem:[%s2 + $0x8] sm:$0xff]
  %v195 = vld [vmem:[%s2 + $0x10] sm:$0xff]
  %v196 = vld [vmem:[%s2 + $0x18] sm:$0xff]
  %v197 = vld [vmem:[%s4] sm:$0xff]
  %v198 = vld [vmem:[%s4 + $0x8] sm:$0xff]
  %v199 = vld [vmem:[%s4 + $0x10] sm:$0xff]
  %v200 = vld [vmem:[%s4 + $0x18] sm:$0xff]
  %v201 = vld [vmem:[%s5] sm:$0xff]
  %v202 = vld [vmem:[%s5 + $0x8] sm:$0xff]
  %v203 = vld [vmem:[%s5 + $0x10] sm:$0xff]
  %v204 = vld [vmem:[%s5 + $0x18] sm:$0xff]
  %v205 = vld [vmem:[%s6] sm:$0x1]
  %v206 = vld [vmem:[#allocation2] sm:$0xff]
  %vm207 = vcmask 261120
  %v209 = vsel %vm207, 0.0, 0
  %211 = vmatprep.subr.mxu0 0.0
  %212 = vmatpush1.msra.mxu0 %v193
  %213 = vmatprep.subr.mxu0 0.0
  %214 = vmatpush1.msra.mxu0 %v194
  %215 = vmatprep.subr.mxu0 0.0
  %216 = vmatpush1.msra.mxu0 %v195
  %217 = vmatprep.subr.mxu0 0.0
  %218 = vmatpush1.msra.mxu0 %v196
  %219 = vmatprep.subr.mxu0 0.0
  %220 = vmatpush1.msra.mxu0 0.0
  %221 = vmatprep.subr.mxu0 0.0
  %222 = vmatpush1.msra.mxu0 0.0
  %223 = vmatprep.subr.mxu0 0.0
  %224 = vmatpush1.msra.mxu0 0.0
  %225 = vmatprep.subr.mxu0 0.0
  %226 = vmatpush1.msra.mxu0 0.0
  %227 = vmatprep.subr.mxu0 0.0
  %228 = vmatpush1.msra.mxu0 0.0
  %229 = vmatprep.subr.mxu0 0.0
  %230 = vmatpush1.msra.mxu0 0.0
  %231 = vmatprep.subr.mxu0 0.0
  %232 = vmatpush1.msra.mxu0 0.0
  %233 = vmatprep.subr.mxu0 0.0
  %234 = vmatpush1.msra.mxu0 0.0
  %235 = vmatprep.subr.mxu0 0.0
  %236 = vmatpush1.msra.mxu0 0.0
  %237 = vmatprep.subr.mxu0 0.0
  %238 = vmatpush1.msra.mxu0 0.0
  %239 = vmatprep.subr.mxu0 0.0
  %240 = vmatpush1.msra.mxu0 0.0
  %241 = vmatprep.subr.mxu0 0.0
  %242 = vmatpush1.msra.mxu0 0.0
  %243 = vmatprep.subr.mxu0 0.0
  %244 = vmatpush1.msra.mxu0 0.0
  %245 = vmatprep.subr.mxu0 0.0
  %246 = vmatpush1.msra.mxu0 0.0
  %247 = vmatprep.subr.mxu0 0.0
  %248 = vmatpush1.msra.mxu0 0.0
  %249 = vmatprep.subr.mxu0 0.0
  %250 = vmatpush1.msra.mxu0 0.0
  %251 = vmatprep.subr.mxu0 0.0
  %252 = vmatpush1.msra.mxu0 0.0
  %253 = vmatprep.subr.mxu0 0.0
  %254 = vmatpush1.msra.mxu0 0.0
  %255 = vmatprep.subr.mxu0 0.0
  %256 = vmatpush1.msra.mxu0 0.0
  %257 = vmatprep.subr.mxu0 0.0
  %258 = vmatpush1.msra.mxu0 0.0
  %259 = vmatprep.subr.mxu0 0.0
  %260 = vmatpush1.msra.mxu0 0.0
  %261 = vmatprep.subr.mxu0 0.0
  %262 = vmatpush1.msra.mxu0 0.0
  %263 = vmatprep.subr.mxu0 0.0
  %264 = vmatpush1.msra.mxu0 0.0
  %265 = vmatprep.subr.mxu0 0.0
  %266 = vmatpush1.msra.mxu0 0.0
  %267 = vmatprep.subr.mxu0 0.0
  %268 = vmatpush1.msra.mxu0 0.0
  %269 = vmatprep.subr.mxu0 0.0
  %270 = vmatpush1.msra.mxu0 0.0
  %271 = vmatprep.subr.mxu0 0.0
  %272 = vmatpush1.msra.mxu0 0.0
  %273 = vmatprep.subr.mxu0 0.0
  %274 = vmatpush1.msra.mxu0 0.0
  %275 = vmatprep.mubr.f32.mxu0 0.0
  %276 = vmatmul.mubr.f32.gmra.mrb[0].mxu0 %v209
  %v277 = vpop.f32.mrb[0].mxu0
  %v278 = vadd.f32 0.0, %v277
  %v279 = vpop.f32.mrb[0].mxu0
  %280 = vdwg.mxu0
  %v281 = vadd.f32 %v206, %v278
  %v282 = vxor.u32 %v281, 2147483648
  %v283 = vmul.f32 %v282, 1.442695
  %v284 = vpow.pop %v283
  %v285 = vadd.f32 %v284, 1.0
  %v286 = vrcp.pop %v285
  %v287 = vmul.f32 1.0, %v286
  %v288 = vtanh.pop %v281
  %v289 = vmul.f32 %v287, 0.0
  %291 = vrot.lane.b32.xlu0 %v288, 64
  %v292 = vpop.permute.xlu0 %291
  %v294 = vmul.f32 %v287, %v292
  %296 = vrot.lane.b32.xlu0 %v294, 32
  %v297 = vpop.permute.xlu0 %296
  %v299 = vadd.f32 %v289, %v297
  %v300 = vtanh.pop %v299
  %302 = vrot.lane.b32.xlu0 %v300, 64
  %v303 = vpop.permute.xlu0 %302
  %v305 = vmul.f32 %v287, %v303
  %306 = vmatprep.subr.mxu0 0.0
  %307 = vmatpush1.msra.mxu0 %v201
  %308 = vmatprep.subr.mxu0 0.0
  %309 = vmatpush1.msra.mxu0 %v202
  %310 = vmatprep.subr.mxu0 0.0
  %311 = vmatpush1.msra.mxu0 %v203
  %312 = vmatprep.subr.mxu0 0.0
  %313 = vmatpush1.msra.mxu0 %v204
  %314 = vmatprep.subr.mxu0 0.0
  %315 = vmatpush1.msra.mxu0 0.0
  %316 = vmatprep.subr.mxu0 0.0
  %317 = vmatpush1.msra.mxu0 0.0
  %318 = vmatprep.subr.mxu0 0.0
  %319 = vmatpush1.msra.mxu0 0.0
  %320 = vmatprep.subr.mxu0 0.0
  %321 = vmatpush1.msra.mxu0 0.0
  %322 = vmatprep.subr.mxu0 0.0
  %323 = vmatpush1.msra.mxu0 0.0
  %324 = vmatprep.subr.mxu0 0.0
  %325 = vmatpush1.msra.mxu0 0.0
  %326 = vmatprep.subr.mxu0 0.0
  %327 = vmatpush1.msra.mxu0 0.0
  %328 = vmatprep.subr.mxu0 0.0
  %329 = vmatpush1.msra.mxu0 0.0
  %330 = vmatprep.subr.mxu0 0.0
  %331 = vmatpush1.msra.mxu0 0.0
  %332 = vmatprep.subr.mxu0 0.0
  %333 = vmatpush1.msra.mxu0 0.0
  %334 = vmatprep.subr.mxu0 0.0
  %335 = vmatpush1.msra.mxu0 0.0
  %336 = vmatprep.subr.mxu0 0.0
  %337 = vmatpush1.msra.mxu0 0.0
  %338 = vmatprep.subr.mxu0 0.0
  %339 = vmatpush1.msra.mxu0 0.0
  %340 = vmatprep.subr.mxu0 0.0
  %341 = vmatpush1.msra.mxu0 0.0
  %342 = vmatprep.subr.mxu0 0.0
  %343 = vmatpush1.msra.mxu0 0.0
  %344 = vmatprep.subr.mxu0 0.0
  %345 = vmatpush1.msra.mxu0 0.0
  %346 = vmatprep.subr.mxu0 0.0
  %347 = vmatpush1.msra.mxu0 0.0
  %348 = vmatprep.subr.mxu0 0.0
  %349 = vmatpush1.msra.mxu0 0.0
  %350 = vmatprep.subr.mxu0 0.0
  %351 = vmatpush1.msra.mxu0 0.0
  %352 = vmatprep.subr.mxu0 0.0
  %353 = vmatpush1.msra.mxu0 0.0
  %354 = vmatprep.subr.mxu0 0.0
  %355 = vmatpush1.msra.mxu0 0.0
  %356 = vmatprep.subr.mxu0 0.0
  %357 = vmatpush1.msra.mxu0 0.0
  %358 = vmatprep.subr.mxu0 0.0
  %359 = vmatpush1.msra.mxu0 0.0
  %360 = vmatprep.subr.mxu0 0.0
  %361 = vmatpush1.msra.mxu0 0.0
  %362 = vmatprep.subr.mxu0 0.0
  %363 = vmatpush1.msra.mxu0 0.0
  %364 = vmatprep.subr.mxu0 0.0
  %365 = vmatpush1.msra.mxu0 0.0
  %366 = vmatprep.subr.mxu0 0.0
  %367 = vmatpush1.msra.mxu0 0.0
  %368 = vmatprep.subr.mxu0 0.0
  %369 = vmatpush1.msra.mxu0 0.0
  %370 = vmatprep.mubr.f32.mxu0 0.0
  %371 = vmatmul.mubr.f32.gmra.mrb[0].mxu0 %v209
  %v372 = vpop.f32.mrb[0].mxu0
  %v373 = vadd.f32 0.0, %v372
  %v374 = vpop.f32.mrb[0].mxu0
  %375 = vdwg.mxu0
  %377 = vrot.lane.b32.xlu0 %v305, 32
  %v378 = vpop.permute.xlu0 %377
  %v379 = vsel %vm207, %v378, 0
  %381 = vmatprep.subr.mxu0 0.0
  %382 = vmatpush1.msra.mxu0 %v197
  %383 = vmatprep.subr.mxu0 0.0
  %384 = vmatpush1.msra.mxu0 %v198
  %385 = vmatprep.subr.mxu0 0.0
  %386 = vmatpush1.msra.mxu0 %v199
  %387 = vmatprep.subr.mxu0 0.0
  %388 = vmatpush1.msra.mxu0 %v200
  %389 = vmatprep.subr.mxu0 0.0
  %390 = vmatpush1.msra.mxu0 0.0
  %391 = vmatprep.subr.mxu0 0.0
  %392 = vmatpush1.msra.mxu0 0.0
  %393 = vmatprep.subr.mxu0 0.0
  %394 = vmatpush1.msra.mxu0 0.0
  %395 = vmatprep.subr.mxu0 0.0
  %396 = vmatpush1.msra.mxu0 0.0
  %397 = vmatprep.subr.mxu0 0.0
  %398 = vmatpush1.msra.mxu0 0.0
  %399 = vmatprep.subr.mxu0 0.0
  %400 = vmatpush1.msra.mxu0 0.0
  %401 = vmatprep.subr.mxu0 0.0
  %402 = vmatpush1.msra.mxu0 0.0
  %403 = vmatprep.subr.mxu0 0.0
  %404 = vmatpush1.msra.mxu0 0.0
  %405 = vmatprep.subr.mxu0 0.0
  %406 = vmatpush1.msra.mxu0 0.0
  %407 = vmatprep.subr.mxu0 0.0
  %408 = vmatpush1.msra.mxu0 0.0
  %409 = vmatprep.subr.mxu0 0.0
  %410 = vmatpush1.msra.mxu0 0.0
  %411 = vmatprep.subr.mxu0 0.0
  %412 = vmatpush1.msra.mxu0 0.0
  %413 = vmatprep.subr.mxu0 0.0
  %414 = vmatpush1.msra.mxu0 0.0
  %415 = vmatprep.subr.mxu0 0.0
  %416 = vmatpush1.msra.mxu0 0.0
  %417 = vmatprep.subr.mxu0 0.0
  %418 = vmatpush1.msra.mxu0 0.0
  %419 = vmatprep.subr.mxu0 0.0
  %420 = vmatpush1.msra.mxu0 0.0
  %421 = vmatprep.subr.mxu0 0.0
  %422 = vmatpush1.msra.mxu0 0.0
  %423 = vmatprep.subr.mxu0 0.0
  %424 = vmatpush1.msra.mxu0 0.0
  %425 = vmatprep.subr.mxu0 0.0
  %426 = vmatpush1.msra.mxu0 0.0
  %427 = vmatprep.subr.mxu0 0.0
  %428 = vmatpush1.msra.mxu0 0.0
  %429 = vmatprep.subr.mxu0 0.0
  %430 = vmatpush1.msra.mxu0 0.0
  %431 = vmatprep.subr.mxu0 0.0
  %432 = vmatpush1.msra.mxu0 0.0
  %433 = vmatprep.subr.mxu0 0.0
  %434 = vmatpush1.msra.mxu0 0.0
  %435 = vmatprep.subr.mxu0 0.0
  %436 = vmatpush1.msra.mxu0 0.0
  %437 = vmatprep.subr.mxu0 0.0
  %438 = vmatpush1.msra.mxu0 0.0
  %439 = vmatprep.subr.mxu0 0.0
  %440 = vmatpush1.msra.mxu0 0.0
  %441 = vmatprep.subr.mxu0 0.0
  %442 = vmatpush1.msra.mxu0 0.0
  %443 = vmatprep.subr.mxu0 0.0
  %444 = vmatpush1.msra.mxu0 0.0
  %445 = vmatprep.mubr.f32.mxu0 0.0
  %446 = vmatmul.mubr.f32.gmra.mrb[0].mxu0 %v379
  %v447 = vpop.f32.mrb[0].mxu0
  %v448 = vadd.f32 %v373, %v447
  %v449 = vpop.f32.mrb[0].mxu0
  %450 = vdwg.mxu0
  %v452 = vlaneseq
  %v453 = vshrl.u32 %v452, 7
  %v454 = vsub.s32 0, %v453
  %v455 = vrot.slane %v205, %v454
  %v457 = vadd.f32 %v448, %v455
  %v458 = vxor.u32 %v457, 2147483648
  %v459 = vmul.f32 %v458, 1.442695
  %v460 = vpow.pop %v459
  %v461 = vadd.f32 %v460, 1.0
  %v462 = vrcp.pop %v461
  %v463 = vmul.f32 1.0, %v462
  %v464 = vtanh.pop %v457
  %v465 = vmul.f32 %v463, 0.0
  %467 = vrot.lane.b32.xlu0 %v464, 64
  %v468 = vpop.permute.xlu0 %467
  %v470 = vmul.f32 %v463, %v468
  %472 = vrot.lane.b32.xlu0 %v470, 32
  %v473 = vpop.permute.xlu0 %472
  %v475 = vadd.f32 %v465, %v473
  %v476 = vtanh.pop %v475
  %478 = vrot.lane.b32.xlu0 %v476, 64
  %v479 = vpop.permute.xlu0 %478
  %v481 = vmul.f32 %v463, %v479
  %s482 = scalar_lea.vmem [#allocation2], 8
  %v483 = vld [vmem:[%s482] sm:$0xff]
  %484 = vmatprep.subr.mxu0 0.0
  %485 = vmatpush1.msra.mxu0 %v193
  %486 = vmatprep.subr.mxu0 0.0
  %487 = vmatpush1.msra.mxu0 %v194
  %488 = vmatprep.subr.mxu0 0.0
  %489 = vmatpush1.msra.mxu0 %v195
  %490 = vmatprep.subr.mxu0 0.0
  %491 = vmatpush1.msra.mxu0 %v196
  %492 = vmatprep.subr.mxu0 0.0
  %493 = vmatpush1.msra.mxu0 0.0
  %494 = vmatprep.subr.mxu0 0.0
  %495 = vmatpush1.msra.mxu0 0.0
  %496 = vmatprep.subr.mxu0 0.0
  %497 = vmatpush1.msra.mxu0 0.0
  %498 = vmatprep.subr.mxu0 0.0
  %499 = vmatpush1.msra.mxu0 0.0
  %500 = vmatprep.subr.mxu0 0.0
  %501 = vmatpush1.msra.mxu0 0.0
  %502 = vmatprep.subr.mxu0 0.0
  %503 = vmatpush1.msra.mxu0 0.0
  %504 = vmatprep.subr.mxu0 0.0
  %505 = vmatpush1.msra.mxu0 0.0
  %506 = vmatprep.subr.mxu0 0.0
  %507 = vmatpush1.msra.mxu0 0.0
  %508 = vmatprep.subr.mxu0 0.0
  %509 = vmatpush1.msra.mxu0 0.0
  %510 = vmatprep.subr.mxu0 0.0
  %511 = vmatpush1.msra.mxu0 0.0
  %512 = vmatprep.subr.mxu0 0.0
  %513 = vmatpush1.msra.mxu0 0.0
  %514 = vmatprep.subr.mxu0 0.0
  %515 = vmatpush1.msra.mxu0 0.0
  %516 = vmatprep.subr.mxu0 0.0
  %517 = vmatpush1.msra.mxu0 0.0
  %518 = vmatprep.subr.mxu0 0.0
  %519 = vmatpush1.msra.mxu0 0.0
  %520 = vmatprep.subr.mxu0 0.0
  %521 = vmatpush1.msra.mxu0 0.0
  %522 = vmatprep.subr.mxu0 0.0
  %523 = vmatpush1.msra.mxu0 0.0
  %524 = vmatprep.subr.mxu0 0.0
  %525 = vmatpush1.msra.mxu0 0.0
  %526 = vmatprep.subr.mxu0 0.0
  %527 = vmatpush1.msra.mxu0 0.0
  %528 = vmatprep.subr.mxu0 0.0
  %529 = vmatpush1.msra.mxu0 0.0
  %530 = vmatprep.subr.mxu0 0.0
  %531 = vmatpush1.msra.mxu0 0.0
  %532 = vmatprep.subr.mxu0 0.0
  %533 = vmatpush1.msra.mxu0 0.0
  %534 = vmatprep.subr.mxu0 0.0
  %535 = vmatpush1.msra.mxu0 0.0
  %536 = vmatprep.subr.mxu0 0.0
  %537 = vmatpush1.msra.mxu0 0.0
  %538 = vmatprep.subr.mxu0 0.0
  %539 = vmatpush1.msra.mxu0 0.0
  %540 = vmatprep.subr.mxu0 0.0
  %541 = vmatpush1.msra.mxu0 0.0
  %542 = vmatprep.subr.mxu0 0.0
  %543 = vmatpush1.msra.mxu0 0.0
  %544 = vmatprep.subr.mxu0 0.0
  %545 = vmatpush1.msra.mxu0 0.0
  %546 = vmatprep.subr.mxu0 0.0
  %547 = vmatpush1.msra.mxu0 0.0
  %548 = vmatprep.mubr.f32.mxu0 0.0
  %549 = vmatmul.mubr.f32.gmra.mrb[0].mxu0 %v379
  %v550 = vpop.f32.mrb[0].mxu0
  %v551 = vadd.f32 0.0, %v550
  %v552 = vpop.f32.mrb[0].mxu0
  %553 = vdwg.mxu0
  %v554 = vadd.f32 %v483, %v551
  %v555 = vxor.u32 %v554, 2147483648
  %v556 = vmul.f32 %v555, 1.442695
  %v557 = vpow.pop %v556
  %v558 = vadd.f32 %v557, 1.0
  %v559 = vrcp.pop %v558
  %v560 = vmul.f32 1.0, %v559
  %v561 = vtanh.pop %v554
  %v562 = vmul.f32 %v560, %v299
  %564 = vrot.lane.b32.xlu0 %v561, 64
  %v565 = vpop.permute.xlu0 %564
  %v567 = vmul.f32 %v560, %v565
  %569 = vrot.lane.b32.xlu0 %v567, 32
  %v570 = vpop.permute.xlu0 %569
  %v572 = vadd.f32 %v562, %v570
  %v573 = vtanh.pop %v572
  %575 = vrot.lane.b32.xlu0 %v573, 64
  %v576 = vpop.permute.xlu0 %575
  %v578 = vmul.f32 %v560, %v576
  %580 = vrot.lane.b32.xlu0 %v481, 32
  %v581 = vpop.permute.xlu0 %580
  %v582 = vsel %vm207, %v581, 0
  %584 = vmatprep.subr.mxu0 0.0
  %585 = vmatpush1.msra.mxu0 %v201
  %586 = vmatprep.subr.mxu0 0.0
  %587 = vmatpush1.msra.mxu0 %v202
  %588 = vmatprep.subr.mxu0 0.0
  %589 = vmatpush1.msra.mxu0 %v203
  %590 = vmatprep.subr.mxu0 0.0
  %591 = vmatpush1.msra.mxu0 %v204
  %592 = vmatprep.subr.mxu0 0.0
  %593 = vmatpush1.msra.mxu0 0.0
  %594 = vmatprep.subr.mxu0 0.0
  %595 = vmatpush1.msra.mxu0 0.0
  %596 = vmatprep.subr.mxu0 0.0
  %597 = vmatpush1.msra.mxu0 0.0
  %598 = vmatprep.subr.mxu0 0.0
  %599 = vmatpush1.msra.mxu0 0.0
  %600 = vmatprep.subr.mxu0 0.0
  %601 = vmatpush1.msra.mxu0 0.0
  %602 = vmatprep.subr.mxu0 0.0
  %603 = vmatpush1.msra.mxu0 0.0
  %604 = vmatprep.subr.mxu0 0.0
  %605 = vmatpush1.msra.mxu0 0.0
  %606 = vmatprep.subr.mxu0 0.0
  %607 = vmatpush1.msra.mxu0 0.0
  %608 = vmatprep.subr.mxu0 0.0
  %609 = vmatpush1.msra.mxu0 0.0
  %610 = vmatprep.subr.mxu0 0.0
  %611 = vmatpush1.msra.mxu0 0.0
  %612 = vmatprep.subr.mxu0 0.0
  %613 = vmatpush1.msra.mxu0 0.0
  %614 = vmatprep.subr.mxu0 0.0
  %615 = vmatpush1.msra.mxu0 0.0
  %616 = vmatprep.subr.mxu0 0.0
  %617 = vmatpush1.msra.mxu0 0.0
  %618 = vmatprep.subr.mxu0 0.0
  %619 = vmatpush1.msra.mxu0 0.0
  %620 = vmatprep.subr.mxu0 0.0
  %621 = vmatpush1.msra.mxu0 0.0
  %622 = vmatprep.subr.mxu0 0.0
  %623 = vmatpush1.msra.mxu0 0.0
  %624 = vmatprep.subr.mxu0 0.0
  %625 = vmatpush1.msra.mxu0 0.0
  %626 = vmatprep.subr.mxu0 0.0
  %627 = vmatpush1.msra.mxu0 0.0
  %628 = vmatprep.subr.mxu0 0.0
  %629 = vmatpush1.msra.mxu0 0.0
  %630 = vmatprep.subr.mxu0 0.0
  %631 = vmatpush1.msra.mxu0 0.0
  %632 = vmatprep.subr.mxu0 0.0
  %633 = vmatpush1.msra.mxu0 0.0
  %634 = vmatprep.subr.mxu0 0.0
  %635 = vmatpush1.msra.mxu0 0.0
  %636 = vmatprep.subr.mxu0 0.0
  %637 = vmatpush1.msra.mxu0 0.0
  %638 = vmatprep.subr.mxu0 0.0
  %639 = vmatpush1.msra.mxu0 0.0
  %640 = vmatprep.subr.mxu0 0.0
  %641 = vmatpush1.msra.mxu0 0.0
  %642 = vmatprep.subr.mxu0 0.0
  %643 = vmatpush1.msra.mxu0 0.0
  %644 = vmatprep.subr.mxu0 0.0
  %645 = vmatpush1.msra.mxu0 0.0
  %646 = vmatprep.subr.mxu0 0.0
  %647 = vmatpush1.msra.mxu0 0.0
  %648 = vmatprep.mubr.f32.mxu0 0.0
  %649 = vmatmul.mubr.f32.gmra.mrb[0].mxu0 %v582
  %v650 = vpop.f32.mrb[0].mxu0
  %v651 = vadd.f32 0.0, %v650
  %v652 = vpop.f32.mrb[0].mxu0
  %653 = vdwg.mxu0
  %655 = vrot.lane.b32.xlu0 %v578, 32
  %v656 = vpop.permute.xlu0 %655
  %v657 = vsel %vm207, %v656, 0
  %659 = vmatprep.subr.mxu0 0.0
  %660 = vmatpush1.msra.mxu0 %v197
  %661 = vmatprep.subr.mxu0 0.0
  %662 = vmatpush1.msra.mxu0 %v198
  %663 = vmatprep.subr.mxu0 0.0
  %664 = vmatpush1.msra.mxu0 %v199
  %665 = vmatprep.subr.mxu0 0.0
  %666 = vmatpush1.msra.mxu0 %v200
  %667 = vmatprep.subr.mxu0 0.0
  %668 = vmatpush1.msra.mxu0 0.0
  %669 = vmatprep.subr.mxu0 0.0
  %670 = vmatpush1.msra.mxu0 0.0
  %671 = vmatprep.subr.mxu0 0.0
  %672 = vmatpush1.msra.mxu0 0.0
  %673 = vmatprep.subr.mxu0 0.0
  %674 = vmatpush1.msra.mxu0 0.0
  %675 = vmatprep.subr.mxu0 0.0
  %676 = vmatpush1.msra.mxu0 0.0
  %677 = vmatprep.subr.mxu0 0.0
  %678 = vmatpush1.msra.mxu0 0.0
  %679 = vmatprep.subr.mxu0 0.0
  %680 = vmatpush1.msra.mxu0 0.0
  %681 = vmatprep.subr.mxu0 0.0
  %682 = vmatpush1.msra.mxu0 0.0
  %683 = vmatprep.subr.mxu0 0.0
  %684 = vmatpush1.msra.mxu0 0.0
  %685 = vmatprep.subr.mxu0 0.0
  %686 = vmatpush1.msra.mxu0 0.0
  %687 = vmatprep.subr.mxu0 0.0
  %688 = vmatpush1.msra.mxu0 0.0
  %689 = vmatprep.subr.mxu0 0.0
  %690 = vmatpush1.msra.mxu0 0.0
  %691 = vmatprep.subr.mxu0 0.0
  %692 = vmatpush1.msra.mxu0 0.0
  %693 = vmatprep.subr.mxu0 0.0
  %694 = vmatpush1.msra.mxu0 0.0
  %695 = vmatprep.subr.mxu0 0.0
  %696 = vmatpush1.msra.mxu0 0.0
  %697 = vmatprep.subr.mxu0 0.0
  %698 = vmatpush1.msra.mxu0 0.0
  %699 = vmatprep.subr.mxu0 0.0
  %700 = vmatpush1.msra.mxu0 0.0
  %701 = vmatprep.subr.mxu0 0.0
  %702 = vmatpush1.msra.mxu0 0.0
  %703 = vmatprep.subr.mxu0 0.0
  %704 = vmatpush1.msra.mxu0 0.0
  %705 = vmatprep.subr.mxu0 0.0
  %706 = vmatpush1.msra.mxu0 0.0
  %707 = vmatprep.subr.mxu0 0.0
  %708 = vmatpush1.msra.mxu0 0.0
  %709 = vmatprep.subr.mxu0 0.0
  %710 = vmatpush1.msra.mxu0 0.0
  %711 = vmatprep.subr.mxu0 0.0
  %712 = vmatpush1.msra.mxu0 0.0
  %713 = vmatprep.subr.mxu0 0.0
  %714 = vmatpush1.msra.mxu0 0.0
  %715 = vmatprep.subr.mxu0 0.0
  %716 = vmatpush1.msra.mxu0 0.0
  %717 = vmatprep.subr.mxu0 0.0
  %718 = vmatpush1.msra.mxu0 0.0
  %719 = vmatprep.subr.mxu0 0.0
  %720 = vmatpush1.msra.mxu0 0.0
  %721 = vmatprep.subr.mxu0 0.0
  %722 = vmatpush1.msra.mxu0 0.0
  %723 = vmatprep.mubr.f32.mxu0 0.0
  %724 = vmatmul.mubr.f32.gmra.mrb[0].mxu0 %v657
  %v725 = vpop.f32.mrb[0].mxu0
  %v726 = vadd.f32 %v651, %v725
  %v727 = vpop.f32.mrb[0].mxu0
  %728 = vdwg.mxu0
  %v729 = vadd.f32 %v726, %v455
  %v730 = vxor.u32 %v729, 2147483648
  %v731 = vmul.f32 %v730, 1.442695
  %v732 = vpow.pop %v731
  %v733 = vadd.f32 %v732, 1.0
  %v734 = vrcp.pop %v733
  %v735 = vmul.f32 1.0, %v734
  %v736 = vtanh.pop %v729
  %v737 = vmul.f32 %v735, %v475
  %739 = vrot.lane.b32.xlu0 %v736, 64
  %v740 = vpop.permute.xlu0 %739
  %v742 = vmul.f32 %v735, %v740
  %744 = vrot.lane.b32.xlu0 %v742, 32
  %v745 = vpop.permute.xlu0 %744
  %v747 = vadd.f32 %v737, %v745
  %v748 = vtanh.pop %v747
  %750 = vrot.lane.b32.xlu0 %v748, 64
  %v751 = vpop.permute.xlu0 %750
  %v753 = vmul.f32 %v735, %v751
  %s754 = scalar_lea.vmem [#allocation2], 16
  %v755 = vld [vmem:[%s754] sm:$0xff]
  %756 = vmatprep.subr.mxu0 0.0
  %757 = vmatpush1.msra.mxu0 %v193
  %758 = vmatprep.subr.mxu0 0.0
  %759 = vmatpush1.msra.mxu0 %v194
  %760 = vmatprep.subr.mxu0 0.0
  %761 = vmatpush1.msra.mxu0 %v195
  %762 = vmatprep.subr.mxu0 0.0
  %763 = vmatpush1.msra.mxu0 %v196
  %764 = vmatprep.subr.mxu0 0.0
  %765 = vmatpush1.msra.mxu0 0.0
  %766 = vmatprep.subr.mxu0 0.0
  %767 = vmatpush1.msra.mxu0 0.0
  %768 = vmatprep.subr.mxu0 0.0
  %769 = vmatpush1.msra.mxu0 0.0
  %770 = vmatprep.subr.mxu0 0.0
  %771 = vmatpush1.msra.mxu0 0.0
  %772 = vmatprep.subr.mxu0 0.0
  %773 = vmatpush1.msra.mxu0 0.0
  %774 = vmatprep.subr.mxu0 0.0
  %775 = vmatpush1.msra.mxu0 0.0
  %776 = vmatprep.subr.mxu0 0.0
  %777 = vmatpush1.msra.mxu0 0.0
  %778 = vmatprep.subr.mxu0 0.0
  %779 = vmatpush1.msra.mxu0 0.0
  %780 = vmatprep.subr.mxu0 0.0
  %781 = vmatpush1.msra.mxu0 0.0
  %782 = vmatprep.subr.mxu0 0.0
  %783 = vmatpush1.msra.mxu0 0.0
  %784 = vmatprep.subr.mxu0 0.0
  %785 = vmatpush1.msra.mxu0 0.0
  %786 = vmatprep.subr.mxu0 0.0
  %787 = vmatpush1.msra.mxu0 0.0
  %788 = vmatprep.subr.mxu0 0.0
  %789 = vmatpush1.msra.mxu0 0.0
  %790 = vmatprep.subr.mxu0 0.0
  %791 = vmatpush1.msra.mxu0 0.0
  %792 = vmatprep.subr.mxu0 0.0
  %793 = vmatpush1.msra.mxu0 0.0
  %794 = vmatprep.subr.mxu0 0.0
  %795 = vmatpush1.msra.mxu0 0.0
  %796 = vmatprep.subr.mxu0 0.0
  %797 = vmatpush1.msra.mxu0 0.0
  %798 = vmatprep.subr.mxu0 0.0
  %799 = vmatpush1.msra.mxu0 0.0
  %800 = vmatprep.subr.mxu0 0.0
  %801 = vmatpush1.msra.mxu0 0.0
  %802 = vmatprep.subr.mxu0 0.0
  %803 = vmatpush1.msra.mxu0 0.0
  %804 = vmatprep.subr.mxu0 0.0
  %805 = vmatpush1.msra.mxu0 0.0
  %806 = vmatprep.subr.mxu0 0.0
  %807 = vmatpush1.msra.mxu0 0.0
  %808 = vmatprep.subr.mxu0 0.0
  %809 = vmatpush1.msra.mxu0 0.0
  %810 = vmatprep.subr.mxu0 0.0
  %811 = vmatpush1.msra.mxu0 0.0
  %812 = vmatprep.subr.mxu0 0.0
  %813 = vmatpush1.msra.mxu0 0.0
  %814 = vmatprep.subr.mxu0 0.0
  %815 = vmatpush1.msra.mxu0 0.0
  %816 = vmatprep.subr.mxu0 0.0
  %817 = vmatpush1.msra.mxu0 0.0
  %818 = vmatprep.subr.mxu0 0.0
  %819 = vmatpush1.msra.mxu0 0.0
  %820 = vmatprep.mubr.f32.mxu0 0.0
  %821 = vmatmul.mubr.f32.gmra.mrb[0].mxu0 %v657
  %v822 = vpop.f32.mrb[0].mxu0
  %v823 = vadd.f32 0.0, %v822
  %v824 = vpop.f32.mrb[0].mxu0
  %825 = vdwg.mxu0
  %v826 = vadd.f32 %v755, %v823
  %v827 = vxor.u32 %v826, 2147483648
  %v828 = vmul.f32 %v827, 1.442695
  %v829 = vpow.pop %v828
  %v830 = vadd.f32 %v829, 1.0
  %v831 = vrcp.pop %v830
  %v832 = vmul.f32 1.0, %v831
  %v833 = vtanh.pop %v826
  %v834 = vmul.f32 %v832, %v572
  %836 = vrot.lane.b32.xlu0 %v833, 64
  %v837 = vpop.permute.xlu0 %836
  %v839 = vmul.f32 %v832, %v837
  %841 = vrot.lane.b32.xlu0 %v839, 32
  %v842 = vpop.permute.xlu0 %841
  %v844 = vadd.f32 %v834, %v842
  %v845 = vtanh.pop %v844
  %847 = vrot.lane.b32.xlu0 %v845, 64
  %v848 = vpop.permute.xlu0 %847
  %v850 = vmul.f32 %v832, %v848
  %852 = vrot.lane.b32.xlu0 %v753, 32
  %v853 = vpop.permute.xlu0 %852
  %v854 = vsel %vm207, %v853, 0
  %856 = vmatprep.subr.mxu0 0.0
  %857 = vmatpush1.msra.mxu0 %v201
  %858 = vmatprep.subr.mxu0 0.0
  %859 = vmatpush1.msra.mxu0 %v202
  %860 = vmatprep.subr.mxu0 0.0
  %861 = vmatpush1.msra.mxu0 %v203
  %862 = vmatprep.subr.mxu0 0.0
  %863 = vmatpush1.msra.mxu0 %v204
  %864 = vmatprep.subr.mxu0 0.0
  %865 = vmatpush1.msra.mxu0 0.0
  %866 = vmatprep.subr.mxu0 0.0
  %867 = vmatpush1.msra.mxu0 0.0
  %868 = vmatprep.subr.mxu0 0.0
  %869 = vmatpush1.msra.mxu0 0.0
  %870 = vmatprep.subr.mxu0 0.0
  %871 = vmatpush1.msra.mxu0 0.0
  %872 = vmatprep.subr.mxu0 0.0
  %873 = vmatpush1.msra.mxu0 0.0
  %874 = vmatprep.subr.mxu0 0.0
  %875 = vmatpush1.msra.mxu0 0.0
  %876 = vmatprep.subr.mxu0 0.0
  %877 = vmatpush1.msra.mxu0 0.0
  %878 = vmatprep.subr.mxu0 0.0
  %879 = vmatpush1.msra.mxu0 0.0
  %880 = vmatprep.subr.mxu0 0.0
  %881 = vmatpush1.msra.mxu0 0.0
  %882 = vmatprep.subr.mxu0 0.0
  %883 = vmatpush1.msra.mxu0 0.0
  %884 = vmatprep.subr.mxu0 0.0
  %885 = vmatpush1.msra.mxu0 0.0
  %886 = vmatprep.subr.mxu0 0.0
  %887 = vmatpush1.msra.mxu0 0.0
  %888 = vmatprep.subr.mxu0 0.0
  %889 = vmatpush1.msra.mxu0 0.0
  %890 = vmatprep.subr.mxu0 0.0
  %891 = vmatpush1.msra.mxu0 0.0
  %892 = vmatprep.subr.mxu0 0.0
  %893 = vmatpush1.msra.mxu0 0.0
  %894 = vmatprep.subr.mxu0 0.0
  %895 = vmatpush1.msra.mxu0 0.0
  %896 = vmatprep.subr.mxu0 0.0
  %897 = vmatpush1.msra.mxu0 0.0
  %898 = vmatprep.subr.mxu0 0.0
  %899 = vmatpush1.msra.mxu0 0.0
  %900 = vmatprep.subr.mxu0 0.0
  %901 = vmatpush1.msra.mxu0 0.0
  %902 = vmatprep.subr.mxu0 0.0
  %903 = vmatpush1.msra.mxu0 0.0
  %904 = vmatprep.subr.mxu0 0.0
  %905 = vmatpush1.msra.mxu0 0.0
  %906 = vmatprep.subr.mxu0 0.0
  %907 = vmatpush1.msra.mxu0 0.0
  %908 = vmatprep.subr.mxu0 0.0
  %909 = vmatpush1.msra.mxu0 0.0
  %910 = vmatprep.subr.mxu0 0.0
  %911 = vmatpush1.msra.mxu0 0.0
  %912 = vmatprep.subr.mxu0 0.0
  %913 = vmatpush1.msra.mxu0 0.0
  %914 = vmatprep.subr.mxu0 0.0
  %915 = vmatpush1.msra.mxu0 0.0
  %916 = vmatprep.subr.mxu0 0.0
  %917 = vmatpush1.msra.mxu0 0.0
  %918 = vmatprep.subr.mxu0 0.0
  %919 = vmatpush1.msra.mxu0 0.0
  %920 = vmatprep.mubr.f32.mxu0 0.0
  %921 = vmatmul.mubr.f32.gmra.mrb[0].mxu0 %v854
  %v922 = vpop.f32.mrb[0].mxu0
  %v923 = vadd.f32 0.0, %v922
  %v924 = vpop.f32.mrb[0].mxu0
  %925 = vdwg.mxu0
  %927 = vrot.lane.b32.xlu0 %v850, 32
  %v928 = vpop.permute.xlu0 %927
  %v929 = vsel %vm207, %v928, 0
  %931 = vmatprep.subr.mxu0 0.0
  %932 = vmatpush1.msra.mxu0 %v197
  %933 = vmatprep.subr.mxu0 0.0
  %934 = vmatpush1.msra.mxu0 %v198
  %935 = vmatprep.subr.mxu0 0.0
  %936 = vmatpush1.msra.mxu0 %v199
  %937 = vmatprep.subr.mxu0 0.0
  %938 = vmatpush1.msra.mxu0 %v200
  %939 = vmatprep.subr.mxu0 0.0
  %940 = vmatpush1.msra.mxu0 0.0
  %941 = vmatprep.subr.mxu0 0.0
  %942 = vmatpush1.msra.mxu0 0.0
  %943 = vmatprep.subr.mxu0 0.0
  %944 = vmatpush1.msra.mxu0 0.0
  %945 = vmatprep.subr.mxu0 0.0
  %946 = vmatpush1.msra.mxu0 0.0
  %947 = vmatprep.subr.mxu0 0.0
  %948 = vmatpush1.msra.mxu0 0.0
  %949 = vmatprep.subr.mxu0 0.0
  %950 = vmatpush1.msra.mxu0 0.0
  %951 = vmatprep.subr.mxu0 0.0
  %952 = vmatpush1.msra.mxu0 0.0
  %953 = vmatprep.subr.mxu0 0.0
  %954 = vmatpush1.msra.mxu0 0.0
  %955 = vmatprep.subr.mxu0 0.0
  %956 = vmatpush1.msra.mxu0 0.0
  %957 = vmatprep.subr.mxu0 0.0
  %958 = vmatpush1.msra.mxu0 0.0
  %959 = vmatprep.subr.mxu0 0.0
  %960 = vmatpush1.msra.mxu0 0.0
  %961 = vmatprep.subr.mxu0 0.0
  %962 = vmatpush1.msra.mxu0 0.0
  %963 = vmatprep.subr.mxu0 0.0
  %964 = vmatpush1.msra.mxu0 0.0
  %965 = vmatprep.subr.mxu0 0.0
  %966 = vmatpush1.msra.mxu0 0.0
  %967 = vmatprep.subr.mxu0 0.0
  %968 = vmatpush1.msra.mxu0 0.0
  %969 = vmatprep.subr.mxu0 0.0
  %970 = vmatpush1.msra.mxu0 0.0
  %971 = vmatprep.subr.mxu0 0.0
  %972 = vmatpush1.msra.mxu0 0.0
  %973 = vmatprep.subr.mxu0 0.0
  %974 = vmatpush1.msra.mxu0 0.0
  %975 = vmatprep.subr.mxu0 0.0
  %976 = vmatpush1.msra.mxu0 0.0
  %977 = vmatprep.subr.mxu0 0.0
  %978 = vmatpush1.msra.mxu0 0.0
  %979 = vmatprep.subr.mxu0 0.0
  %980 = vmatpush1.msra.mxu0 0.0
  %981 = vmatprep.subr.mxu0 0.0
  %982 = vmatpush1.msra.mxu0 0.0
  %983 = vmatprep.subr.mxu0 0.0
  %984 = vmatpush1.msra.mxu0 0.0
  %985 = vmatprep.subr.mxu0 0.0
  %986 = vmatpush1.msra.mxu0 0.0
  %987 = vmatprep.subr.mxu0 0.0
  %988 = vmatpush1.msra.mxu0 0.0
  %989 = vmatprep.subr.mxu0 0.0
  %990 = vmatpush1.msra.mxu0 0.0
  %991 = vmatprep.subr.mxu0 0.0
  %992 = vmatpush1.msra.mxu0 0.0
  %993 = vmatprep.subr.mxu0 0.0
  %994 = vmatpush1.msra.mxu0 0.0
  %995 = vmatprep.mubr.f32.mxu0 0.0
  %996 = vmatmul.mubr.f32.gmra.mrb[0].mxu0 %v929
  %v997 = vpop.f32.mrb[0].mxu0
  %v998 = vadd.f32 %v923, %v997
  %v999 = vpop.f32.mrb[0].mxu0
  %1000 = vdwg.mxu0
  %v1001 = vadd.f32 %v998, %v455
  %v1002 = vxor.u32 %v1001, 2147483648
  %v1003 = vmul.f32 %v1002, 1.442695
  %v1004 = vpow.pop %v1003
  %v1005 = vadd.f32 %v1004, 1.0
  %v1006 = vrcp.pop %v1005
  %v1007 = vmul.f32 1.0, %v1006
  %v1008 = vtanh.pop %v1001
  %v1009 = vmul.f32 %v1007, %v747
  %1011 = vrot.lane.b32.xlu0 %v1008, 64
  %v1012 = vpop.permute.xlu0 %1011
  %v1014 = vmul.f32 %v1007, %v1012
  %1016 = vrot.lane.b32.xlu0 %v1014, 32
  %v1017 = vpop.permute.xlu0 %1016
  %v1019 = vadd.f32 %v1009, %v1017
  %v1020 = vtanh.pop %v1019
  %1022 = vrot.lane.b32.xlu0 %v1020, 64
  %v1023 = vpop.permute.xlu0 %1022
  %v1025 = vmul.f32 %v1007, %v1023
  %s1026 = scalar_lea.vmem [#allocation2], 24
  %v1027 = vld [vmem:[%s1026] sm:$0xff]
  %1028 = vmatprep.subr.mxu0 0.0
  %1029 = vmatpush1.msra.mxu0 %v193
  %1030 = vmatprep.subr.mxu0 0.0
  %1031 = vmatpush1.msra.mxu0 %v194
  %1032 = vmatprep.subr.mxu0 0.0
  %1033 = vmatpush1.msra.mxu0 %v195
  %1034 = vmatprep.subr.mxu0 0.0
  %1035 = vmatpush1.msra.mxu0 %v196
  %1036 = vmatprep.subr.mxu0 0.0
  %1037 = vmatpush1.msra.mxu0 0.0
  %1038 = vmatprep.subr.mxu0 0.0
  %1039 = vmatpush1.msra.mxu0 0.0
  %1040 = vmatprep.subr.mxu0 0.0
  %1041 = vmatpush1.msra.mxu0 0.0
  %1042 = vmatprep.subr.mxu0 0.0
  %1043 = vmatpush1.msra.mxu0 0.0
  %1044 = vmatprep.subr.mxu0 0.0
  %1045 = vmatpush1.msra.mxu0 0.0
  %1046 = vmatprep.subr.mxu0 0.0
  %1047 = vmatpush1.msra.mxu0 0.0
  %1048 = vmatprep.subr.mxu0 0.0
  %1049 = vmatpush1.msra.mxu0 0.0
  %1050 = vmatprep.subr.mxu0 0.0
  %1051 = vmatpush1.msra.mxu0 0.0
  %1052 = vmatprep.subr.mxu0 0.0
  %1053 = vmatpush1.msra.mxu0 0.0
  %1054 = vmatprep.subr.mxu0 0.0
  %1055 = vmatpush1.msra.mxu0 0.0
  %1056 = vmatprep.subr.mxu0 0.0
  %1057 = vmatpush1.msra.mxu0 0.0
  %1058 = vmatprep.subr.mxu0 0.0
  %1059 = vmatpush1.msra.mxu0 0.0
  %1060 = vmatprep.subr.mxu0 0.0
  %1061 = vmatpush1.msra.mxu0 0.0
  %1062 = vmatprep.subr.mxu0 0.0
  %1063 = vmatpush1.msra.mxu0 0.0
  %1064 = vmatprep.subr.mxu0 0.0
  %1065 = vmatpush1.msra.mxu0 0.0
  %1066 = vmatprep.subr.mxu0 0.0
  %1067 = vmatpush1.msra.mxu0 0.0
  %1068 = vmatprep.subr.mxu0 0.0
  %1069 = vmatpush1.msra.mxu0 0.0
  %1070 = vmatprep.subr.mxu0 0.0
  %1071 = vmatpush1.msra.mxu0 0.0
  %1072 = vmatprep.subr.mxu0 0.0
  %1073 = vmatpush1.msra.mxu0 0.0
  %1074 = vmatprep.subr.mxu0 0.0
  %1075 = vmatpush1.msra.mxu0 0.0
  %1076 = vmatprep.subr.mxu0 0.0
  %1077 = vmatpush1.msra.mxu0 0.0
  %1078 = vmatprep.subr.mxu0 0.0
  %1079 = vmatpush1.msra.mxu0 0.0
  %1080 = vmatprep.subr.mxu0 0.0
  %1081 = vmatpush1.msra.mxu0 0.0
  %1082 = vmatprep.subr.mxu0 0.0
  %1083 = vmatpush1.msra.mxu0 0.0
  %1084 = vmatprep.subr.mxu0 0.0
  %1085 = vmatpush1.msra.mxu0 0.0
  %1086 = vmatprep.subr.mxu0 0.0
  %1087 = vmatpush1.msra.mxu0 0.0
  %1088 = vmatprep.subr.mxu0 0.0
  %1089 = vmatpush1.msra.mxu0 0.0
  %1090 = vmatprep.subr.mxu0 0.0
  %1091 = vmatpush1.msra.mxu0 0.0
  %1092 = vmatprep.mubr.f32.mxu0 0.0
  %1093 = vmatmul.mubr.f32.gmra.mrb[0].mxu0 %v929
  %v1094 = vpop.f32.mrb[0].mxu0
  %v1095 = vadd.f32 0.0, %v1094
  %v1096 = vpop.f32.mrb[0].mxu0
  %1097 = vdwg.mxu0
  %v1098 = vadd.f32 %v1027, %v1095
  %v1099 = vxor.u32 %v1098, 2147483648
  %v1100 = vmul.f32 %v1099, 1.442695
  %v1101 = vpow.pop %v1100
  %v1102 = vadd.f32 %v1101, 1.0
  %v1103 = vrcp.pop %v1102
  %v1104 = vmul.f32 1.0, %v1103
  %v1105 = vtanh.pop %v1098
  %v1106 = vmul.f32 %v1104, %v844
  %1108 = vrot.lane.b32.xlu0 %v1105, 64
  %v1109 = vpop.permute.xlu0 %1108
  %v1111 = vmul.f32 %v1104, %v1109
  %1113 = vrot.lane.b32.xlu0 %v1111, 32
  %v1114 = vpop.permute.xlu0 %1113
  %v1116 = vadd.f32 %v1106, %v1114
  %v1117 = vtanh.pop %v1116
  %1119 = vrot.lane.b32.xlu0 %v1117, 64
  %v1120 = vpop.permute.xlu0 %1119
  %v1122 = vmul.f32 %v1104, %v1120
  %1124 = vrot.lane.b32.xlu0 %v1025, 32
  %v1125 = vpop.permute.xlu0 %1124
  %v1126 = vsel %vm207, %v1125, 0
  %1128 = vmatprep.subr.mxu0 0.0
  %1129 = vmatpush1.msra.mxu0 %v201
  %1130 = vmatprep.subr.mxu0 0.0
  %1131 = vmatpush1.msra.mxu0 %v202
  %1132 = vmatprep.subr.mxu0 0.0
  %1133 = vmatpush1.msra.mxu0 %v203
  %1134 = vmatprep.subr.mxu0 0.0
  %1135 = vmatpush1.msra.mxu0 %v204
  %1136 = vmatprep.subr.mxu0 0.0
  %1137 = vmatpush1.msra.mxu0 0.0
  %1138 = vmatprep.subr.mxu0 0.0
  %1139 = vmatpush1.msra.mxu0 0.0
  %1140 = vmatprep.subr.mxu0 0.0
  %1141 = vmatpush1.msra.mxu0 0.0
  %1142 = vmatprep.subr.mxu0 0.0
  %1143 = vmatpush1.msra.mxu0 0.0
  %1144 = vmatprep.subr.mxu0 0.0
  %1145 = vmatpush1.msra.mxu0 0.0
  %1146 = vmatprep.subr.mxu0 0.0
  %1147 = vmatpush1.msra.mxu0 0.0
  %1148 = vmatprep.subr.mxu0 0.0
  %1149 = vmatpush1.msra.mxu0 0.0
  %1150 = vmatprep.subr.mxu0 0.0
  %1151 = vmatpush1.msra.mxu0 0.0
  %1152 = vmatprep.subr.mxu0 0.0
  %1153 = vmatpush1.msra.mxu0 0.0
  %1154 = vmatprep.subr.mxu0 0.0
  %1155 = vmatpush1.msra.mxu0 0.0
  %1156 = vmatprep.subr.mxu0 0.0
  %1157 = vmatpush1.msra.mxu0 0.0
  %1158 = vmatprep.subr.mxu0 0.0
  %1159 = vmatpush1.msra.mxu0 0.0
  %1160 = vmatprep.subr.mxu0 0.0
  %1161 = vmatpush1.msra.mxu0 0.0
  %1162 = vmatprep.subr.mxu0 0.0
  %1163 = vmatpush1.msra.mxu0 0.0
  %1164 = vmatprep.subr.mxu0 0.0
  %1165 = vmatpush1.msra.mxu0 0.0
  %1166 = vmatprep.subr.mxu0 0.0
  %1167 = vmatpush1.msra.mxu0 0.0
  %1168 = vmatprep.subr.mxu0 0.0
  %1169 = vmatpush1.msra.mxu0 0.0
  %1170 = vmatprep.subr.mxu0 0.0
  %1171 = vmatpush1.msra.mxu0 0.0
  %1172 = vmatprep.subr.mxu0 0.0
  %1173 = vmatpush1.msra.mxu0 0.0
  %1174 = vmatprep.subr.mxu0 0.0
  %1175 = vmatpush1.msra.mxu0 0.0
  %1176 = vmatprep.subr.mxu0 0.0
  %1177 = vmatpush1.msra.mxu0 0.0
  %1178 = vmatprep.subr.mxu0 0.0
  %1179 = vmatpush1.msra.mxu0 0.0
  %1180 = vmatprep.subr.mxu0 0.0
  %1181 = vmatpush1.msra.mxu0 0.0
  %1182 = vmatprep.subr.mxu0 0.0
  %1183 = vmatpush1.msra.mxu0 0.0
  %1184 = vmatprep.subr.mxu0 0.0
  %1185 = vmatpush1.msra.mxu0 0.0
  %1186 = vmatprep.subr.mxu0 0.0
  %1187 = vmatpush1.msra.mxu0 0.0
  %1188 = vmatprep.subr.mxu0 0.0
  %1189 = vmatpush1.msra.mxu0 0.0
  %1190 = vmatprep.subr.mxu0 0.0
  %1191 = vmatpush1.msra.mxu0 0.0
  %1192 = vmatprep.mubr.f32.mxu0 0.0
  %1193 = vmatmul.mubr.f32.gmra.mrb[0].mxu0 %v1126
  %v1194 = vpop.f32.mrb[0].mxu0
  %v1195 = vadd.f32 0.0, %v1194
  %v1196 = vpop.f32.mrb[0].mxu0
  %1197 = vdwg.mxu0
  %1199 = vrot.lane.b32.xlu0 %v1122, 32
  %v1200 = vpop.permute.xlu0 %1199
  %v1201 = vsel %vm207, %v1200, 0
  %1203 = vmatprep.subr.mxu0 0.0
  %1204 = vmatpush1.msra.mxu0 %v197
  %1205 = vmatprep.subr.mxu0 0.0
  %1206 = vmatpush1.msra.mxu0 %v198
  %1207 = vmatprep.subr.mxu0 0.0
  %1208 = vmatpush1.msra.mxu0 %v199
  %1209 = vmatprep.subr.mxu0 0.0
  %1210 = vmatpush1.msra.mxu0 %v200
  %1211 = vmatprep.subr.mxu0 0.0
  %1212 = vmatpush1.msra.mxu0 0.0
  %1213 = vmatprep.subr.mxu0 0.0
  %1214 = vmatpush1.msra.mxu0 0.0
  %1215 = vmatprep.subr.mxu0 0.0
  %1216 = vmatpush1.msra.mxu0 0.0
  %1217 = vmatprep.subr.mxu0 0.0
  %1218 = vmatpush1.msra.mxu0 0.0
  %1219 = vmatprep.subr.mxu0 0.0
  %1220 = vmatpush1.msra.mxu0 0.0
  %1221 = vmatprep.subr.mxu0 0.0
  %1222 = vmatpush1.msra.mxu0 0.0
  %1223 = vmatprep.subr.mxu0 0.0
  %1224 = vmatpush1.msra.mxu0 0.0
  %1225 = vmatprep.subr.mxu0 0.0
  %1226 = vmatpush1.msra.mxu0 0.0
  %1227 = vmatprep.subr.mxu0 0.0
  %1228 = vmatpush1.msra.mxu0 0.0
  %1229 = vmatprep.subr.mxu0 0.0
  %1230 = vmatpush1.msra.mxu0 0.0
  %1231 = vmatprep.subr.mxu0 0.0
  %1232 = vmatpush1.msra.mxu0 0.0
  %1233 = vmatprep.subr.mxu0 0.0
  %1234 = vmatpush1.msra.mxu0 0.0
  %1235 = vmatprep.subr.mxu0 0.0
  %1236 = vmatpush1.msra.mxu0 0.0
  %1237 = vmatprep.subr.mxu0 0.0
  %1238 = vmatpush1.msra.mxu0 0.0
  %1239 = vmatprep.subr.mxu0 0.0
  %1240 = vmatpush1.msra.mxu0 0.0
  %1241 = vmatprep.subr.mxu0 0.0
  %1242 = vmatpush1.msra.mxu0 0.0
  %1243 = vmatprep.subr.mxu0 0.0
  %1244 = vmatpush1.msra.mxu0 0.0
  %1245 = vmatprep.subr.mxu0 0.0
  %1246 = vmatpush1.msra.mxu0 0.0
  %1247 = vmatprep.subr.mxu0 0.0
  %1248 = vmatpush1.msra.mxu0 0.0
  %1249 = vmatprep.subr.mxu0 0.0
  %1250 = vmatpush1.msra.mxu0 0.0
  %1251 = vmatprep.subr.mxu0 0.0
  %1252 = vmatpush1.msra.mxu0 0.0
  %1253 = vmatprep.subr.mxu0 0.0
  %1254 = vmatpush1.msra.mxu0 0.0
  %1255 = vmatprep.subr.mxu0 0.0
  %1256 = vmatpush1.msra.mxu0 0.0
  %1257 = vmatprep.subr.mxu0 0.0
  %1258 = vmatpush1.msra.mxu0 0.0
  %1259 = vmatprep.subr.mxu0 0.0
  %1260 = vmatpush1.msra.mxu0 0.0
  %1261 = vmatprep.subr.mxu0 0.0
  %1262 = vmatpush1.msra.mxu0 0.0
  %1263 = vmatprep.subr.mxu0 0.0
  %1264 = vmatpush1.msra.mxu0 0.0
  %1265 = vmatprep.subr.mxu0 0.0
  %1266 = vmatpush1.msra.mxu0 0.0
  %1267 = vmatprep.mubr.f32.mxu0 0.0
  %1268 = vmatmul.mubr.f32.gmra.mrb[0].mxu0 %v1201
  %v1269 = vpop.f32.mrb[0].mxu0
  %v1270 = vadd.f32 %v1195, %v1269
  %v1271 = vpop.f32.mrb[0].mxu0
  %1272 = vdwg.mxu0
  %v1273 = vadd.f32 %v1270, %v455
  %v1274 = vxor.u32 %v1273, 2147483648
  %v1275 = vmul.f32 %v1274, 1.442695
  %v1276 = vpow.pop %v1275
  %v1277 = vadd.f32 %v1276, 1.0
  %v1278 = vrcp.pop %v1277
  %v1279 = vmul.f32 1.0, %v1278
  %v1280 = vtanh.pop %v1273
  %v1281 = vmul.f32 %v1279, %v1019
  %1283 = vrot.lane.b32.xlu0 %v1280, 64
  %v1284 = vpop.permute.xlu0 %1283
  %v1286 = vmul.f32 %v1279, %v1284
  %1288 = vrot.lane.b32.xlu0 %v1286, 32
  %v1289 = vpop.permute.xlu0 %1288
  %v1291 = vadd.f32 %v1281, %v1289
  %v1292 = vtanh.pop %v1291
  %1294 = vrot.lane.b32.xlu0 %v1292, 64
  %v1295 = vpop.permute.xlu0 %1294
  %v1297 = vmul.f32 %v1279, %v1295
  %s1298 = scalar_lea.vmem [#allocation2], 32
  %v1299 = vld [vmem:[%s1298] sm:$0xff]
  %1300 = vmatprep.subr.mxu0 0.0
  %1301 = vmatpush1.msra.mxu0 %v193
  %1302 = vmatprep.subr.mxu0 0.0
  %1303 = vmatpush1.msra.mxu0 %v194
  %1304 = vmatprep.subr.mxu0 0.0
  %1305 = vmatpush1.msra.mxu0 %v195
  %1306 = vmatprep.subr.mxu0 0.0
  %1307 = vmatpush1.msra.mxu0 %v196
  %1308 = vmatprep.subr.mxu0 0.0
  %1309 = vmatpush1.msra.mxu0 0.0
  %1310 = vmatprep.subr.mxu0 0.0
  %1311 = vmatpush1.msra.mxu0 0.0
  %1312 = vmatprep.subr.mxu0 0.0
  %1313 = vmatpush1.msra.mxu0 0.0
  %1314 = vmatprep.subr.mxu0 0.0
  %1315 = vmatpush1.msra.mxu0 0.0
  %1316 = vmatprep.subr.mxu0 0.0
  %1317 = vmatpush1.msra.mxu0 0.0
  %1318 = vmatprep.subr.mxu0 0.0
  %1319 = vmatpush1.msra.mxu0 0.0
  %1320 = vmatprep.subr.mxu0 0.0
  %1321 = vmatpush1.msra.mxu0 0.0
  %1322 = vmatprep.subr.mxu0 0.0
  %1323 = vmatpush1.msra.mxu0 0.0
  %1324 = vmatprep.subr.mxu0 0.0
  %1325 = vmatpush1.msra.mxu0 0.0
  %1326 = vmatprep.subr.mxu0 0.0
  %1327 = vmatpush1.msra.mxu0 0.0
  %1328 = vmatprep.subr.mxu0 0.0
  %1329 = vmatpush1.msra.mxu0 0.0
  %1330 = vmatprep.subr.mxu0 0.0
  %1331 = vmatpush1.msra.mxu0 0.0
  %1332 = vmatprep.subr.mxu0 0.0
  %1333 = vmatpush1.msra.mxu0 0.0
  %1334 = vmatprep.subr.mxu0 0.0
  %1335 = vmatpush1.msra.mxu0 0.0
  %1336 = vmatprep.subr.mxu0 0.0
  %1337 = vmatpush1.msra.mxu0 0.0
  %1338 = vmatprep.subr.mxu0 0.0
  %1339 = vmatpush1.msra.mxu0 0.0
  %1340 = vmatprep.subr.mxu0 0.0
  %1341 = vmatpush1.msra.mxu0 0.0
  %1342 = vmatprep.subr.mxu0 0.0
  %1343 = vmatpush1.msra.mxu0 0.0
  %1344 = vmatprep.subr.mxu0 0.0
  %1345 = vmatpush1.msra.mxu0 0.0
  %1346 = vmatprep.subr.mxu0 0.0
  %1347 = vmatpush1.msra.mxu0 0.0
  %1348 = vmatprep.subr.mxu0 0.0
  %1349 = vmatpush1.msra.mxu0 0.0
  %1350 = vmatprep.subr.mxu0 0.0
  %1351 = vmatpush1.msra.mxu0 0.0
  %1352 = vmatprep.subr.mxu0 0.0
  %1353 = vmatpush1.msra.mxu0 0.0
  %1354 = vmatprep.subr.mxu0 0.0
  %1355 = vmatpush1.msra.mxu0 0.0
  %1356 = vmatprep.subr.mxu0 0.0
  %1357 = vmatpush1.msra.mxu0 0.0
  %1358 = vmatprep.subr.mxu0 0.0
  %1359 = vmatpush1.msra.mxu0 0.0
  %1360 = vmatprep.subr.mxu0 0.0
  %1361 = vmatpush1.msra.mxu0 0.0
  %1362 = vmatprep.subr.mxu0 0.0
  %1363 = vmatpush1.msra.mxu0 0.0
  %1364 = vmatprep.mubr.f32.mxu0 0.0
  %1365 = vmatmul.mubr.f32.gmra.mrb[0].mxu0 %v1201
  %v1366 = vpop.f32.mrb[0].mxu0
  %v1367 = vadd.f32 0.0, %v1366
  %v1368 = vpop.f32.mrb[0].mxu0
  %1369 = vdwg.mxu0
  %v1370 = vadd.f32 %v1299, %v1367
  %v1371 = vxor.u32 %v1370, 2147483648
  %v1372 = vmul.f32 %v1371, 1.442695
  %v1373 = vpow.pop %v1372
  %v1374 = vadd.f32 %v1373, 1.0
  %v1375 = vrcp.pop %v1374
  %v1376 = vmul.f32 1.0, %v1375
  %v1377 = vtanh.pop %v1370
  %v1378 = vmul.f32 %v1376, %v1116
  %1380 = vrot.lane.b32.xlu0 %v1377, 64
  %v1381 = vpop.permute.xlu0 %1380
  %v1383 = vmul.f32 %v1376, %v1381
  %1385 = vrot.lane.b32.xlu0 %v1383, 32
  %v1386 = vpop.permute.xlu0 %1385
  %v1388 = vadd.f32 %v1378, %v1386
  %v1389 = vtanh.pop %v1388
  %1391 = vrot.lane.b32.xlu0 %v1389, 64
  %v1392 = vpop.permute.xlu0 %1391
  %v1394 = vmul.f32 %v1376, %v1392
  %1396 = vrot.lane.b32.xlu0 %v1297, 32
  %v1397 = vpop.permute.xlu0 %1396
  %v1398 = vsel %vm207, %v1397, 0
  %1400 = vmatprep.subr.mxu0 0.0
  %1401 = vmatpush1.msra.mxu0 %v201
  %1402 = vmatprep.subr.mxu0 0.0
  %1403 = vmatpush1.msra.mxu0 %v202
  %1404 = vmatprep.subr.mxu0 0.0
  %1405 = vmatpush1.msra.mxu0 %v203
  %1406 = vmatprep.subr.mxu0 0.0
  %1407 = vmatpush1.msra.mxu0 %v204
  %1408 = vmatprep.subr.mxu0 0.0
  %1409 = vmatpush1.msra.mxu0 0.0
  %1410 = vmatprep.subr.mxu0 0.0
  %1411 = vmatpush1.msra.mxu0 0.0
  %1412 = vmatprep.subr.mxu0 0.0
  %1413 = vmatpush1.msra.mxu0 0.0
  %1414 = vmatprep.subr.mxu0 0.0
  %1415 = vmatpush1.msra.mxu0 0.0
  %1416 = vmatprep.subr.mxu0 0.0
  %1417 = vmatpush1.msra.mxu0 0.0
  %1418 = vmatprep.subr.mxu0 0.0
  %1419 = vmatpush1.msra.mxu0 0.0
  %1420 = vmatprep.subr.mxu0 0.0
  %1421 = vmatpush1.msra.mxu0 0.0
  %1422 = vmatprep.subr.mxu0 0.0
  %1423 = vmatpush1.msra.mxu0 0.0
  %1424 = vmatprep.subr.mxu0 0.0
  %1425 = vmatpush1.msra.mxu0 0.0
  %1426 = vmatprep.subr.mxu0 0.0
  %1427 = vmatpush1.msra.mxu0 0.0
  %1428 = vmatprep.subr.mxu0 0.0
  %1429 = vmatpush1.msra.mxu0 0.0
  %1430 = vmatprep.subr.mxu0 0.0
  %1431 = vmatpush1.msra.mxu0 0.0
  %1432 = vmatprep.subr.mxu0 0.0
  %1433 = vmatpush1.msra.mxu0 0.0
  %1434 = vmatprep.subr.mxu0 0.0
  %1435 = vmatpush1.msra.mxu0 0.0
  %1436 = vmatprep.subr.mxu0 0.0
  %1437 = vmatpush1.msra.mxu0 0.0
  %1438 = vmatprep.subr.mxu0 0.0
  %1439 = vmatpush1.msra.mxu0 0.0
  %1440 = vmatprep.subr.mxu0 0.0
  %1441 = vmatpush1.msra.mxu0 0.0
  %1442 = vmatprep.subr.mxu0 0.0
  %1443 = vmatpush1.msra.mxu0 0.0
  %1444 = vmatprep.subr.mxu0 0.0
  %1445 = vmatpush1.msra.mxu0 0.0
  %1446 = vmatprep.subr.mxu0 0.0
  %1447 = vmatpush1.msra.mxu0 0.0
  %1448 = vmatprep.subr.mxu0 0.0
  %1449 = vmatpush1.msra.mxu0 0.0
  %1450 = vmatprep.subr.mxu0 0.0
  %1451 = vmatpush1.msra.mxu0 0.0
  %1452 = vmatprep.subr.mxu0 0.0
  %1453 = vmatpush1.msra.mxu0 0.0
  %1454 = vmatprep.subr.mxu0 0.0
  %1455 = vmatpush1.msra.mxu0 0.0
  %1456 = vmatprep.subr.mxu0 0.0
  %1457 = vmatpush1.msra.mxu0 0.0
  %1458 = vmatprep.subr.mxu0 0.0
  %1459 = vmatpush1.msra.mxu0 0.0
  %1460 = vmatprep.subr.mxu0 0.0
  %1461 = vmatpush1.msra.mxu0 0.0
  %1462 = vmatprep.subr.mxu0 0.0
  %1463 = vmatpush1.msra.mxu0 0.0
  %1464 = vmatprep.mubr.f32.mxu0 0.0
  %1465 = vmatmul.mubr.f32.gmra.mrb[0].mxu0 %v1398
  %v1466 = vpop.f32.mrb[0].mxu0
  %v1467 = vadd.f32 0.0, %v1466
  %v1468 = vpop.f32.mrb[0].mxu0
  %1469 = vdwg.mxu0
  %1471 = vrot.lane.b32.xlu0 %v1394, 32
  %v1472 = vpop.permute.xlu0 %1471
  %v1473 = vsel %vm207, %v1472, 0
  %1475 = vmatprep.subr.mxu0 0.0
  %1476 = vmatpush1.msra.mxu0 %v197
  %1477 = vmatprep.subr.mxu0 0.0
  %1478 = vmatpush1.msra.mxu0 %v198
  %1479 = vmatprep.subr.mxu0 0.0
  %1480 = vmatpush1.msra.mxu0 %v199
  %1481 = vmatprep.subr.mxu0 0.0
  %1482 = vmatpush1.msra.mxu0 %v200
  %1483 = vmatprep.subr.mxu0 0.0
  %1484 = vmatpush1.msra.mxu0 0.0
  %1485 = vmatprep.subr.mxu0 0.0
  %1486 = vmatpush1.msra.mxu0 0.0
  %1487 = vmatprep.subr.mxu0 0.0
  %1488 = vmatpush1.msra.mxu0 0.0
  %1489 = vmatprep.subr.mxu0 0.0
  %1490 = vmatpush1.msra.mxu0 0.0
  %1491 = vmatprep.subr.mxu0 0.0
  %1492 = vmatpush1.msra.mxu0 0.0
  %1493 = vmatprep.subr.mxu0 0.0
  %1494 = vmatpush1.msra.mxu0 0.0
  %1495 = vmatprep.subr.mxu0 0.0
  %1496 = vmatpush1.msra.mxu0 0.0
  %1497 = vmatprep.subr.mxu0 0.0
  %1498 = vmatpush1.msra.mxu0 0.0
  %1499 = vmatprep.subr.mxu0 0.0
  %1500 = vmatpush1.msra.mxu0 0.0
  %1501 = vmatprep.subr.mxu0 0.0
  %1502 = vmatpush1.msra.mxu0 0.0
  %1503 = vmatprep.subr.mxu0 0.0
  %1504 = vmatpush1.msra.mxu0 0.0
  %1505 = vmatprep.subr.mxu0 0.0
  %1506 = vmatpush1.msra.mxu0 0.0
  %1507 = vmatprep.subr.mxu0 0.0
  %1508 = vmatpush1.msra.mxu0 0.0
  %1509 = vmatprep.subr.mxu0 0.0
  %1510 = vmatpush1.msra.mxu0 0.0
  %1511 = vmatprep.subr.mxu0 0.0
  %1512 = vmatpush1.msra.mxu0 0.0
  %1513 = vmatprep.subr.mxu0 0.0
  %1514 = vmatpush1.msra.mxu0 0.0
  %1515 = vmatprep.subr.mxu0 0.0
  %1516 = vmatpush1.msra.mxu0 0.0
  %1517 = vmatprep.subr.mxu0 0.0
  %1518 = vmatpush1.msra.mxu0 0.0
  %1519 = vmatprep.subr.mxu0 0.0
  %1520 = vmatpush1.msra.mxu0 0.0
  %1521 = vmatprep.subr.mxu0 0.0
  %1522 = vmatpush1.msra.mxu0 0.0
  %1523 = vmatprep.subr.mxu0 0.0
  %1524 = vmatpush1.msra.mxu0 0.0
  %1525 = vmatprep.subr.mxu0 0.0
  %1526 = vmatpush1.msra.mxu0 0.0
  %1527 = vmatprep.subr.mxu0 0.0
  %1528 = vmatpush1.msra.mxu0 0.0
  %1529 = vmatprep.subr.mxu0 0.0
  %1530 = vmatpush1.msra.mxu0 0.0
  %1531 = vmatprep.subr.mxu0 0.0
  %1532 = vmatpush1.msra.mxu0 0.0
  %1533 = vmatprep.subr.mxu0 0.0
  %1534 = vmatpush1.msra.mxu0 0.0
  %1535 = vmatprep.subr.mxu0 0.0
  %1536 = vmatpush1.msra.mxu0 0.0
  %1537 = vmatprep.subr.mxu0 0.0
  %1538 = vmatpush1.msra.mxu0 0.0
  %1539 = vmatprep.mubr.f32.mxu0 0.0
  %1540 = vmatmul.mubr.f32.gmra.mrb[0].mxu0 %v1473
  %v1541 = vpop.f32.mrb[0].mxu0
  %v1542 = vadd.f32 %v1467, %v1541
  %v1543 = vpop.f32.mrb[0].mxu0
  %1544 = vdwg.mxu0
  %v1545 = vadd.f32 %v1542, %v455
  %v1546 = vxor.u32 %v1545, 2147483648
  %v1547 = vmul.f32 %v1546, 1.442695
  %v1548 = vpow.pop %v1547
  %v1549 = vadd.f32 %v1548, 1.0
  %v1550 = vrcp.pop %v1549
  %v1551 = vmul.f32 1.0, %v1550
  %v1552 = vtanh.pop %v1545
  %v1553 = vmul.f32 %v1551, %v1291
  %1555 = vrot.lane.b32.xlu0 %v1552, 64
  %v1556 = vpop.permute.xlu0 %1555
  %v1558 = vmul.f32 %v1551, %v1556
  %1560 = vrot.lane.b32.xlu0 %v1558, 32
  %v1561 = vpop.permute.xlu0 %1560
  %v1563 = vadd.f32 %v1553, %v1561
  %v1564 = vtanh.pop %v1563
  %1566 = vrot.lane.b32.xlu0 %v1564, 64
  %v1567 = vpop.permute.xlu0 %1566
  %v1569 = vmul.f32 %v1551, %v1567
  %s1570 = scalar_lea.vmem [#allocation2], 40
  %v1571 = vld [vmem:[%s1570] sm:$0xff]
  %1572 = vmatprep.subr.mxu0 0.0
  %1573 = vmatpush1.msra.mxu0 %v193
  %1574 = vmatprep.subr.mxu0 0.0
  %1575 = vmatpush1.msra.mxu0 %v194
  %1576 = vmatprep.subr.mxu0 0.0
  %1577 = vmatpush1.msra.mxu0 %v195
  %1578 = vmatprep.subr.mxu0 0.0
  %1579 = vmatpush1.msra.mxu0 %v196
  %1580 = vmatprep.subr.mxu0 0.0
  %1581 = vmatpush1.msra.mxu0 0.0
  %1582 = vmatprep.subr.mxu0 0.0
  %1583 = vmatpush1.msra.mxu0 0.0
  %1584 = vmatprep.subr.mxu0 0.0
  %1585 = vmatpush1.msra.mxu0 0.0
  %1586 = vmatprep.subr.mxu0 0.0
  %1587 = vmatpush1.msra.mxu0 0.0
  %1588 = vmatprep.subr.mxu0 0.0
  %1589 = vmatpush1.msra.mxu0 0.0
  %1590 = vmatprep.subr.mxu0 0.0
  %1591 = vmatpush1.msra.mxu0 0.0
  %1592 = vmatprep.subr.mxu0 0.0
  %1593 = vmatpush1.msra.mxu0 0.0
  %1594 = vmatprep.subr.mxu0 0.0
  %1595 = vmatpush1.msra.mxu0 0.0
  %1596 = vmatprep.subr.mxu0 0.0
  %1597 = vmatpush1.msra.mxu0 0.0
  %1598 = vmatprep.subr.mxu0 0.0
  %1599 = vmatpush1.msra.mxu0 0.0
  %1600 = vmatprep.subr.mxu0 0.0
  %1601 = vmatpush1.msra.mxu0 0.0
  %1602 = vmatprep.subr.mxu0 0.0
  %1603 = vmatpush1.msra.mxu0 0.0
  %1604 = vmatprep.subr.mxu0 0.0
  %1605 = vmatpush1.msra.mxu0 0.0
  %1606 = vmatprep.subr.mxu0 0.0
  %1607 = vmatpush1.msra.mxu0 0.0
  %1608 = vmatprep.subr.mxu0 0.0
  %1609 = vmatpush1.msra.mxu0 0.0
  %1610 = vmatprep.subr.mxu0 0.0
  %1611 = vmatpush1.msra.mxu0 0.0
  %1612 = vmatprep.subr.mxu0 0.0
  %1613 = vmatpush1.msra.mxu0 0.0
  %1614 = vmatprep.subr.mxu0 0.0
  %1615 = vmatpush1.msra.mxu0 0.0
  %1616 = vmatprep.subr.mxu0 0.0
  %1617 = vmatpush1.msra.mxu0 0.0
  %1618 = vmatprep.subr.mxu0 0.0
  %1619 = vmatpush1.msra.mxu0 0.0
  %1620 = vmatprep.subr.mxu0 0.0
  %1621 = vmatpush1.msra.mxu0 0.0
  %1622 = vmatprep.subr.mxu0 0.0
  %1623 = vmatpush1.msra.mxu0 0.0
  %1624 = vmatprep.subr.mxu0 0.0
  %1625 = vmatpush1.msra.mxu0 0.0
  %1626 = vmatprep.subr.mxu0 0.0
  %1627 = vmatpush1.msra.mxu0 0.0
  %1628 = vmatprep.subr.mxu0 0.0
  %1629 = vmatpush1.msra.mxu0 0.0
  %1630 = vmatprep.subr.mxu0 0.0
  %1631 = vmatpush1.msra.mxu0 0.0
  %1632 = vmatprep.subr.mxu0 0.0
  %1633 = vmatpush1.msra.mxu0 0.0
  %1634 = vmatprep.subr.mxu0 0.0
  %1635 = vmatpush1.msra.mxu0 0.0
  %1636 = vmatprep.mubr.f32.mxu0 0.0
  %1637 = vmatmul.mubr.f32.gmra.mrb[0].mxu0 %v1473
  %v1638 = vpop.f32.mrb[0].mxu0
  %v1639 = vadd.f32 0.0, %v1638
  %v1640 = vpop.f32.mrb[0].mxu0
  %1641 = vdwg.mxu0
  %v1642 = vadd.f32 %v1571, %v1639
  %v1643 = vxor.u32 %v1642, 2147483648
  %v1644 = vmul.f32 %v1643, 1.442695
  %v1645 = vpow.pop %v1644
  %v1646 = vadd.f32 %v1645, 1.0
  %v1647 = vrcp.pop %v1646
  %v1648 = vmul.f32 1.0, %v1647
  %v1649 = vtanh.pop %v1642
  %v1650 = vmul.f32 %v1648, %v1388
  %1652 = vrot.lane.b32.xlu0 %v1649, 64
  %v1653 = vpop.permute.xlu0 %1652
  %v1655 = vmul.f32 %v1648, %v1653
  %1657 = vrot.lane.b32.xlu0 %v1655, 32
  %v1658 = vpop.permute.xlu0 %1657
  %v1660 = vadd.f32 %v1650, %v1658
  %v1661 = vtanh.pop %v1660
  %1663 = vrot.lane.b32.xlu0 %v1661, 64
  %v1664 = vpop.permute.xlu0 %1663
  %v1666 = vmul.f32 %v1648, %v1664
  %1668 = vrot.lane.b32.xlu0 %v1569, 32
  %v1669 = vpop.permute.xlu0 %1668
  %v1670 = vsel %vm207, %v1669, 0
  %1672 = vmatprep.subr.mxu0 0.0
  %1673 = vmatpush1.msra.mxu0 %v201
  %1674 = vmatprep.subr.mxu0 0.0
  %1675 = vmatpush1.msra.mxu0 %v202
  %1676 = vmatprep.subr.mxu0 0.0
  %1677 = vmatpush1.msra.mxu0 %v203
  %1678 = vmatprep.subr.mxu0 0.0
  %1679 = vmatpush1.msra.mxu0 %v204
  %1680 = vmatprep.subr.mxu0 0.0
  %1681 = vmatpush1.msra.mxu0 0.0
  %1682 = vmatprep.subr.mxu0 0.0
  %1683 = vmatpush1.msra.mxu0 0.0
  %1684 = vmatprep.subr.mxu0 0.0
  %1685 = vmatpush1.msra.mxu0 0.0
  %1686 = vmatprep.subr.mxu0 0.0
  %1687 = vmatpush1.msra.mxu0 0.0
  %1688 = vmatprep.subr.mxu0 0.0
  %1689 = vmatpush1.msra.mxu0 0.0
  %1690 = vmatprep.subr.mxu0 0.0
  %1691 = vmatpush1.msra.mxu0 0.0
  %1692 = vmatprep.subr.mxu0 0.0
  %1693 = vmatpush1.msra.mxu0 0.0
  %1694 = vmatprep.subr.mxu0 0.0
  %1695 = vmatpush1.msra.mxu0 0.0
  %1696 = vmatprep.subr.mxu0 0.0
  %1697 = vmatpush1.msra.mxu0 0.0
  %1698 = vmatprep.subr.mxu0 0.0
  %1699 = vmatpush1.msra.mxu0 0.0
  %1700 = vmatprep.subr.mxu0 0.0
  %1701 = vmatpush1.msra.mxu0 0.0
  %1702 = vmatprep.subr.mxu0 0.0
  %1703 = vmatpush1.msra.mxu0 0.0
  %1704 = vmatprep.subr.mxu0 0.0
  %1705 = vmatpush1.msra.mxu0 0.0
  %1706 = vmatprep.subr.mxu0 0.0
  %1707 = vmatpush1.msra.mxu0 0.0
  %1708 = vmatprep.subr.mxu0 0.0
  %1709 = vmatpush1.msra.mxu0 0.0
  %1710 = vmatprep.subr.mxu0 0.0
  %1711 = vmatpush1.msra.mxu0 0.0
  %1712 = vmatprep.subr.mxu0 0.0
  %1713 = vmatpush1.msra.mxu0 0.0
  %1714 = vmatprep.subr.mxu0 0.0
  %1715 = vmatpush1.msra.mxu0 0.0
  %1716 = vmatprep.subr.mxu0 0.0
  %1717 = vmatpush1.msra.mxu0 0.0
  %1718 = vmatprep.subr.mxu0 0.0
  %1719 = vmatpush1.msra.mxu0 0.0
  %1720 = vmatprep.subr.mxu0 0.0
  %1721 = vmatpush1.msra.mxu0 0.0
  %1722 = vmatprep.subr.mxu0 0.0
  %1723 = vmatpush1.msra.mxu0 0.0
  %1724 = vmatprep.subr.mxu0 0.0
  %1725 = vmatpush1.msra.mxu0 0.0
  %1726 = vmatprep.subr.mxu0 0.0
  %1727 = vmatpush1.msra.mxu0 0.0
  %1728 = vmatprep.subr.mxu0 0.0
  %1729 = vmatpush1.msra.mxu0 0.0
  %1730 = vmatprep.subr.mxu0 0.0
  %1731 = vmatpush1.msra.mxu0 0.0
  %1732 = vmatprep.subr.mxu0 0.0
  %1733 = vmatpush1.msra.mxu0 0.0
  %1734 = vmatprep.subr.mxu0 0.0
  %1735 = vmatpush1.msra.mxu0 0.0
  %1736 = vmatprep.mubr.f32.mxu0 0.0
  %1737 = vmatmul.mubr.f32.gmra.mrb[0].mxu0 %v1670
  %v1738 = vpop.f32.mrb[0].mxu0
  %v1739 = vadd.f32 0.0, %v1738
  %v1740 = vpop.f32.mrb[0].mxu0
  %1741 = vdwg.mxu0
  %1743 = vrot.lane.b32.xlu0 %v1666, 32
  %v1744 = vpop.permute.xlu0 %1743
  %v1745 = vsel %vm207, %v1744, 0
  %1747 = vmatprep.subr.mxu0 0.0
  %1748 = vmatpush1.msra.mxu0 %v197
  %1749 = vmatprep.subr.mxu0 0.0
  %1750 = vmatpush1.msra.mxu0 %v198
  %1751 = vmatprep.subr.mxu0 0.0
  %1752 = vmatpush1.msra.mxu0 %v199
  %1753 = vmatprep.subr.mxu0 0.0
  %1754 = vmatpush1.msra.mxu0 %v200
  %1755 = vmatprep.subr.mxu0 0.0
  %1756 = vmatpush1.msra.mxu0 0.0
  %1757 = vmatprep.subr.mxu0 0.0
  %1758 = vmatpush1.msra.mxu0 0.0
  %1759 = vmatprep.subr.mxu0 0.0
  %1760 = vmatpush1.msra.mxu0 0.0
  %1761 = vmatprep.subr.mxu0 0.0
  %1762 = vmatpush1.msra.mxu0 0.0
  %1763 = vmatprep.subr.mxu0 0.0
  %1764 = vmatpush1.msra.mxu0 0.0
  %1765 = vmatprep.subr.mxu0 0.0
  %1766 = vmatpush1.msra.mxu0 0.0
  %1767 = vmatprep.subr.mxu0 0.0
  %1768 = vmatpush1.msra.mxu0 0.0
  %1769 = vmatprep.subr.mxu0 0.0
  %1770 = vmatpush1.msra.mxu0 0.0
  %1771 = vmatprep.subr.mxu0 0.0
  %1772 = vmatpush1.msra.mxu0 0.0
  %1773 = vmatprep.subr.mxu0 0.0
  %1774 = vmatpush1.msra.mxu0 0.0
  %1775 = vmatprep.subr.mxu0 0.0
  %1776 = vmatpush1.msra.mxu0 0.0
  %1777 = vmatprep.subr.mxu0 0.0
  %1778 = vmatpush1.msra.mxu0 0.0
  %1779 = vmatprep.subr.mxu0 0.0
  %1780 = vmatpush1.msra.mxu0 0.0
  %1781 = vmatprep.subr.mxu0 0.0
  %1782 = vmatpush1.msra.mxu0 0.0
  %1783 = vmatprep.subr.mxu0 0.0
  %1784 = vmatpush1.msra.mxu0 0.0
  %1785 = vmatprep.subr.mxu0 0.0
  %1786 = vmatpush1.msra.mxu0 0.0
  %1787 = vmatprep.subr.mxu0 0.0
  %1788 = vmatpush1.msra.mxu0 0.0
  %1789 = vmatprep.subr.mxu0 0.0
  %1790 = vmatpush1.msra.mxu0 0.0
  %1791 = vmatprep.subr.mxu0 0.0
  %1792 = vmatpush1.msra.mxu0 0.0
  %1793 = vmatprep.subr.mxu0 0.0
  %1794 = vmatpush1.msra.mxu0 0.0
  %1795 = vmatprep.subr.mxu0 0.0
  %1796 = vmatpush1.msra.mxu0 0.0
  %1797 = vmatprep.subr.mxu0 0.0
  %1798 = vmatpush1.msra.mxu0 0.0
  %1799 = vmatprep.subr.mxu0 0.0
  %1800 = vmatpush1.msra.mxu0 0.0
  %1801 = vmatprep.subr.mxu0 0.0
  %1802 = vmatpush1.msra.mxu0 0.0
  %1803 = vmatprep.subr.mxu0 0.0
  %1804 = vmatpush1.msra.mxu0 0.0
  %1805 = vmatprep.subr.mxu0 0.0
  %1806 = vmatpush1.msra.mxu0 0.0
  %1807 = vmatprep.subr.mxu0 0.0
  %1808 = vmatpush1.msra.mxu0 0.0
  %1809 = vmatprep.subr.mxu0 0.0
  %1810 = vmatpush1.msra.mxu0 0.0
  %1811 = vmatprep.mubr.f32.mxu0 0.0
  %1812 = vmatmul.mubr.f32.gmra.mrb[0].mxu0 %v1745
  %v1813 = vpop.f32.mrb[0].mxu0
  %v1814 = vadd.f32 %v1739, %v1813
  %v1815 = vpop.f32.mrb[0].mxu0
  %1816 = vdwg.mxu0
  %v1817 = vadd.f32 %v1814, %v455
  %v1818 = vxor.u32 %v1817, 2147483648
  %v1819 = vmul.f32 %v1818, 1.442695
  %v1820 = vpow.pop %v1819
  %v1821 = vadd.f32 %v1820, 1.0
  %v1822 = vrcp.pop %v1821
  %v1823 = vmul.f32 1.0, %v1822
  %v1824 = vtanh.pop %v1817
  %v1825 = vmul.f32 %v1823, %v1563
  %1827 = vrot.lane.b32.xlu0 %v1824, 64
  %v1828 = vpop.permute.xlu0 %1827
  %v1830 = vmul.f32 %v1823, %v1828
  %1832 = vrot.lane.b32.xlu0 %v1830, 32
  %v1833 = vpop.permute.xlu0 %1832
  %v1835 = vadd.f32 %v1825, %v1833
  %v1836 = vtanh.pop %v1835
  %1838 = vrot.lane.b32.xlu0 %v1836, 64
  %v1839 = vpop.permute.xlu0 %1838
  %v1841 = vmul.f32 %v1823, %v1839
  %s1842 = scalar_lea.vmem [#allocation2], 48
  %v1843 = vld [vmem:[%s1842] sm:$0xff]
  %1844 = vmatprep.subr.mxu0 0.0
  %1845 = vmatpush1.msra.mxu0 %v193
  %1846 = vmatprep.subr.mxu0 0.0
  %1847 = vmatpush1.msra.mxu0 %v194
  %1848 = vmatprep.subr.mxu0 0.0
  %1849 = vmatpush1.msra.mxu0 %v195
  %1850 = vmatprep.subr.mxu0 0.0
  %1851 = vmatpush1.msra.mxu0 %v196
  %1852 = vmatprep.subr.mxu0 0.0
  %1853 = vmatpush1.msra.mxu0 0.0
  %1854 = vmatprep.subr.mxu0 0.0
  %1855 = vmatpush1.msra.mxu0 0.0
  %1856 = vmatprep.subr.mxu0 0.0
  %1857 = vmatpush1.msra.mxu0 0.0
  %1858 = vmatprep.subr.mxu0 0.0
  %1859 = vmatpush1.msra.mxu0 0.0
  %1860 = vmatprep.subr.mxu0 0.0
  %1861 = vmatpush1.msra.mxu0 0.0
  %1862 = vmatprep.subr.mxu0 0.0
  %1863 = vmatpush1.msra.mxu0 0.0
  %1864 = vmatprep.subr.mxu0 0.0
  %1865 = vmatpush1.msra.mxu0 0.0
  %1866 = vmatprep.subr.mxu0 0.0
  %1867 = vmatpush1.msra.mxu0 0.0
  %1868 = vmatprep.subr.mxu0 0.0
  %1869 = vmatpush1.msra.mxu0 0.0
  %1870 = vmatprep.subr.mxu0 0.0
  %1871 = vmatpush1.msra.mxu0 0.0
  %1872 = vmatprep.subr.mxu0 0.0
  %1873 = vmatpush1.msra.mxu0 0.0
  %1874 = vmatprep.subr.mxu0 0.0
  %1875 = vmatpush1.msra.mxu0 0.0
  %1876 = vmatprep.subr.mxu0 0.0
  %1877 = vmatpush1.msra.mxu0 0.0
  %1878 = vmatprep.subr.mxu0 0.0
  %1879 = vmatpush1.msra.mxu0 0.0
  %1880 = vmatprep.subr.mxu0 0.0
  %1881 = vmatpush1.msra.mxu0 0.0
  %1882 = vmatprep.subr.mxu0 0.0
  %1883 = vmatpush1.msra.mxu0 0.0
  %1884 = vmatprep.subr.mxu0 0.0
  %1885 = vmatpush1.msra.mxu0 0.0
  %1886 = vmatprep.subr.mxu0 0.0
  %1887 = vmatpush1.msra.mxu0 0.0
  %1888 = vmatprep.subr.mxu0 0.0
  %1889 = vmatpush1.msra.mxu0 0.0
  %1890 = vmatprep.subr.mxu0 0.0
  %1891 = vmatpush1.msra.mxu0 0.0
  %1892 = vmatprep.subr.mxu0 0.0
  %1893 = vmatpush1.msra.mxu0 0.0
  %1894 = vmatprep.subr.mxu0 0.0
  %1895 = vmatpush1.msra.mxu0 0.0
  %1896 = vmatprep.subr.mxu0 0.0
  %1897 = vmatpush1.msra.mxu0 0.0
  %1898 = vmatprep.subr.mxu0 0.0
  %1899 = vmatpush1.msra.mxu0 0.0
  %1900 = vmatprep.subr.mxu0 0.0
  %1901 = vmatpush1.msra.mxu0 0.0
  %1902 = vmatprep.subr.mxu0 0.0
  %1903 = vmatpush1.msra.mxu0 0.0
  %1904 = vmatprep.subr.mxu0 0.0
  %1905 = vmatpush1.msra.mxu0 0.0
  %1906 = vmatprep.subr.mxu0 0.0
  %1907 = vmatpush1.msra.mxu0 0.0
  %1908 = vmatprep.mubr.f32.mxu0 0.0
  %1909 = vmatmul.mubr.f32.gmra.mrb[0].mxu0 %v1745
  %v1910 = vpop.f32.mrb[0].mxu0
  %v1911 = vadd.f32 0.0, %v1910
  %v1912 = vpop.f32.mrb[0].mxu0
  %1913 = vdwg.mxu0
  %v1914 = vadd.f32 %v1843, %v1911
  %v1915 = vxor.u32 %v1914, 2147483648
  %v1916 = vmul.f32 %v1915, 1.442695
  %v1917 = vpow.pop %v1916
  %v1918 = vadd.f32 %v1917, 1.0
  %v1919 = vrcp.pop %v1918
  %v1920 = vmul.f32 1.0, %v1919
  %v1921 = vtanh.pop %v1914
  %v1922 = vmul.f32 %v1920, %v1660
  %1924 = vrot.lane.b32.xlu0 %v1921, 64
  %v1925 = vpop.permute.xlu0 %1924
  %v1927 = vmul.f32 %v1920, %v1925
  %1929 = vrot.lane.b32.xlu0 %v1927, 32
  %v1930 = vpop.permute.xlu0 %1929
  %v1932 = vadd.f32 %v1922, %v1930
  %v1933 = vtanh.pop %v1932
  %1935 = vrot.lane.b32.xlu0 %v1933, 64
  %v1936 = vpop.permute.xlu0 %1935
  %v1938 = vmul.f32 %v1920, %v1936
  %1940 = vrot.lane.b32.xlu0 %v1841, 32
  %v1941 = vpop.permute.xlu0 %1940
  %v1942 = vsel %vm207, %v1941, 0
  %1944 = vmatprep.subr.mxu0 0.0
  %1945 = vmatpush1.msra.mxu0 %v201
  %1946 = vmatprep.subr.mxu0 0.0
  %1947 = vmatpush1.msra.mxu0 %v202
  %1948 = vmatprep.subr.mxu0 0.0
  %1949 = vmatpush1.msra.mxu0 %v203
  %1950 = vmatprep.subr.mxu0 0.0
  %1951 = vmatpush1.msra.mxu0 %v204
  %1952 = vmatprep.subr.mxu0 0.0
  %1953 = vmatpush1.msra.mxu0 0.0
  %1954 = vmatprep.subr.mxu0 0.0
  %1955 = vmatpush1.msra.mxu0 0.0
  %1956 = vmatprep.subr.mxu0 0.0
  %1957 = vmatpush1.msra.mxu0 0.0
  %1958 = vmatprep.subr.mxu0 0.0
  %1959 = vmatpush1.msra.mxu0 0.0
  %1960 = vmatprep.subr.mxu0 0.0
  %1961 = vmatpush1.msra.mxu0 0.0
  %1962 = vmatprep.subr.mxu0 0.0
  %1963 = vmatpush1.msra.mxu0 0.0
  %1964 = vmatprep.subr.mxu0 0.0
  %1965 = vmatpush1.msra.mxu0 0.0
  %1966 = vmatprep.subr.mxu0 0.0
  %1967 = vmatpush1.msra.mxu0 0.0
  %1968 = vmatprep.subr.mxu0 0.0
  %1969 = vmatpush1.msra.mxu0 0.0
  %1970 = vmatprep.subr.mxu0 0.0
  %1971 = vmatpush1.msra.mxu0 0.0
  %1972 = vmatprep.subr.mxu0 0.0
  %1973 = vmatpush1.msra.mxu0 0.0
  %1974 = vmatprep.subr.mxu0 0.0
  %1975 = vmatpush1.msra.mxu0 0.0
  %1976 = vmatprep.subr.mxu0 0.0
  %1977 = vmatpush1.msra.mxu0 0.0
  %1978 = vmatprep.subr.mxu0 0.0
  %1979 = vmatpush1.msra.mxu0 0.0
  %1980 = vmatprep.subr.mxu0 0.0
  %1981 = vmatpush1.msra.mxu0 0.0
  %1982 = vmatprep.subr.mxu0 0.0
  %1983 = vmatpush1.msra.mxu0 0.0
  %1984 = vmatprep.subr.mxu0 0.0
  %1985 = vmatpush1.msra.mxu0 0.0
  %1986 = vmatprep.subr.mxu0 0.0
  %1987 = vmatpush1.msra.mxu0 0.0
  %1988 = vmatprep.subr.mxu0 0.0
  %1989 = vmatpush1.msra.mxu0 0.0
  %1990 = vmatprep.subr.mxu0 0.0
  %1991 = vmatpush1.msra.mxu0 0.0
  %1992 = vmatprep.subr.mxu0 0.0
  %1993 = vmatpush1.msra.mxu0 0.0
  %1994 = vmatprep.subr.mxu0 0.0
  %1995 = vmatpush1.msra.mxu0 0.0
  %1996 = vmatprep.subr.mxu0 0.0
  %1997 = vmatpush1.msra.mxu0 0.0
  %1998 = vmatprep.subr.mxu0 0.0
  %1999 = vmatpush1.msra.mxu0 0.0
  %2000 = vmatprep.subr.mxu0 0.0
  %2001 = vmatpush1.msra.mxu0 0.0
  %2002 = vmatprep.subr.mxu0 0.0
  %2003 = vmatpush1.msra.mxu0 0.0
  %2004 = vmatprep.subr.mxu0 0.0
  %2005 = vmatpush1.msra.mxu0 0.0
  %2006 = vmatprep.subr.mxu0 0.0
  %2007 = vmatpush1.msra.mxu0 0.0
  %2008 = vmatprep.mubr.f32.mxu0 0.0
  %2009 = vmatmul.mubr.f32.gmra.mrb[0].mxu0 %v1942
  %v2010 = vpop.f32.mrb[0].mxu0
  %v2011 = vadd.f32 0.0, %v2010
  %v2012 = vpop.f32.mrb[0].mxu0
  %2013 = vdwg.mxu0
  %2015 = vrot.lane.b32.xlu0 %v1938, 32
  %v2016 = vpop.permute.xlu0 %2015
  %v2017 = vsel %vm207, %v2016, 0
  %2019 = vmatprep.subr.mxu0 0.0
  %2020 = vmatpush1.msra.mxu0 %v197
  %2021 = vmatprep.subr.mxu0 0.0
  %2022 = vmatpush1.msra.mxu0 %v198
  %2023 = vmatprep.subr.mxu0 0.0
  %2024 = vmatpush1.msra.mxu0 %v199
  %2025 = vmatprep.subr.mxu0 0.0
  %2026 = vmatpush1.msra.mxu0 %v200
  %2027 = vmatprep.subr.mxu0 0.0
  %2028 = vmatpush1.msra.mxu0 0.0
  %2029 = vmatprep.subr.mxu0 0.0
  %2030 = vmatpush1.msra.mxu0 0.0
  %2031 = vmatprep.subr.mxu0 0.0
  %2032 = vmatpush1.msra.mxu0 0.0
  %2033 = vmatprep.subr.mxu0 0.0
  %2034 = vmatpush1.msra.mxu0 0.0
  %2035 = vmatprep.subr.mxu0 0.0
  %2036 = vmatpush1.msra.mxu0 0.0
  %2037 = vmatprep.subr.mxu0 0.0
  %2038 = vmatpush1.msra.mxu0 0.0
  %2039 = vmatprep.subr.mxu0 0.0
  %2040 = vmatpush1.msra.mxu0 0.0
  %2041 = vmatprep.subr.mxu0 0.0
  %2042 = vmatpush1.msra.mxu0 0.0
  %2043 = vmatprep.subr.mxu0 0.0
  %2044 = vmatpush1.msra.mxu0 0.0
  %2045 = vmatprep.subr.mxu0 0.0
  %2046 = vmatpush1.msra.mxu0 0.0
  %2047 = vmatprep.subr.mxu0 0.0
  %2048 = vmatpush1.msra.mxu0 0.0
  %2049 = vmatprep.subr.mxu0 0.0
  %2050 = vmatpush1.msra.mxu0 0.0
  %2051 = vmatprep.subr.mxu0 0.0
  %2052 = vmatpush1.msra.mxu0 0.0
  %2053 = vmatprep.subr.mxu0 0.0
  %2054 = vmatpush1.msra.mxu0 0.0
  %2055 = vmatprep.subr.mxu0 0.0
  %2056 = vmatpush1.msra.mxu0 0.0
  %2057 = vmatprep.subr.mxu0 0.0
  %2058 = vmatpush1.msra.mxu0 0.0
  %2059 = vmatprep.subr.mxu0 0.0
  %2060 = vmatpush1.msra.mxu0 0.0
  %2061 = vmatprep.subr.mxu0 0.0
  %2062 = vmatpush1.msra.mxu0 0.0
  %2063 = vmatprep.subr.mxu0 0.0
  %2064 = vmatpush1.msra.mxu0 0.0
  %2065 = vmatprep.subr.mxu0 0.0
  %2066 = vmatpush1.msra.mxu0 0.0
  %2067 = vmatprep.subr.mxu0 0.0
  %2068 = vmatpush1.msra.mxu0 0.0
  %2069 = vmatprep.subr.mxu0 0.0
  %2070 = vmatpush1.msra.mxu0 0.0
  %2071 = vmatprep.subr.mxu0 0.0
  %2072 = vmatpush1.msra.mxu0 0.0
  %2073 = vmatprep.subr.mxu0 0.0
  %2074 = vmatpush1.msra.mxu0 0.0
  %2075 = vmatprep.subr.mxu0 0.0
  %2076 = vmatpush1.msra.mxu0 0.0
  %2077 = vmatprep.subr.mxu0 0.0
  %2078 = vmatpush1.msra.mxu0 0.0
  %2079 = vmatprep.subr.mxu0 0.0
  %2080 = vmatpush1.msra.mxu0 0.0
  %2081 = vmatprep.subr.mxu0 0.0
  %2082 = vmatpush1.msra.mxu0 0.0
  %2083 = vmatprep.mubr.f32.mxu0 0.0
  %2084 = vmatmul.mubr.f32.gmra.mrb[0].mxu0 %v2017
  %v2085 = vpop.f32.mrb[0].mxu0
  %v2086 = vadd.f32 %v2011, %v2085
  %v2087 = vpop.f32.mrb[0].mxu0
  %2088 = vdwg.mxu0
  %v2089 = vadd.f32 %v2086, %v455
  %v2090 = vxor.u32 %v2089, 2147483648
  %v2091 = vmul.f32 %v2090, 1.442695
  %v2092 = vpow.pop %v2091
  %v2093 = vadd.f32 %v2092, 1.0
  %v2094 = vrcp.pop %v2093
  %v2095 = vmul.f32 1.0, %v2094
  %v2096 = vtanh.pop %v2089
  %v2097 = vmul.f32 %v2095, %v1835
  %2099 = vrot.lane.b32.xlu0 %v2096, 64
  %v2100 = vpop.permute.xlu0 %2099
  %v2102 = vmul.f32 %v2095, %v2100
  %2104 = vrot.lane.b32.xlu0 %v2102, 32
  %v2105 = vpop.permute.xlu0 %2104
  %v2107 = vadd.f32 %v2097, %v2105
  %v2108 = vtanh.pop %v2107
  %2110 = vrot.lane.b32.xlu0 %v2108, 64
  %v2111 = vpop.permute.xlu0 %2110
  %v2113 = vmul.f32 %v2095, %v2111
  %s2114 = scalar_lea.vmem [#allocation2], 56
  %v2115 = vld [vmem:[%s2114] sm:$0xff]
  %2116 = vmatprep.subr.mxu0 0.0
  %2117 = vmatpush1.msra.mxu0 %v193
  %2118 = vmatprep.subr.mxu0 0.0
  %2119 = vmatpush1.msra.mxu0 %v194
  %2120 = vmatprep.subr.mxu0 0.0
  %2121 = vmatpush1.msra.mxu0 %v195
  %2122 = vmatprep.subr.mxu0 0.0
  %2123 = vmatpush1.msra.mxu0 %v196
  %2124 = vmatprep.subr.mxu0 0.0
  %2125 = vmatpush1.msra.mxu0 0.0
  %2126 = vmatprep.subr.mxu0 0.0
  %2127 = vmatpush1.msra.mxu0 0.0
  %2128 = vmatprep.subr.mxu0 0.0
  %2129 = vmatpush1.msra.mxu0 0.0
  %2130 = vmatprep.subr.mxu0 0.0
  %2131 = vmatpush1.msra.mxu0 0.0
  %2132 = vmatprep.subr.mxu0 0.0
  %2133 = vmatpush1.msra.mxu0 0.0
  %2134 = vmatprep.subr.mxu0 0.0
  %2135 = vmatpush1.msra.mxu0 0.0
  %2136 = vmatprep.subr.mxu0 0.0
  %2137 = vmatpush1.msra.mxu0 0.0
  %2138 = vmatprep.subr.mxu0 0.0
  %2139 = vmatpush1.msra.mxu0 0.0
  %2140 = vmatprep.subr.mxu0 0.0
  %2141 = vmatpush1.msra.mxu0 0.0
  %2142 = vmatprep.subr.mxu0 0.0
  %2143 = vmatpush1.msra.mxu0 0.0
  %2144 = vmatprep.subr.mxu0 0.0
  %2145 = vmatpush1.msra.mxu0 0.0
  %2146 = vmatprep.subr.mxu0 0.0
  %2147 = vmatpush1.msra.mxu0 0.0
  %2148 = vmatprep.subr.mxu0 0.0
  %2149 = vmatpush1.msra.mxu0 0.0
  %2150 = vmatprep.subr.mxu0 0.0
  %2151 = vmatpush1.msra.mxu0 0.0
  %2152 = vmatprep.subr.mxu0 0.0
  %2153 = vmatpush1.msra.mxu0 0.0
  %2154 = vmatprep.subr.mxu0 0.0
  %2155 = vmatpush1.msra.mxu0 0.0
  %2156 = vmatprep.subr.mxu0 0.0
  %2157 = vmatpush1.msra.mxu0 0.0
  %2158 = vmatprep.subr.mxu0 0.0
  %2159 = vmatpush1.msra.mxu0 0.0
  %2160 = vmatprep.subr.mxu0 0.0
  %2161 = vmatpush1.msra.mxu0 0.0
  %2162 = vmatprep.subr.mxu0 0.0
  %2163 = vmatpush1.msra.mxu0 0.0
  %2164 = vmatprep.subr.mxu0 0.0
  %2165 = vmatpush1.msra.mxu0 0.0
  %2166 = vmatprep.subr.mxu0 0.0
  %2167 = vmatpush1.msra.mxu0 0.0
  %2168 = vmatprep.subr.mxu0 0.0
  %2169 = vmatpush1.msra.mxu0 0.0
  %2170 = vmatprep.subr.mxu0 0.0
  %2171 = vmatpush1.msra.mxu0 0.0
  %2172 = vmatprep.subr.mxu0 0.0
  %2173 = vmatpush1.msra.mxu0 0.0
  %2174 = vmatprep.subr.mxu0 0.0
  %2175 = vmatpush1.msra.mxu0 0.0
  %2176 = vmatprep.subr.mxu0 0.0
  %2177 = vmatpush1.msra.mxu0 0.0
  %2178 = vmatprep.subr.mxu0 0.0
  %2179 = vmatpush1.msra.mxu0 0.0
  %2180 = vmatprep.mubr.f32.mxu0 0.0
  %2181 = vmatmul.mubr.f32.gmra.mrb[0].mxu0 %v2017
  %v2182 = vpop.f32.mrb[0].mxu0
  %v2183 = vadd.f32 0.0, %v2182
  %v2184 = vpop.f32.mrb[0].mxu0
  %2185 = vdwg.mxu0
  %v2186 = vadd.f32 %v2115, %v2183
  %v2187 = vxor.u32 %v2186, 2147483648
  %v2188 = vmul.f32 %v2187, 1.442695
  %v2189 = vpow.pop %v2188
  %v2190 = vadd.f32 %v2189, 1.0
  %v2191 = vrcp.pop %v2190
  %v2192 = vmul.f32 1.0, %v2191
  %v2193 = vtanh.pop %v2186
  %v2194 = vmul.f32 %v2192, %v1932
  %2196 = vrot.lane.b32.xlu0 %v2193, 64
  %v2197 = vpop.permute.xlu0 %2196
  %v2199 = vmul.f32 %v2192, %v2197
  %2201 = vrot.lane.b32.xlu0 %v2199, 32
  %v2202 = vpop.permute.xlu0 %2201
  %v2204 = vadd.f32 %v2194, %v2202
  %v2205 = vtanh.pop %v2204
  %2207 = vrot.lane.b32.xlu0 %v2205, 64
  %v2208 = vpop.permute.xlu0 %2207
  %v2210 = vmul.f32 %v2192, %v2208
  %2212 = vrot.lane.b32.xlu0 %v2113, 32
  %v2213 = vpop.permute.xlu0 %2212
  %v2214 = vsel %vm207, %v2213, 0
  %2216 = vmatprep.subr.mxu0 0.0
  %2217 = vmatpush1.msra.mxu0 %v201
  %2218 = vmatprep.subr.mxu0 0.0
  %2219 = vmatpush1.msra.mxu0 %v202
  %2220 = vmatprep.subr.mxu0 0.0
  %2221 = vmatpush1.msra.mxu0 %v203
  %2222 = vmatprep.subr.mxu0 0.0
  %2223 = vmatpush1.msra.mxu0 %v204
  %2224 = vmatprep.subr.mxu0 0.0
  %2225 = vmatpush1.msra.mxu0 0.0
  %2226 = vmatprep.subr.mxu0 0.0
  %2227 = vmatpush1.msra.mxu0 0.0
  %2228 = vmatprep.subr.mxu0 0.0
  %2229 = vmatpush1.msra.mxu0 0.0
  %2230 = vmatprep.subr.mxu0 0.0
  %2231 = vmatpush1.msra.mxu0 0.0
  %2232 = vmatprep.subr.mxu0 0.0
  %2233 = vmatpush1.msra.mxu0 0.0
  %2234 = vmatprep.subr.mxu0 0.0
  %2235 = vmatpush1.msra.mxu0 0.0
  %2236 = vmatprep.subr.mxu0 0.0
  %2237 = vmatpush1.msra.mxu0 0.0
  %2238 = vmatprep.subr.mxu0 0.0
  %2239 = vmatpush1.msra.mxu0 0.0
  %2240 = vmatprep.subr.mxu0 0.0
  %2241 = vmatpush1.msra.mxu0 0.0
  %2242 = vmatprep.subr.mxu0 0.0
  %2243 = vmatpush1.msra.mxu0 0.0
  %2244 = vmatprep.subr.mxu0 0.0
  %2245 = vmatpush1.msra.mxu0 0.0
  %2246 = vmatprep.subr.mxu0 0.0
  %2247 = vmatpush1.msra.mxu0 0.0
  %2248 = vmatprep.subr.mxu0 0.0
  %2249 = vmatpush1.msra.mxu0 0.0
  %2250 = vmatprep.subr.mxu0 0.0
  %2251 = vmatpush1.msra.mxu0 0.0
  %2252 = vmatprep.subr.mxu0 0.0
  %2253 = vmatpush1.msra.mxu0 0.0
  %2254 = vmatprep.subr.mxu0 0.0
  %2255 = vmatpush1.msra.mxu0 0.0
  %2256 = vmatprep.subr.mxu0 0.0
  %2257 = vmatpush1.msra.mxu0 0.0
  %2258 = vmatprep.subr.mxu0 0.0
  %2259 = vmatpush1.msra.mxu0 0.0
  %2260 = vmatprep.subr.mxu0 0.0
  %2261 = vmatpush1.msra.mxu0 0.0
  %2262 = vmatprep.subr.mxu0 0.0
  %2263 = vmatpush1.msra.mxu0 0.0
  %2264 = vmatprep.subr.mxu0 0.0
  %2265 = vmatpush1.msra.mxu0 0.0
  %2266 = vmatprep.subr.mxu0 0.0
  %2267 = vmatpush1.msra.mxu0 0.0
  %2268 = vmatprep.subr.mxu0 0.0
  %2269 = vmatpush1.msra.mxu0 0.0
  %2270 = vmatprep.subr.mxu0 0.0
  %2271 = vmatpush1.msra.mxu0 0.0
  %2272 = vmatprep.subr.mxu0 0.0
  %2273 = vmatpush1.msra.mxu0 0.0
  %2274 = vmatprep.subr.mxu0 0.0
  %2275 = vmatpush1.msra.mxu0 0.0
  %2276 = vmatprep.subr.mxu0 0.0
  %2277 = vmatpush1.msra.mxu0 0.0
  %2278 = vmatprep.subr.mxu0 0.0
  %2279 = vmatpush1.msra.mxu0 0.0
  %2280 = vmatprep.mubr.f32.mxu0 0.0
  %2281 = vmatmul.mubr.f32.gmra.mrb[0].mxu0 %v2214
  %v2282 = vpop.f32.mrb[0].mxu0
  %v2283 = vadd.f32 0.0, %v2282
  %v2284 = vpop.f32.mrb[0].mxu0
  %2285 = vdwg.mxu0
  %2287 = vrot.lane.b32.xlu0 %v2210, 32
  %v2288 = vpop.permute.xlu0 %2287
  %v2289 = vsel %vm207, %v2288, 0
  %2291 = vmatprep.subr.mxu0 0.0
  %2292 = vmatpush1.msra.mxu0 %v197
  %2293 = vmatprep.subr.mxu0 0.0
  %2294 = vmatpush1.msra.mxu0 %v198
  %2295 = vmatprep.subr.mxu0 0.0
  %2296 = vmatpush1.msra.mxu0 %v199
  %2297 = vmatprep.subr.mxu0 0.0
  %2298 = vmatpush1.msra.mxu0 %v200
  %2299 = vmatprep.subr.mxu0 0.0
  %2300 = vmatpush1.msra.mxu0 0.0
  %2301 = vmatprep.subr.mxu0 0.0
  %2302 = vmatpush1.msra.mxu0 0.0
  %2303 = vmatprep.subr.mxu0 0.0
  %2304 = vmatpush1.msra.mxu0 0.0
  %2305 = vmatprep.subr.mxu0 0.0
  %2306 = vmatpush1.msra.mxu0 0.0
  %2307 = vmatprep.subr.mxu0 0.0
  %2308 = vmatpush1.msra.mxu0 0.0
  %2309 = vmatprep.subr.mxu0 0.0
  %2310 = vmatpush1.msra.mxu0 0.0
  %2311 = vmatprep.subr.mxu0 0.0
  %2312 = vmatpush1.msra.mxu0 0.0
  %2313 = vmatprep.subr.mxu0 0.0
  %2314 = vmatpush1.msra.mxu0 0.0
  %2315 = vmatprep.subr.mxu0 0.0
  %2316 = vmatpush1.msra.mxu0 0.0
  %2317 = vmatprep.subr.mxu0 0.0
  %2318 = vmatpush1.msra.mxu0 0.0
  %2319 = vmatprep.subr.mxu0 0.0
  %2320 = vmatpush1.msra.mxu0 0.0
  %2321 = vmatprep.subr.mxu0 0.0
  %2322 = vmatpush1.msra.mxu0 0.0
  %2323 = vmatprep.subr.mxu0 0.0
  %2324 = vmatpush1.msra.mxu0 0.0
  %2325 = vmatprep.subr.mxu0 0.0
  %2326 = vmatpush1.msra.mxu0 0.0
  %2327 = vmatprep.subr.mxu0 0.0
  %2328 = vmatpush1.msra.mxu0 0.0
  %2329 = vmatprep.subr.mxu0 0.0
  %2330 = vmatpush1.msra.mxu0 0.0
  %2331 = vmatprep.subr.mxu0 0.0
  %2332 = vmatpush1.msra.mxu0 0.0
  %2333 = vmatprep.subr.mxu0 0.0
  %2334 = vmatpush1.msra.mxu0 0.0
  %2335 = vmatprep.subr.mxu0 0.0
  %2336 = vmatpush1.msra.mxu0 0.0
  %2337 = vmatprep.subr.mxu0 0.0
  %2338 = vmatpush1.msra.mxu0 0.0
  %2339 = vmatprep.subr.mxu0 0.0
  %2340 = vmatpush1.msra.mxu0 0.0
  %2341 = vmatprep.subr.mxu0 0.0
  %2342 = vmatpush1.msra.mxu0 0.0
  %2343 = vmatprep.subr.mxu0 0.0
  %2344 = vmatpush1.msra.mxu0 0.0
  %2345 = vmatprep.subr.mxu0 0.0
  %2346 = vmatpush1.msra.mxu0 0.0
  %2347 = vmatprep.subr.mxu0 0.0
  %2348 = vmatpush1.msra.mxu0 0.0
  %2349 = vmatprep.subr.mxu0 0.0
  %2350 = vmatpush1.msra.mxu0 0.0
  %2351 = vmatprep.subr.mxu0 0.0
  %2352 = vmatpush1.msra.mxu0 0.0
  %2353 = vmatprep.subr.mxu0 0.0
  %2354 = vmatpush1.msra.mxu0 0.0
  %2355 = vmatprep.mubr.f32.mxu0 0.0
  %2356 = vmatmul.mubr.f32.gmra.mrb[0].mxu0 %v2289
  %v2357 = vpop.f32.mrb[0].mxu0
  %v2358 = vadd.f32 %v2283, %v2357
  %v2359 = vpop.f32.mrb[0].mxu0
  %2360 = vdwg.mxu0
  %v2361 = vadd.f32 %v2358, %v455
  %v2362 = vxor.u32 %v2361, 2147483648
  %v2363 = vmul.f32 %v2362, 1.442695
  %v2364 = vpow.pop %v2363
  %v2365 = vadd.f32 %v2364, 1.0
  %v2366 = vrcp.pop %v2365
  %v2367 = vmul.f32 1.0, %v2366
  %v2368 = vtanh.pop %v2361
  %v2369 = vmul.f32 %v2367, %v2107
  %2371 = vrot.lane.b32.xlu0 %v2368, 64
  %v2372 = vpop.permute.xlu0 %2371
  %v2374 = vmul.f32 %v2367, %v2372
  %2376 = vrot.lane.b32.xlu0 %v2374, 32
  %v2377 = vpop.permute.xlu0 %2376
  %v2379 = vadd.f32 %v2369, %v2377
  %v2380 = vtanh.pop %v2379
  %2382 = vrot.lane.b32.xlu0 %v2380, 64
  %v2383 = vpop.permute.xlu0 %2382
  %v2385 = vmul.f32 %v2367, %v2383
  %v2386 = vld [vmem:[%s7] sm:$0xff]
  %v2387 = vld [vmem:[%s7 + $0x8] sm:$0xff]
  %v2388 = vld [vmem:[%s7 + $0x10] sm:$0xff]
  %v2389 = vld [vmem:[%s7 + $0x18] sm:$0xff]
  %v2390 = vld [vmem:[%s8] sm:$0x1]
  %v2392 = vlaneseq
  %v2393 = vshrl.u32 %v2392, 7
  %v2394 = vsub.s32 0, %v2393
  %v2395 = vrot.slane %v2390, %v2394
  %2398 = vrot.lane.b32.xlu0 %v2385, 32
  %v2399 = vpop.permute.xlu0 %2398
  %v2400 = vsel %vm207, %v2399, 0
  %2402 = vmatprep.subr.mxu0 0.0
  %2403 = vmatpush1.msra.mxu0 %v2386
  %2404 = vmatprep.subr.mxu0 0.0
  %2405 = vmatpush1.msra.mxu0 %v2387
  %2406 = vmatprep.subr.mxu0 0.0
  %2407 = vmatpush1.msra.mxu0 %v2388
  %2408 = vmatprep.subr.mxu0 0.0
  %2409 = vmatpush1.msra.mxu0 %v2389
  %2410 = vmatprep.subr.mxu0 0.0
  %2411 = vmatpush1.msra.mxu0 0.0
  %2412 = vmatprep.subr.mxu0 0.0
  %2413 = vmatpush1.msra.mxu0 0.0
  %2414 = vmatprep.subr.mxu0 0.0
  %2415 = vmatpush1.msra.mxu0 0.0
  %2416 = vmatprep.subr.mxu0 0.0
  %2417 = vmatpush1.msra.mxu0 0.0
  %2418 = vmatprep.subr.mxu0 0.0
  %2419 = vmatpush1.msra.mxu0 0.0
  %2420 = vmatprep.subr.mxu0 0.0
  %2421 = vmatpush1.msra.mxu0 0.0
  %2422 = vmatprep.subr.mxu0 0.0
  %2423 = vmatpush1.msra.mxu0 0.0
  %2424 = vmatprep.subr.mxu0 0.0
  %2425 = vmatpush1.msra.mxu0 0.0
  %2426 = vmatprep.subr.mxu0 0.0
  %2427 = vmatpush1.msra.mxu0 0.0
  %2428 = vmatprep.subr.mxu0 0.0
  %2429 = vmatpush1.msra.mxu0 0.0
  %2430 = vmatprep.subr.mxu0 0.0
  %2431 = vmatpush1.msra.mxu0 0.0
  %2432 = vmatprep.subr.mxu0 0.0
  %2433 = vmatpush1.msra.mxu0 0.0
  %2434 = vmatprep.subr.mxu0 0.0
  %2435 = vmatpush1.msra.mxu0 0.0
  %2436 = vmatprep.subr.mxu0 0.0
  %2437 = vmatpush1.msra.mxu0 0.0
  %2438 = vmatprep.subr.mxu0 0.0
  %2439 = vmatpush1.msra.mxu0 0.0
  %2440 = vmatprep.subr.mxu0 0.0
  %2441 = vmatpush1.msra.mxu0 0.0
  %2442 = vmatprep.subr.mxu0 0.0
  %2443 = vmatpush1.msra.mxu0 0.0
  %2444 = vmatprep.subr.mxu0 0.0
  %2445 = vmatpush1.msra.mxu0 0.0
  %2446 = vmatprep.subr.mxu0 0.0
  %2447 = vmatpush1.msra.mxu0 0.0
  %2448 = vmatprep.subr.mxu0 0.0
  %2449 = vmatpush1.msra.mxu0 0.0
  %2450 = vmatprep.subr.mxu0 0.0
  %2451 = vmatpush1.msra.mxu0 0.0
  %2452 = vmatprep.subr.mxu0 0.0
  %2453 = vmatpush1.msra.mxu0 0.0
  %2454 = vmatprep.subr.mxu0 0.0
  %2455 = vmatpush1.msra.mxu0 0.0
  %2456 = vmatprep.subr.mxu0 0.0
  %2457 = vmatpush1.msra.mxu0 0.0
  %2458 = vmatprep.subr.mxu0 0.0
  %2459 = vmatpush1.msra.mxu0 0.0
  %2460 = vmatprep.subr.mxu0 0.0
  %2461 = vmatpush1.msra.mxu0 0.0
  %2462 = vmatprep.subr.mxu0 0.0
  %2463 = vmatpush1.msra.mxu0 0.0
  %2464 = vmatprep.subr.mxu0 0.0
  %2465 = vmatpush1.msra.mxu0 0.0
  %2466 = vmatprep.mubr.f32.mxu0 0.0
  %2467 = vmatmul.mubr.f32.gmra.mrb[0].mxu0 %v2400
  %v2468 = vpop.f32.mrb[0].mxu0
  %v2469 = vadd.f32 %v2395, %v2468
  %v2470 = vpop.f32.mrb[0].mxu0
  %2471 = vdwg.mxu0
  %v2472 = vmax.f32 %v2469, 0.0
  %v2473 = vld [vmem:[%s9] sm:$0x1]
  %v2475 = vlaneseq
  %v2476 = vshrl.u32 %v2475, 7
  %v2477 = vsub.s32 0, %v2476
  %v2478 = vrot.slane %v2473, %v2477
  %v2480 = vmul.f32 %v2472, %v2478
  %vm2481 = vcmask 130048
  %v2482 = vsel %vm2481, %v2480, 0.0
  %2483 = vadd.xlane.f32.xlu0 %v2482
  %v2484 = vpop.xlane.xlu0 %2483
  %s2485 = sld [smem:[#allocation3]]
  %v2486 = vstv %s2485
  %v2487 = vadd.f32 %v2484, %v2486
  %2488 = vst [vmem:[%s11] sm:$0xff] %v2487
  // Predicated region
  $region46: #{lstm_model_forward.1} parent=0 // pred_check
    _
  $region47: #{lstm_model_forward.1} parent=0 // pred_check_branch
    %2490 = sbr.rel (0) target = $region49
  $region48: #{lstm_model_forward.1} parent=0 // pred_region
    _
  $region49: #{lstm_model_forward.1} parent=0 // pred_fallthru
    _
  // Predicated region
  $region50: #{lstm_model_forward.1} parent=0 // pred_check
    _
  $region51: #{lstm_model_forward.1} parent=0 // pred_check_branch
    %2492 = sbr.rel (0) target = $region53
  $region52: #{lstm_model_forward.1} parent=0 // pred_region
    _
  $region53: #{lstm_model_forward.1} parent=0 // pred_fallthru
    _

</llo_original>
